<compile_context>
chip_gen: v5e
topology: v5e:2x2
jax: 0.10.0
libtpu: 0.0.40
codegen_flags: <defaults>
</compile_context>

<pallas_src>
import jax
import jax.numpy as jnp
from jax.experimental import pallas as pl
from jax.experimental.pallas import tpu as pltpu


def _round_up(x, m):
    return ((x + m - 1) // m) * m


# ----------------------------------------------------------------------------
# Pallas kernel: fused multi-channel LSTM layer (input projection + recurrence).
#   x_ref  : (1, Tc*Bp, Dp)    input rows for this chunk (time-major, batch-flat)
#   wih_ref: (1, Dp, 4*Hp)     input->gate weights (padded)
#   whh_ref: (1, Hp, 4*Hp)     recurrent weights (padded)
#   b_ref  : (1, 1, 4*Hp)      combined bias (padded)
#   y_ref  : (1, Tc*Bp, Hp)    hidden-state outputs for this chunk
#   h_scr/c_scr: (Bp, Hp)      state carried across time chunks in VMEM
#   gx_scr : (Tc*Bp, 4*Hp)     chunk-local input-projection buffer
# ----------------------------------------------------------------------------
def _lstm_layer_kernel(x_ref, wih_ref, whh_ref, b_ref, y_ref,
                       h_scr, c_scr, gx_scr):
    # Reset state at the start of each channel's sequence.
    @pl.when(pl.program_id(1) == 0)
    def _():
        h_scr[...] = jnp.zeros_like(h_scr)
        c_scr[...] = jnp.zeros_like(c_scr)

    # Chunk-level input projection on the MXU: one GEMM for all Tc timesteps.
    gx_scr[...] = jnp.dot(x_ref[0], wih_ref[0],
                          preferred_element_type=jnp.float32) + b_ref[0]

    w_hh = whh_ref[0]                       # (Hp, 4*Hp), resident in VMEM
    bp, hp = h_scr.shape
    tc = gx_scr.shape[0] // bp

    h = h_scr[...]
    c = c_scr[...]
    # Statically unrolled loop over the Tc timesteps of this chunk.  Only the
    # small h @ W_hh matmul + gate nonlinearities sit on the serial path.
    for i in range(tc):
        row = i * bp
        gates = gx_scr[pl.ds(row, bp), :] + jnp.dot(
            h, w_hh, preferred_element_type=jnp.float32)
        i_g = jax.nn.sigmoid(gates[:, 0 * hp:1 * hp])   # 128-lane aligned slices
        f_g = jax.nn.sigmoid(gates[:, 1 * hp:2 * hp])
        g_g = jnp.tanh(gates[:, 2 * hp:3 * hp])
        o_g = jax.nn.sigmoid(gates[:, 3 * hp:4 * hp])
        c = f_g * c + i_g * g_g
        h = o_g * jnp.tanh(c)
        y_ref[0, pl.ds(row, bp), :] = h                 # whole-sublane, lane-dense
    h_scr[...] = h
    c_scr[...] = c


def _lstm_recurrence_call(x, w_ih, w_hh, b, t_chunk):
    """Run one fused LSTM layer over all (folded) channels.

    x:    (C, T, B, Dp)  float32, Dp a multiple of 128
    w_ih: (C, Dp, 4*Hp)  float32
    w_hh: (C, Hp, 4*Hp)  float32
    b:    (C, 4*Hp)      float32
    returns (C, T, B, Hp) float32 (padded hidden; padded columns are zero).
    """
    C, T, B, Dp = x.shape
    Hp = w_hh.shape[1]
    G = 4 * Hp
    assert w_ih.shape == (C, Dp, G) and b.shape == (C, G)

    Bp = _round_up(B, 8)
    Tc = min(t_chunk, T)
    Tpad = _round_up(T, Tc)
    if Bp != B or Tpad != T:
        x = jnp.pad(x, ((0, 0), (0, Tpad - T), (0, Bp - B), (0, 0)))
    x_flat = x.reshape(C, Tpad * Bp, Dp)
    b3 = b.reshape(C, 1, G)
    n_chunks = Tpad // Tc

    y = pl.pallas_call(
        _lstm_layer_kernel,
        out_shape=jax.ShapeDtypeStruct((C, Tpad * Bp, Hp), jnp.float32),
        grid_spec=pltpu.PrefetchScalarGridSpec(
            num_scalar_prefetch=0,
            grid=(C, n_chunks),
            in_specs=[
                pl.BlockSpec((1, Tc * Bp, Dp), lambda c, t: (c, t, 0)),
                pl.BlockSpec((1, Dp, G), lambda c, t: (c, 0, 0)),
                pl.BlockSpec((1, Hp, G), lambda c, t: (c, 0, 0)),
                pl.BlockSpec((1, 1, G), lambda c, t: (c, 0, 0)),
            ],
            out_specs=pl.BlockSpec((1, Tc * Bp, Hp), lambda c, t: (c, t, 0)),
            scratch_shapes=[
                pltpu.VMEM((Bp, Hp), jnp.float32),        # h state
                pltpu.VMEM((Bp, Hp), jnp.float32),        # c state
                pltpu.VMEM((Tc * Bp, G), jnp.float32),    # chunk gate buffer
            ],
        ),
        compiler_params=pltpu.CompilerParams(
            # channels/directions are independent -> megacore-parallel on v7x;
            # time chunks are a serial recurrence -> arbitrary.
            dimension_semantics=("parallel", "arbitrary")),
    )(x_flat, w_ih, w_hh, b3)

    y = y.reshape(C, Tpad, Bp, Hp)
    return y[:, :T, :B]


def lstm_layer(x, fwd_params, bwd_params=None, t_chunk=32):
    """One (optionally bidirectional) LSTM layer over all channels.

    x: (C, T, B, Dp).  Returns (C, T, B, num_dir * Hp) padded slab
    (forward Hp block first, then backward Hp block).
    """
    C = x.shape[0]
    w_ih_f, w_hh_f, b_f = fwd_params
    if bwd_params is None:
        return _lstm_recurrence_call(x, w_ih_f, w_hh_f, b_f, t_chunk)
    w_ih_b, w_hh_b, b_b = bwd_params
    x_all = jnp.concatenate([x, x[:, ::-1]], axis=0)     # bwd dir sees reversed time
    w_ih = jnp.concatenate([w_ih_f, w_ih_b], axis=0)
    w_hh = jnp.concatenate([w_hh_f, w_hh_b], axis=0)
    b = jnp.concatenate([b_f, b_b], axis=0)
    y = _lstm_recurrence_call(x_all, w_ih, w_hh, b, t_chunk)   # (2C, T, B, Hp)
    return jnp.concatenate([y[:C], y[C:, ::-1]], axis=-1)      # (C, T, B, 2*Hp)


def run_lstm_stack(x_slab, params, bidirectional, t_chunk=32):
    """x_slab: (C, T, B, Dp0).  Returns padded (C, T, B, num_dir * Hp)."""
    out = x_slab
    for dirs in params:
        if bidirectional:
            out = lstm_layer(out, dirs[0], dirs[1], t_chunk=t_chunk)
        else:
            out = lstm_layer(out, dirs[0], t_chunk=t_chunk)
    return out


# ----------------------------------------------------------------------------
# Parameters (deterministic, built in-script).  Weights are stored stacked over
# channels and pre-padded: per-gate columns padded H -> Hp (multiple of 128),
# recurrent rows padded H -> Hp, input rows scattered into a 128-padded D axis.
# Padded rows/cols are zero, so padded state stays exactly zero through time.
# ----------------------------------------------------------------------------
def _init_layer_params(key, C, Dp, rows_per_channel, H, Hp, num_dir):
    dirs = []
    for _ in range(num_dir):
        wihs, whhs, bs = [], [], []
        for ci in range(C):
            rows = rows_per_channel[ci]
            d_in = len(rows)
            key, k1, k2, k3 = jax.random.split(key, 4)
            w_ih = 0.1 * jax.random.normal(k1, (d_in, 4, H), jnp.float32)
            w_hh = 0.1 * jax.random.normal(k2, (H, 4, H), jnp.float32)
            b = 0.1 * jax.random.normal(k3, (4, H), jnp.float32)  # b_ih + b_hh
            w_ih_p = (jnp.zeros((Dp, 4, Hp), jnp.float32)
                      .at[jnp.array(rows), :, :H].set(w_ih))
            w_hh_p = jnp.zeros((Hp, 4, Hp), jnp.float32).at[:H, :, :H].set(w_hh)
            b_p = jnp.zeros((4, Hp), jnp.float32).at[:, :H].set(b)
            wihs.append(w_ih_p.reshape(Dp, 4 * Hp))
            whhs.append(w_hh_p.reshape(Hp, 4 * Hp))
            bs.append(b_p.reshape(4 * Hp))
        dirs.append((jnp.stack(wihs), jnp.stack(whhs), jnp.stack(bs)))
    return dirs, key


def init_lstm_stack_params(key, in_rows, d_pad0, H, Hp, layers, bidirectional):
    """in_rows: per-channel list of row indices in the padded layer-0 input."""
    C = len(in_rows)
    num_dir = 2 if bidirectional else 1
    params = []
    for layer_idx in range(layers):
        if layer_idx == 0:
            Dp, rows = d_pad0, in_rows
        else:
            # Layer l>0 consumes the previous layer's padded (num_dir*Hp) slab;
            # real features live at rows d*Hp + [0, H) per direction d.
            Dp = num_dir * Hp
            rows_l = [d * Hp + j for d in range(num_dir) for j in range(H)]
            rows = [rows_l] * C
        dirs, key = _init_layer_params(key, C, Dp, rows, H, Hp, num_dir)
        params.append(dirs)
    return params, key


# ----------------------------------------------------------------------------
# ChannelWiseLSTM module
# ----------------------------------------------------------------------------
def parse_channels(header):
    channel_names = set()
    for ch in header:
        if ch.find('mask->') != -1:
            continue
        pos = ch.find('->')
        if pos != -1:
            channel_names.add(ch[:pos])
        else:
            channel_names.add(ch)
    channel_names = sorted(list(channel_names))
    channels = []
    for ch in channel_names:
        indices = [i for i in range(len(header)) if header[i].find(ch) != -1]
        channels.append(indices)
    return channels


class ChannelWiseLSTMPallas:
    def __init__(self, preprocess_dim, hidden_dim, layers, header,
                 bidirectional=False, key=None):
        if key is None:
            key = jax.random.PRNGKey(0)
        self.preprocess_dim = preprocess_dim
        self.hidden_dim = hidden_dim
        self.layers = layers
        self.bidirectional = bidirectional
        self.channels = parse_channels(header)
        self.num_dir = 2 if bidirectional else 1
        C = len(self.channels)
        self.postprocess_dim = preprocess_dim * C * self.num_dir

        self.d_max = max(len(idx) for idx in self.channels)
        self.Dp0 = _round_up(self.d_max, 128)            # lane-aligned input width
        self.Hp_pre = _round_up(preprocess_dim, 128)     # lane-aligned hidden dims
        self.Hp_post = _round_up(hidden_dim, 128)
        self.Dp_post = _round_up(self.postprocess_dim, 128)

        in_rows_pre = [list(range(len(idx))) for idx in self.channels]
        self.pre_params, key = init_lstm_stack_params(
            key, in_rows_pre, self.Dp0, preprocess_dim, self.Hp_pre,
            layers, bidirectional)
        in_rows_post = [list(range(self.postprocess_dim))]
        self.post_params, key = init_lstm_stack_params(
            key, in_rows_post, self.Dp_post, hidden_dim, self.Hp_post,
            layers, False)

    def _build_channel_input(self, x):
        # x: (T, B, F) -> (C, T, B, Dp0) with zero padding per channel.
        cols = []
        for idx in self.channels:
            xi = x[:, :, jnp.array(idx)]                 # index_select(dim=2)
            pad = self.Dp0 - len(idx)
            if pad:
                xi = jnp.pad(xi, ((0, 0), (0, 0), (0, pad)))
            cols.append(xi)
        return jnp.stack(cols, axis=0)

    def __call__(self, x):
        # x: (T, B, F) time-major, matching PyTorch nn.LSTM default layout.
        T, B, _ = x.shape
        x_ch = self._build_channel_input(x)                       # (C, T, B, Dp0)
        pre = run_lstm_stack(x_ch, self.pre_params, self.bidirectional)
        # Channel-major concat of the real hidden columns, fwd then bwd per
        # channel (== torch.cat(pre_process_res, dim=2)).
        H, Hp = self.preprocess_dim, self.Hp_pre
        if self.bidirectional:
            pre_real = jnp.concatenate([pre[..., :H], pre[..., Hp:Hp + H]],
                                       axis=-1)                   # (C, T, B, 2H)
        else:
            pre_real = pre[..., :H]                               # (C, T, B, H)
        pre_cat = jnp.transpose(pre_real, (1, 2, 0, 3)).reshape(T, B, -1)
        d_real = pre_cat.shape[-1]
        if self.Dp_post != d_real:
            pre_cat = jnp.pad(pre_cat,
                              ((0, 0), (0, 0), (0, self.Dp_post - d_real)))
        post = run_lstm_stack(pre_cat[None], self.post_params, False)
        return post[0, :, :, :self.hidden_dim]                    # (T, B, hidden)


if __name__ == "__main__":
    # Small, module-consistent shapes.
    header = ["Glucose", "Heart Rate", "pH->low", "pH->high",
              "mask->Glucose", "mask->Heart Rate"]
    T, B, F = 8, 4, len(header)
    preprocess_dim, hidden_dim, layers = 8, 32, 1

    key = jax.random.PRNGKey(0)
    key, kx, kp = jax.random.split(key, 3)
    x = jax.random.normal(kx, (T, B, F), jnp.float32)

    model = ChannelWiseLSTMPallas(preprocess_dim, hidden_dim, layers, header,
                                  bidirectional=False, key=kp)
    fwd = jax.jit(model.__call__)
    out = jax.block_until_ready(fwd(x))
    assert out.shape == (T, B, hidden_dim), out.shape
    assert bool(jnp.all(jnp.isfinite(out)))
    print("KERNEL_OK")
</pallas_src>

<mosaic_0001>
module attributes {stable_mosaic.version = 11 : i64} {
  func.func @_lstm_layer_kernel(%arg0: i32, %arg1: i32, %arg2: memref<1x64x128xf32, #tpu.memory_space<vmem>>, %arg3: memref<1x128x512xf32, #tpu.memory_space<vmem>>, %arg4: memref<1x128x512xf32, #tpu.memory_space<vmem>>, %arg5: memref<1x1x512xf32, #tpu.memory_space<vmem>>, %arg6: memref<1x64x128xf32, #tpu.memory_space<vmem>>, %arg7: memref<8x128xf32, #tpu.memory_space<vmem>>, %arg8: memref<8x128xf32, #tpu.memory_space<vmem>>, %arg9: memref<64x512xf32, #tpu.memory_space<vmem>>) attributes {dimension_semantics = [#tpu.dimension_semantics<parallel>, #tpu.dimension_semantics<arbitrary>], iteration_bounds = array<i64: 3, 1>, scalar_prefetch = 0 : i64, scratch_operands = 3 : i64, tpu.core_type = #tpu.core_type<tc>, window_params = [{transform_indices = @transform_0, window_bounds = array<i64: 1, 64, 128>}, {transform_indices = @transform_1, window_bounds = array<i64: 1, 128, 512>}, {transform_indices = @transform_2, window_bounds = array<i64: 1, 128, 512>}, {transform_indices = @transform_3, window_bounds = array<i64: 1, 1, 512>}, {transform_indices = @transform_4, window_bounds = array<i64: 1, 64, 128>}]} {
    %c0_i32 = arith.constant 0 : i32
    %0 = arith.cmpi eq, %arg1, %c0_i32 : i32
    %1 = arith.extui %0 : i1 to i32
    %c0_i32_0 = arith.constant 0 : i32
    %2 = arith.cmpi ne, %1, %c0_i32_0 : i32
    scf.if %2 {
      %cst_87 = arith.constant 0.000000e+00 : f32
      %267 = vector.broadcast %cst_87 : f32 to vector<8x128xf32>
      %c0_88 = arith.constant 0 : index
      %c0_89 = arith.constant 0 : index
      %268 = vector.load %arg7[%c0_88, %c0_89] : memref<8x128xf32, #tpu.memory_space<vmem>>, vector<8x128xf32>
      tpu.vector_store %arg7[%c0_88, %c0_89], %267 {strides = array<i32>} : memref<8x128xf32, #tpu.memory_space<vmem>>, vector<8x128xf32>,
      %cst_90 = arith.constant 0.000000e+00 : f32
      %269 = vector.broadcast %cst_90 : f32 to vector<8x128xf32>
      %c0_91 = arith.constant 0 : index
      %c0_92 = arith.constant 0 : index
      %270 = vector.load %arg8[%c0_91, %c0_92] : memref<8x128xf32, #tpu.memory_space<vmem>>, vector<8x128xf32>
      tpu.vector_store %arg8[%c0_91, %c0_92], %269 {strides = array<i32>} : memref<8x128xf32, #tpu.memory_space<vmem>>, vector<8x128xf32>,
    } else {
    }
    %c0 = arith.constant 0 : index
    %c0_1 = arith.constant 0 : index
    %c0_2 = arith.constant 0 : index
    %3 = vector.load %arg2[%c0, %c0_1, %c0_2] : memref<1x64x128xf32, #tpu.memory_space<vmem>>, vector<1x64x128xf32>
    %4 = vector.shape_cast %3 : vector<1x64x128xf32> to vector<64x128xf32>
    %c0_3 = arith.constant 0 : index
    %c0_4 = arith.constant 0 : index
    %c0_5 = arith.constant 0 : index
    %5 = vector.load %arg3[%c0_3, %c0_4, %c0_5] : memref<1x128x512xf32, #tpu.memory_space<vmem>>, vector<1x128x512xf32>
    %6 = vector.shape_cast %5 : vector<1x128x512xf32> to vector<128x512xf32>
    %cst = arith.constant dense<0.000000e+00> : vector<64x512xf32>
    %7 = tpu.matmul %4, %6, %cst {dimension_numbers = #tpu.dot_dimension_numbers<[1], [0], [0], [1], [0, 0, 1, 1], [], []>} : vector<64x128xf32>, vector<128x512xf32>, vector<64x512xf32> -> vector<64x512xf32>
    %c0_6 = arith.constant 0 : index
    %c0_7 = arith.constant 0 : index
    %c0_8 = arith.constant 0 : index
    %8 = vector.load %arg5[%c0_6, %c0_7, %c0_8] : memref<1x1x512xf32, #tpu.memory_space<vmem>>, vector<1x1x512xf32>
    %9 = vector.shape_cast %8 : vector<1x1x512xf32> to vector<1x512xf32>
    %10 = vector.broadcast %9 : vector<1x512xf32> to vector<64x512xf32>
    %11 = arith.addf %7, %10 : vector<64x512xf32>
    %c0_9 = arith.constant 0 : index
    %c0_10 = arith.constant 0 : index
    %12 = vector.load %arg9[%c0_9, %c0_10] : memref<64x512xf32, #tpu.memory_space<vmem>>, vector<64x512xf32>
    tpu.vector_store %arg9[%c0_9, %c0_10], %11 {strides = array<i32>} : memref<64x512xf32, #tpu.memory_space<vmem>>, vector<64x512xf32>,
    %c0_11 = arith.constant 0 : index
    %c0_12 = arith.constant 0 : index
    %c0_13 = arith.constant 0 : index
    %13 = vector.load %arg4[%c0_11, %c0_12, %c0_13] : memref<1x128x512xf32, #tpu.memory_space<vmem>>, vector<1x128x512xf32>
    %14 = vector.shape_cast %13 : vector<1x128x512xf32> to vector<128x512xf32>
    %c0_14 = arith.constant 0 : index
    %c0_15 = arith.constant 0 : index
    %15 = vector.load %arg7[%c0_14, %c0_15] : memref<8x128xf32, #tpu.memory_space<vmem>>, vector<8x128xf32>
    %c0_16 = arith.constant 0 : index
    %c0_17 = arith.constant 0 : index
    %16 = vector.load %arg8[%c0_16, %c0_17] : memref<8x128xf32, #tpu.memory_space<vmem>>, vector<8x128xf32>
    %c0_18 = arith.constant 0 : index
    %c0_19 = arith.constant 0 : index
    %17 = vector.load %arg9[%c0_18, %c0_19] : memref<64x512xf32, #tpu.memory_space<vmem>>, vector<8x512xf32>
    %cst_20 = arith.constant dense<0.000000e+00> : vector<8x512xf32>
    %18 = tpu.matmul %15, %14, %cst_20 {dimension_numbers = #tpu.dot_dimension_numbers<[1], [0], [0], [1], [0, 0, 1, 1], [], []>} : vector<8x128xf32>, vector<128x512xf32>, vector<8x512xf32> -> vector<8x512xf32>
    %19 = arith.addf %17, %18 : vector<8x512xf32>
    %20 = vector.extract_strided_slice %19 {offsets = [0, 0], sizes = [8, 128], strides = [1, 1]} : vector<8x512xf32> to vector<8x128xf32>
    %21 = arith.negf %20 : vector<8x128xf32>
    %22 = math.exp %21 : vector<8x128xf32>
    %cst_21 = arith.constant 1.000000e+00 : f32
    %23 = vector.broadcast %cst_21 : f32 to vector<8x128xf32>
    %24 = arith.addf %23, %22 : vector<8x128xf32>
    %25 = arith.divf %23, %24 : vector<8x128xf32>
    %26 = vector.extract_strided_slice %19 {offsets = [0, 128], sizes = [8, 128], strides = [1, 1]} : vector<8x512xf32> to vector<8x128xf32>
    %27 = arith.negf %26 : vector<8x128xf32>
    %28 = math.exp %27 : vector<8x128xf32>
    %cst_22 = arith.constant 1.000000e+00 : f32
    %29 = vector.broadcast %cst_22 : f32 to vector<8x128xf32>
    %30 = arith.addf %29, %28 : vector<8x128xf32>
    %31 = arith.divf %29, %30 : vector<8x128xf32>
    %32 = vector.extract_strided_slice %19 {offsets = [0, 256], sizes = [8, 128], strides = [1, 1]} : vector<8x512xf32> to vector<8x128xf32>
    %33 = math.tanh %32 : vector<8x128xf32>
    %34 = vector.extract_strided_slice %19 {offsets = [0, 384], sizes = [8, 128], strides = [1, 1]} : vector<8x512xf32> to vector<8x128xf32>
    %35 = arith.negf %34 : vector<8x128xf32>
    %36 = math.exp %35 : vector<8x128xf32>
    %cst_23 = arith.constant 1.000000e+00 : f32
    %37 = vector.broadcast %cst_23 : f32 to vector<8x128xf32>
    %38 = arith.addf %37, %36 : vector<8x128xf32>
    %39 = arith.divf %37, %38 : vector<8x128xf32>
    %40 = arith.mulf %31, %16 : vector<8x128xf32>
    %41 = arith.mulf %25, %33 : vector<8x128xf32>
    %42 = arith.addf %40, %41 : vector<8x128xf32>
    %43 = math.tanh %42 : vector<8x128xf32>
    %44 = arith.mulf %39, %43 : vector<8x128xf32>
    %c0_24 = arith.constant 0 : index
    %c0_25 = arith.constant 0 : index
    %c0_26 = arith.constant 0 : index
    %45 = vector.load %arg6[%c0_24, %c0_25, %c0_26] : memref<1x64x128xf32, #tpu.memory_space<vmem>>, vector<1x8x128xf32>
    %46 = vector.shape_cast %45 : vector<1x8x128xf32> to vector<8x128xf32>
    %47 = vector.shape_cast %44 : vector<8x128xf32> to vector<1x8x128xf32>
    tpu.vector_store %arg6[%c0_24, %c0_25, %c0_26], %47 {strides = array<i32>} : memref<1x64x128xf32, #tpu.memory_space<vmem>>, vector<1x8x128xf32>,
    %c8 = arith.constant 8 : index
    %c0_27 = arith.constant 0 : index
    %48 = vector.load %arg9[%c8, %c0_27] : memref<64x512xf32, #tpu.memory_space<vmem>>, vector<8x512xf32>
    %cst_28 = arith.constant dense<0.000000e+00> : vector<8x512xf32>
    %49 = tpu.matmul %44, %14, %cst_28 {dimension_numbers = #tpu.dot_dimension_numbers<[1], [0], [0], [1], [0, 0, 1, 1], [], []>} : vector<8x128xf32>, vector<128x512xf32>, vector<8x512xf32> -> vector<8x512xf32>
    %50 = arith.addf %48, %49 : vector<8x512xf32>
    %51 = vector.extract_strided_slice %50 {offsets = [0, 0], sizes = [8, 128], strides = [1, 1]} : vector<8x512xf32> to vector<8x128xf32>
    %52 = arith.negf %51 : vector<8x128xf32>
    %53 = math.exp %52 : vector<8x128xf32>
    %cst_29 = arith.constant 1.000000e+00 : f32
    %54 = vector.broadcast %cst_29 : f32 to vector<8x128xf32>
    %55 = arith.addf %54, %53 : vector<8x128xf32>
    %56 = arith.divf %54, %55 : vector<8x128xf32>
    %57 = vector.extract_strided_slice %50 {offsets = [0, 128], sizes = [8, 128], strides = [1, 1]} : vector<8x512xf32> to vector<8x128xf32>
    %58 = arith.negf %57 : vector<8x128xf32>
    %59 = math.exp %58 : vector<8x128xf32>
    %cst_30 = arith.constant 1.000000e+00 : f32
    %60 = vector.broadcast %cst_30 : f32 to vector<8x128xf32>
    %61 = arith.addf %60, %59 : vector<8x128xf32>
    %62 = arith.divf %60, %61 : vector<8x128xf32>
    %63 = vector.extract_strided_slice %50 {offsets = [0, 256], sizes = [8, 128], strides = [1, 1]} : vector<8x512xf32> to vector<8x128xf32>
    %64 = math.tanh %63 : vector<8x128xf32>
    %65 = vector.extract_strided_slice %50 {offsets = [0, 384], sizes = [8, 128], strides = [1, 1]} : vector<8x512xf32> to vector<8x128xf32>
    %66 = arith.negf %65 : vector<8x128xf32>
    %67 = math.exp %66 : vector<8x128xf32>
    %cst_31 = arith.constant 1.000000e+00 : f32
    %68 = vector.broadcast %cst_31 : f32 to vector<8x128xf32>
    %69 = arith.addf %68, %67 : vector<8x128xf32>
    %70 = arith.divf %68, %69 : vector<8x128xf32>
    %71 = arith.mulf %62, %42 : vector<8x128xf32>
    %72 = arith.mulf %56, %64 : vector<8x128xf32>
    %73 = arith.addf %71, %72 : vector<8x128xf32>
    %74 = math.tanh %73 : vector<8x128xf32>
    %75 = arith.mulf %70, %74 : vector<8x128xf32>
    %c0_32 = arith.constant 0 : index
    %c8_33 = arith.constant 8 : index
    %c0_34 = arith.constant 0 : index
    %76 = vector.load %arg6[%c0_32, %c8_33, %c0_34] : memref<1x64x128xf32, #tpu.memory_space<vmem>>, vector<1x8x128xf32>
    %77 = vector.shape_cast %76 : vector<1x8x128xf32> to vector<8x128xf32>
    %78 = vector.shape_cast %75 : vector<8x128xf32> to vector<1x8x128xf32>
    tpu.vector_store %arg6[%c0_32, %c8_33, %c0_34], %78 {strides = array<i32>} : memref<1x64x128xf32, #tpu.memory_space<vmem>>, vector<1x8x128xf32>,
    %c16 = arith.constant 16 : index
    %c0_35 = arith.constant 0 : index
    %79 = vector.load %arg9[%c16, %c0_35] : memref<64x512xf32, #tpu.memory_space<vmem>>, vector<8x512xf32>
    %cst_36 = arith.constant dense<0.000000e+00> : vector<8x512xf32>
    %80 = tpu.matmul %75, %14, %cst_36 {dimension_numbers = #tpu.dot_dimension_numbers<[1], [0], [0], [1], [0, 0, 1, 1], [], []>} : vector<8x128xf32>, vector<128x512xf32>, vector<8x512xf32> -> vector<8x512xf32>
    %81 = arith.addf %79, %80 : vector<8x512xf32>
    %82 = vector.extract_strided_slice %81 {offsets = [0, 0], sizes = [8, 128], strides = [1, 1]} : vector<8x512xf32> to vector<8x128xf32>
    %83 = arith.negf %82 : vector<8x128xf32>
    %84 = math.exp %83 : vector<8x128xf32>
    %cst_37 = arith.constant 1.000000e+00 : f32
    %85 = vector.broadcast %cst_37 : f32 to vector<8x128xf32>
    %86 = arith.addf %85, %84 : vector<8x128xf32>
    %87 = arith.divf %85, %86 : vector<8x128xf32>
    %88 = vector.extract_strided_slice %81 {offsets = [0, 128], sizes = [8, 128], strides = [1, 1]} : vector<8x512xf32> to vector<8x128xf32>
    %89 = arith.negf %88 : vector<8x128xf32>
    %90 = math.exp %89 : vector<8x128xf32>
    %cst_38 = arith.constant 1.000000e+00 : f32
    %91 = vector.broadcast %cst_38 : f32 to vector<8x128xf32>
    %92 = arith.addf %91, %90 : vector<8x128xf32>
    %93 = arith.divf %91, %92 : vector<8x128xf32>
    %94 = vector.extract_strided_slice %81 {offsets = [0, 256], sizes = [8, 128], strides = [1, 1]} : vector<8x512xf32> to vector<8x128xf32>
    %95 = math.tanh %94 : vector<8x128xf32>
    %96 = vector.extract_strided_slice %81 {offsets = [0, 384], sizes = [8, 128], strides = [1, 1]} : vector<8x512xf32> to vector<8x128xf32>
    %97 = arith.negf %96 : vector<8x128xf32>
    %98 = math.exp %97 : vector<8x128xf32>
    %cst_39 = arith.constant 1.000000e+00 : f32
    %99 = vector.broadcast %cst_39 : f32 to vector<8x128xf32>
    %100 = arith.addf %99, %98 : vector<8x128xf32>
    %101 = arith.divf %99, %100 : vector<8x128xf32>
    %102 = arith.mulf %93, %73 : vector<8x128xf32>
    %103 = arith.mulf %87, %95 : vector<8x128xf32>
    %104 = arith.addf %102, %103 : vector<8x128xf32>
    %105 = math.tanh %104 : vector<8x128xf32>
    %106 = arith.mulf %101, %105 : vector<8x128xf32>
    %c0_40 = arith.constant 0 : index
    %c16_41 = arith.constant 16 : index
    %c0_42 = arith.constant 0 : index
    %107 = vector.load %arg6[%c0_40, %c16_41, %c0_42] : memref<1x64x128xf32, #tpu.memory_space<vmem>>, vector<1x8x128xf32>
    %108 = vector.shape_cast %107 : vector<1x8x128xf32> to vector<8x128xf32>
    %109 = vector.shape_cast %106 : vector<8x128xf32> to vector<1x8x128xf32>
    tpu.vector_store %arg6[%c0_40, %c16_41, %c0_42], %109 {strides = array<i32>} : memref<1x64x128xf32, #tpu.memory_space<vmem>>, vector<1x8x128xf32>,
    %c24 = arith.constant 24 : index
    %c0_43 = arith.constant 0 : index
    %110 = vector.load %arg9[%c24, %c0_43] : memref<64x512xf32, #tpu.memory_space<vmem>>, vector<8x512xf32>
    %cst_44 = arith.constant dense<0.000000e+00> : vector<8x512xf32>
    %111 = tpu.matmul %106, %14, %cst_44 {dimension_numbers = #tpu.dot_dimension_numbers<[1], [0], [0], [1], [0, 0, 1, 1], [], []>} : vector<8x128xf32>, vector<128x512xf32>, vector<8x512xf32> -> vector<8x512xf32>
    %112 = arith.addf %110, %111 : vector<8x512xf32>
    %113 = vector.extract_strided_slice %112 {offsets = [0, 0], sizes = [8, 128], strides = [1, 1]} : vector<8x512xf32> to vector<8x128xf32>
    %114 = arith.negf %113 : vector<8x128xf32>
    %115 = math.exp %114 : vector<8x128xf32>
    %cst_45 = arith.constant 1.000000e+00 : f32
    %116 = vector.broadcast %cst_45 : f32 to vector<8x128xf32>
    %117 = arith.addf %116, %115 : vector<8x128xf32>
    %118 = arith.divf %116, %117 : vector<8x128xf32>
    %119 = vector.extract_strided_slice %112 {offsets = [0, 128], sizes = [8, 128], strides = [1, 1]} : vector<8x512xf32> to vector<8x128xf32>
    %120 = arith.negf %119 : vector<8x128xf32>
    %121 = math.exp %120 : vector<8x128xf32>
    %cst_46 = arith.constant 1.000000e+00 : f32
    %122 = vector.broadcast %cst_46 : f32 to vector<8x128xf32>
    %123 = arith.addf %122, %121 : vector<8x128xf32>
    %124 = arith.divf %122, %123 : vector<8x128xf32>
    %125 = vector.extract_strided_slice %112 {offsets = [0, 256], sizes = [8, 128], strides = [1, 1]} : vector<8x512xf32> to vector<8x128xf32>
    %126 = math.tanh %125 : vector<8x128xf32>
    %127 = vector.extract_strided_slice %112 {offsets = [0, 384], sizes = [8, 128], strides = [1, 1]} : vector<8x512xf32> to vector<8x128xf32>
    %128 = arith.negf %127 : vector<8x128xf32>
    %129 = math.exp %128 : vector<8x128xf32>
    %cst_47 = arith.constant 1.000000e+00 : f32
    %130 = vector.broadcast %cst_47 : f32 to vector<8x128xf32>
    %131 = arith.addf %130, %129 : vector<8x128xf32>
    %132 = arith.divf %130, %131 : vector<8x128xf32>
    %133 = arith.mulf %124, %104 : vector<8x128xf32>
    %134 = arith.mulf %118, %126 : vector<8x128xf32>
    %135 = arith.addf %133, %134 : vector<8x128xf32>
    %136 = math.tanh %135 : vector<8x128xf32>
    %137 = arith.mulf %132, %136 : vector<8x128xf32>
    %c0_48 = arith.constant 0 : index
    %c24_49 = arith.constant 24 : index
    %c0_50 = arith.constant 0 : index
    %138 = vector.load %arg6[%c0_48, %c24_49, %c0_50] : memref<1x64x128xf32, #tpu.memory_space<vmem>>, vector<1x8x128xf32>
    %139 = vector.shape_cast %138 : vector<1x8x128xf32> to vector<8x128xf32>
    %140 = vector.shape_cast %137 : vector<8x128xf32> to vector<1x8x128xf32>
    tpu.vector_store %arg6[%c0_48, %c24_49, %c0_50], %140 {strides = array<i32>} : memref<1x64x128xf32, #tpu.memory_space<vmem>>, vector<1x8x128xf32>,
    %c32 = arith.constant 32 : index
    %c0_51 = arith.constant 0 : index
    %141 = vector.load %arg9[%c32, %c0_51] : memref<64x512xf32, #tpu.memory_space<vmem>>, vector<8x512xf32>
    %cst_52 = arith.constant dense<0.000000e+00> : vector<8x512xf32>
    %142 = tpu.matmul %137, %14, %cst_52 {dimension_numbers = #tpu.dot_dimension_numbers<[1], [0], [0], [1], [0, 0, 1, 1], [], []>} : vector<8x128xf32>, vector<128x512xf32>, vector<8x512xf32> -> vector<8x512xf32>
    %143 = arith.addf %141, %142 : vector<8x512xf32>
    %144 = vector.extract_strided_slice %143 {offsets = [0, 0], sizes = [8, 128], strides = [1, 1]} : vector<8x512xf32> to vector<8x128xf32>
    %145 = arith.negf %144 : vector<8x128xf32>
    %146 = math.exp %145 : vector<8x128xf32>
    %cst_53 = arith.constant 1.000000e+00 : f32
    %147 = vector.broadcast %cst_53 : f32 to vector<8x128xf32>
    %148 = arith.addf %147, %146 : vector<8x128xf32>
    %149 = arith.divf %147, %148 : vector<8x128xf32>
    %150 = vector.extract_strided_slice %143 {offsets = [0, 128], sizes = [8, 128], strides = [1, 1]} : vector<8x512xf32> to vector<8x128xf32>
    %151 = arith.negf %150 : vector<8x128xf32>
    %152 = math.exp %151 : vector<8x128xf32>
    %cst_54 = arith.constant 1.000000e+00 : f32
    %153 = vector.broadcast %cst_54 : f32 to vector<8x128xf32>
    %154 = arith.addf %153, %152 : vector<8x128xf32>
    %155 = arith.divf %153, %154 : vector<8x128xf32>
    %156 = vector.extract_strided_slice %143 {offsets = [0, 256], sizes = [8, 128], strides = [1, 1]} : vector<8x512xf32> to vector<8x128xf32>
    %157 = math.tanh %156 : vector<8x128xf32>
    %158 = vector.extract_strided_slice %143 {offsets = [0, 384], sizes = [8, 128], strides = [1, 1]} : vector<8x512xf32> to vector<8x128xf32>
    %159 = arith.negf %158 : vector<8x128xf32>
    %160 = math.exp %159 : vector<8x128xf32>
    %cst_55 = arith.constant 1.000000e+00 : f32
    %161 = vector.broadcast %cst_55 : f32 to vector<8x128xf32>
    %162 = arith.addf %161, %160 : vector<8x128xf32>
    %163 = arith.divf %161, %162 : vector<8x128xf32>
    %164 = arith.mulf %155, %135 : vector<8x128xf32>
    %165 = arith.mulf %149, %157 : vector<8x128xf32>
    %166 = arith.addf %164, %165 : vector<8x128xf32>
    %167 = math.tanh %166 : vector<8x128xf32>
    %168 = arith.mulf %163, %167 : vector<8x128xf32>
    %c0_56 = arith.constant 0 : index
    %c32_57 = arith.constant 32 : index
    %c0_58 = arith.constant 0 : index
    %169 = vector.load %arg6[%c0_56, %c32_57, %c0_58] : memref<1x64x128xf32, #tpu.memory_space<vmem>>, vector<1x8x128xf32>
    %170 = vector.shape_cast %169 : vector<1x8x128xf32> to vector<8x128xf32>
    %171 = vector.shape_cast %168 : vector<8x128xf32> to vector<1x8x128xf32>
    tpu.vector_store %arg6[%c0_56, %c32_57, %c0_58], %171 {strides = array<i32>} : memref<1x64x128xf32, #tpu.memory_space<vmem>>, vector<1x8x128xf32>,
    %c40 = arith.constant 40 : index
    %c0_59 = arith.constant 0 : index
    %172 = vector.load %arg9[%c40, %c0_59] : memref<64x512xf32, #tpu.memory_space<vmem>>, vector<8x512xf32>
    %cst_60 = arith.constant dense<0.000000e+00> : vector<8x512xf32>
    %173 = tpu.matmul %168, %14, %cst_60 {dimension_numbers = #tpu.dot_dimension_numbers<[1], [0], [0], [1], [0, 0, 1, 1], [], []>} : vector<8x128xf32>, vector<128x512xf32>, vector<8x512xf32> -> vector<8x512xf32>
    %174 = arith.addf %172, %173 : vector<8x512xf32>
    %175 = vector.extract_strided_slice %174 {offsets = [0, 0], sizes = [8, 128], strides = [1, 1]} : vector<8x512xf32> to vector<8x128xf32>
    %176 = arith.negf %175 : vector<8x128xf32>
    %177 = math.exp %176 : vector<8x128xf32>
    %cst_61 = arith.constant 1.000000e+00 : f32
    %178 = vector.broadcast %cst_61 : f32 to vector<8x128xf32>
    %179 = arith.addf %178, %177 : vector<8x128xf32>
    %180 = arith.divf %178, %179 : vector<8x128xf32>
    %181 = vector.extract_strided_slice %174 {offsets = [0, 128], sizes = [8, 128], strides = [1, 1]} : vector<8x512xf32> to vector<8x128xf32>
    %182 = arith.negf %181 : vector<8x128xf32>
    %183 = math.exp %182 : vector<8x128xf32>
    %cst_62 = arith.constant 1.000000e+00 : f32
    %184 = vector.broadcast %cst_62 : f32 to vector<8x128xf32>
    %185 = arith.addf %184, %183 : vector<8x128xf32>
    %186 = arith.divf %184, %185 : vector<8x128xf32>
    %187 = vector.extract_strided_slice %174 {offsets = [0, 256], sizes = [8, 128], strides = [1, 1]} : vector<8x512xf32> to vector<8x128xf32>
    %188 = math.tanh %187 : vector<8x128xf32>
    %189 = vector.extract_strided_slice %174 {offsets = [0, 384], sizes = [8, 128], strides = [1, 1]} : vector<8x512xf32> to vector<8x128xf32>
    %190 = arith.negf %189 : vector<8x128xf32>
    %191 = math.exp %190 : vector<8x128xf32>
    %cst_63 = arith.constant 1.000000e+00 : f32
    %192 = vector.broadcast %cst_63 : f32 to vector<8x128xf32>
    %193 = arith.addf %192, %191 : vector<8x128xf32>
    %194 = arith.divf %192, %193 : vector<8x128xf32>
    %195 = arith.mulf %186, %166 : vector<8x128xf32>
    %196 = arith.mulf %180, %188 : vector<8x128xf32>
    %197 = arith.addf %195, %196 : vector<8x128xf32>
    %198 = math.tanh %197 : vector<8x128xf32>
    %199 = arith.mulf %194, %198 : vector<8x128xf32>
    %c0_64 = arith.constant 0 : index
    %c40_65 = arith.constant 40 : index
    %c0_66 = arith.constant 0 : index
    %200 = vector.load %arg6[%c0_64, %c40_65, %c0_66] : memref<1x64x128xf32, #tpu.memory_space<vmem>>, vector<1x8x128xf32>
    %201 = vector.shape_cast %200 : vector<1x8x128xf32> to vector<8x128xf32>
    %202 = vector.shape_cast %199 : vector<8x128xf32> to vector<1x8x128xf32>
    tpu.vector_store %arg6[%c0_64, %c40_65, %c0_66], %202 {strides = array<i32>} : memref<1x64x128xf32, #tpu.memory_space<vmem>>, vector<1x8x128xf32>,
    %c48 = arith.constant 48 : index
    %c0_67 = arith.constant 0 : index
    %203 = vector.load %arg9[%c48, %c0_67] : memref<64x512xf32, #tpu.memory_space<vmem>>, vector<8x512xf32>
    %cst_68 = arith.constant dense<0.000000e+00> : vector<8x512xf32>
    %204 = tpu.matmul %199, %14, %cst_68 {dimension_numbers = #tpu.dot_dimension_numbers<[1], [0], [0], [1], [0, 0, 1, 1], [], []>} : vector<8x128xf32>, vector<128x512xf32>, vector<8x512xf32> -> vector<8x512xf32>
    %205 = arith.addf %203, %204 : vector<8x512xf32>
    %206 = vector.extract_strided_slice %205 {offsets = [0, 0], sizes = [8, 128], strides = [1, 1]} : vector<8x512xf32> to vector<8x128xf32>
    %207 = arith.negf %206 : vector<8x128xf32>
    %208 = math.exp %207 : vector<8x128xf32>
    %cst_69 = arith.constant 1.000000e+00 : f32
    %209 = vector.broadcast %cst_69 : f32 to vector<8x128xf32>
    %210 = arith.addf %209, %208 : vector<8x128xf32>
    %211 = arith.divf %209, %210 : vector<8x128xf32>
    %212 = vector.extract_strided_slice %205 {offsets = [0, 128], sizes = [8, 128], strides = [1, 1]} : vector<8x512xf32> to vector<8x128xf32>
    %213 = arith.negf %212 : vector<8x128xf32>
    %214 = math.exp %213 : vector<8x128xf32>
    %cst_70 = arith.constant 1.000000e+00 : f32
    %215 = vector.broadcast %cst_70 : f32 to vector<8x128xf32>
    %216 = arith.addf %215, %214 : vector<8x128xf32>
    %217 = arith.divf %215, %216 : vector<8x128xf32>
    %218 = vector.extract_strided_slice %205 {offsets = [0, 256], sizes = [8, 128], strides = [1, 1]} : vector<8x512xf32> to vector<8x128xf32>
    %219 = math.tanh %218 : vector<8x128xf32>
    %220 = vector.extract_strided_slice %205 {offsets = [0, 384], sizes = [8, 128], strides = [1, 1]} : vector<8x512xf32> to vector<8x128xf32>
    %221 = arith.negf %220 : vector<8x128xf32>
    %222 = math.exp %221 : vector<8x128xf32>
    %cst_71 = arith.constant 1.000000e+00 : f32
    %223 = vector.broadcast %cst_71 : f32 to vector<8x128xf32>
    %224 = arith.addf %223, %222 : vector<8x128xf32>
    %225 = arith.divf %223, %224 : vector<8x128xf32>
    %226 = arith.mulf %217, %197 : vector<8x128xf32>
    %227 = arith.mulf %211, %219 : vector<8x128xf32>
    %228 = arith.addf %226, %227 : vector<8x128xf32>
    %229 = math.tanh %228 : vector<8x128xf32>
    %230 = arith.mulf %225, %229 : vector<8x128xf32>
    %c0_72 = arith.constant 0 : index
    %c48_73 = arith.constant 48 : index
    %c0_74 = arith.constant 0 : index
    %231 = vector.load %arg6[%c0_72, %c48_73, %c0_74] : memref<1x64x128xf32, #tpu.memory_space<vmem>>, vector<1x8x128xf32>
    %232 = vector.shape_cast %231 : vector<1x8x128xf32> to vector<8x128xf32>
    %233 = vector.shape_cast %230 : vector<8x128xf32> to vector<1x8x128xf32>
    tpu.vector_store %arg6[%c0_72, %c48_73, %c0_74], %233 {strides = array<i32>} : memref<1x64x128xf32, #tpu.memory_space<vmem>>, vector<1x8x128xf32>,
    %c56 = arith.constant 56 : index
    %c0_75 = arith.constant 0 : index
    %234 = vector.load %arg9[%c56, %c0_75] : memref<64x512xf32, #tpu.memory_space<vmem>>, vector<8x512xf32>
    %cst_76 = arith.constant dense<0.000000e+00> : vector<8x512xf32>
    %235 = tpu.matmul %230, %14, %cst_76 {dimension_numbers = #tpu.dot_dimension_numbers<[1], [0], [0], [1], [0, 0, 1, 1], [], []>} : vector<8x128xf32>, vector<128x512xf32>, vector<8x512xf32> -> vector<8x512xf32>
    %236 = arith.addf %234, %235 : vector<8x512xf32>
    %237 = vector.extract_strided_slice %236 {offsets = [0, 0], sizes = [8, 128], strides = [1, 1]} : vector<8x512xf32> to vector<8x128xf32>
    %238 = arith.negf %237 : vector<8x128xf32>
    %239 = math.exp %238 : vector<8x128xf32>
    %cst_77 = arith.constant 1.000000e+00 : f32
    %240 = vector.broadcast %cst_77 : f32 to vector<8x128xf32>
    %241 = arith.addf %240, %239 : vector<8x128xf32>
    %242 = arith.divf %240, %241 : vector<8x128xf32>
    %243 = vector.extract_strided_slice %236 {offsets = [0, 128], sizes = [8, 128], strides = [1, 1]} : vector<8x512xf32> to vector<8x128xf32>
    %244 = arith.negf %243 : vector<8x128xf32>
    %245 = math.exp %244 : vector<8x128xf32>
    %cst_78 = arith.constant 1.000000e+00 : f32
    %246 = vector.broadcast %cst_78 : f32 to vector<8x128xf32>
    %247 = arith.addf %246, %245 : vector<8x128xf32>
    %248 = arith.divf %246, %247 : vector<8x128xf32>
    %249 = vector.extract_strided_slice %236 {offsets = [0, 256], sizes = [8, 128], strides = [1, 1]} : vector<8x512xf32> to vector<8x128xf32>
    %250 = math.tanh %249 : vector<8x128xf32>
    %251 = vector.extract_strided_slice %236 {offsets = [0, 384], sizes = [8, 128], strides = [1, 1]} : vector<8x512xf32> to vector<8x128xf32>
    %252 = arith.negf %251 : vector<8x128xf32>
    %253 = math.exp %252 : vector<8x128xf32>
    %cst_79 = arith.constant 1.000000e+00 : f32
    %254 = vector.broadcast %cst_79 : f32 to vector<8x128xf32>
    %255 = arith.addf %254, %253 : vector<8x128xf32>
    %256 = arith.divf %254, %255 : vector<8x128xf32>
    %257 = arith.mulf %248, %228 : vector<8x128xf32>
    %258 = arith.mulf %242, %250 : vector<8x128xf32>
    %259 = arith.addf %257, %258 : vector<8x128xf32>
    %260 = math.tanh %259 : vector<8x128xf32>
    %261 = arith.mulf %256, %260 : vector<8x128xf32>
    %c0_80 = arith.constant 0 : index
    %c56_81 = arith.constant 56 : index
    %c0_82 = arith.constant 0 : index
    %262 = vector.load %arg6[%c0_80, %c56_81, %c0_82] : memref<1x64x128xf32, #tpu.memory_space<vmem>>, vector<1x8x128xf32>
    %263 = vector.shape_cast %262 : vector<1x8x128xf32> to vector<8x128xf32>
    %264 = vector.shape_cast %261 : vector<8x128xf32> to vector<1x8x128xf32>
    tpu.vector_store %arg6[%c0_80, %c56_81, %c0_82], %264 {strides = array<i32>} : memref<1x64x128xf32, #tpu.memory_space<vmem>>, vector<1x8x128xf32>,
    %c0_83 = arith.constant 0 : index
    %c0_84 = arith.constant 0 : index
    %265 = vector.load %arg7[%c0_83, %c0_84] : memref<8x128xf32, #tpu.memory_space<vmem>>, vector<8x128xf32>
    tpu.vector_store %arg7[%c0_83, %c0_84], %261 {strides = array<i32>} : memref<8x128xf32, #tpu.memory_space<vmem>>, vector<8x128xf32>,
    %c0_85 = arith.constant 0 : index
    %c0_86 = arith.constant 0 : index
    %266 = vector.load %arg8[%c0_85, %c0_86] : memref<8x128xf32, #tpu.memory_space<vmem>>, vector<8x128xf32>
    tpu.vector_store %arg8[%c0_85, %c0_86], %259 {strides = array<i32>} : memref<8x128xf32, #tpu.memory_space<vmem>>, vector<8x128xf32>,
    return
  }
  func.func @transform_0(%arg0: i32, %arg1: i32) -> (i32, i32, i32) {
    %c0_i32 = arith.constant 0 : i32
    %c0_i32_0 = arith.constant 0 : i32
    return %arg0, %arg1, %c0_i32 : i32, i32, i32
  }
  func.func @transform_1(%arg0: i32, %arg1: i32) -> (i32, i32, i32) {
    %c0_i32 = arith.constant 0 : i32
    %c0_i32_0 = arith.constant 0 : i32
    %c0_i32_1 = arith.constant 0 : i32
    return %arg0, %c0_i32, %c0_i32_0 : i32, i32, i32
  }
  func.func @transform_2(%arg0: i32, %arg1: i32) -> (i32, i32, i32) {
    %c0_i32 = arith.constant 0 : i32
    %c0_i32_0 = arith.constant 0 : i32
    %c0_i32_1 = arith.constant 0 : i32
    return %arg0, %c0_i32, %c0_i32_0 : i32, i32, i32
  }
  func.func @transform_3(%arg0: i32, %arg1: i32) -> (i32, i32, i32) {
    %c0_i32 = arith.constant 0 : i32
    %c0_i32_0 = arith.constant 0 : i32
    %c0_i32_1 = arith.constant 0 : i32
    return %arg0, %c0_i32, %c0_i32_0 : i32, i32, i32
  }
  func.func @transform_4(%arg0: i32, %arg1: i32) -> (i32, i32, i32) {
    %c0_i32 = arith.constant 0 : i32
    %c0_i32_0 = arith.constant 0 : i32
    return %arg0, %arg1, %c0_i32 : i32, i32, i32
  }
}

module attributes {stable_mosaic.version = 11 : i64} {
  func.func @_lstm_layer_kernel(%arg0: i32, %arg1: i32, %arg2: memref<1x64x128xf32, #tpu.memory_space<vmem>>, %arg3: memref<1x128x512xf32, #tpu.memory_space<vmem>>, %arg4: memref<1x128x512xf32, #tpu.memory_space<vmem>>, %arg5: memref<1x1x512xf32, #tpu.memory_space<vmem>>, %arg6: memref<1x64x128xf32, #tpu.memory_space<vmem>>, %arg7: memref<8x128xf32, #tpu.memory_space<vmem>>, %arg8: memref<8x128xf32, #tpu.memory_space<vmem>>, %arg9: memref<64x512xf32, #tpu.memory_space<vmem>>) attributes {dimension_semantics = [#tpu.dimension_semantics<parallel>, #tpu.dimension_semantics<arbitrary>], iteration_bounds = array<i64: 1, 1>, scalar_prefetch = 0 : i64, scratch_operands = 3 : i64, tpu.core_type = #tpu.core_type<tc>, window_params = [{transform_indices = @transform_0, window_bounds = array<i64: 1, 64, 128>}, {transform_indices = @transform_1, window_bounds = array<i64: 1, 128, 512>}, {transform_indices = @transform_2, window_bounds = array<i64: 1, 128, 512>}, {transform_indices = @transform_3, window_bounds = array<i64: 1, 1, 512>}, {transform_indices = @transform_4, window_bounds = array<i64: 1, 64, 128>}]} {
    %c0_i32 = arith.constant 0 : i32
    %0 = arith.cmpi eq, %arg1, %c0_i32 : i32
    %1 = arith.extui %0 : i1 to i32
    %c0_i32_0 = arith.constant 0 : i32
    %2 = arith.cmpi ne, %1, %c0_i32_0 : i32
    scf.if %2 {
      %cst_87 = arith.constant 0.000000e+00 : f32
      %267 = vector.broadcast %cst_87 : f32 to vector<8x128xf32>
      %c0_88 = arith.constant 0 : index
      %c0_89 = arith.constant 0 : index
      %268 = vector.load %arg7[%c0_88, %c0_89] : memref<8x128xf32, #tpu.memory_space<vmem>>, vector<8x128xf32>
      tpu.vector_store %arg7[%c0_88, %c0_89], %267 {strides = array<i32>} : memref<8x128xf32, #tpu.memory_space<vmem>>, vector<8x128xf32>,
      %cst_90 = arith.constant 0.000000e+00 : f32
      %269 = vector.broadcast %cst_90 : f32 to vector<8x128xf32>
      %c0_91 = arith.constant 0 : index
      %c0_92 = arith.constant 0 : index
      %270 = vector.load %arg8[%c0_91, %c0_92] : memref<8x128xf32, #tpu.memory_space<vmem>>, vector<8x128xf32>
      tpu.vector_store %arg8[%c0_91, %c0_92], %269 {strides = array<i32>} : memref<8x128xf32, #tpu.memory_space<vmem>>, vector<8x128xf32>,
    } else {
    }
    %c0 = arith.constant 0 : index
    %c0_1 = arith.constant 0 : index
    %c0_2 = arith.constant 0 : index
    %3 = vector.load %arg2[%c0, %c0_1, %c0_2] : memref<1x64x128xf32, #tpu.memory_space<vmem>>, vector<1x64x128xf32>
    %4 = vector.shape_cast %3 : vector<1x64x128xf32> to vector<64x128xf32>
    %c0_3 = arith.constant 0 : index
    %c0_4 = arith.constant 0 : index
    %c0_5 = arith.constant 0 : index
    %5 = vector.load %arg3[%c0_3, %c0_4, %c0_5] : memref<1x128x512xf32, #tpu.memory_space<vmem>>, vector<1x128x512xf32>
    %6 = vector.shape_cast %5 : vector<1x128x512xf32> to vector<128x512xf32>
    %cst = arith.constant dense<0.000000e+00> : vector<64x512xf32>
    %7 = tpu.matmul %4, %6, %cst {dimension_numbers = #tpu.dot_dimension_numbers<[1], [0], [0], [1], [0, 0, 1, 1], [], []>} : vector<64x128xf32>, vector<128x512xf32>, vector<64x512xf32> -> vector<64x512xf32>
    %c0_6 = arith.constant 0 : index
    %c0_7 = arith.constant 0 : index
    %c0_8 = arith.constant 0 : index
    %8 = vector.load %arg5[%c0_6, %c0_7, %c0_8] : memref<1x1x512xf32, #tpu.memory_space<vmem>>, vector<1x1x512xf32>
    %9 = vector.shape_cast %8 : vector<1x1x512xf32> to vector<1x512xf32>
    %10 = vector.broadcast %9 : vector<1x512xf32> to vector<64x512xf32>
    %11 = arith.addf %7, %10 : vector<64x512xf32>
    %c0_9 = arith.constant 0 : index
    %c0_10 = arith.constant 0 : index
    %12 = vector.load %arg9[%c0_9, %c0_10] : memref<64x512xf32, #tpu.memory_space<vmem>>, vector<64x512xf32>
    tpu.vector_store %arg9[%c0_9, %c0_10], %11 {strides = array<i32>} : memref<64x512xf32, #tpu.memory_space<vmem>>, vector<64x512xf32>,
    %c0_11 = arith.constant 0 : index
    %c0_12 = arith.constant 0 : index
    %c0_13 = arith.constant 0 : index
    %13 = vector.load %arg4[%c0_11, %c0_12, %c0_13] : memref<1x128x512xf32, #tpu.memory_space<vmem>>, vector<1x128x512xf32>
    %14 = vector.shape_cast %13 : vector<1x128x512xf32> to vector<128x512xf32>
    %c0_14 = arith.constant 0 : index
    %c0_15 = arith.constant 0 : index
    %15 = vector.load %arg7[%c0_14, %c0_15] : memref<8x128xf32, #tpu.memory_space<vmem>>, vector<8x128xf32>
    %c0_16 = arith.constant 0 : index
    %c0_17 = arith.constant 0 : index
    %16 = vector.load %arg8[%c0_16, %c0_17] : memref<8x128xf32, #tpu.memory_space<vmem>>, vector<8x128xf32>
    %c0_18 = arith.constant 0 : index
    %c0_19 = arith.constant 0 : index
    %17 = vector.load %arg9[%c0_18, %c0_19] : memref<64x512xf32, #tpu.memory_space<vmem>>, vector<8x512xf32>
    %cst_20 = arith.constant dense<0.000000e+00> : vector<8x512xf32>
    %18 = tpu.matmul %15, %14, %cst_20 {dimension_numbers = #tpu.dot_dimension_numbers<[1], [0], [0], [1], [0, 0, 1, 1], [], []>} : vector<8x128xf32>, vector<128x512xf32>, vector<8x512xf32> -> vector<8x512xf32>
    %19 = arith.addf %17, %18 : vector<8x512xf32>
    %20 = vector.extract_strided_slice %19 {offsets = [0, 0], sizes = [8, 128], strides = [1, 1]} : vector<8x512xf32> to vector<8x128xf32>
    %21 = arith.negf %20 : vector<8x128xf32>
    %22 = math.exp %21 : vector<8x128xf32>
    %cst_21 = arith.constant 1.000000e+00 : f32
    %23 = vector.broadcast %cst_21 : f32 to vector<8x128xf32>
    %24 = arith.addf %23, %22 : vector<8x128xf32>
    %25 = arith.divf %23, %24 : vector<8x128xf32>
    %26 = vector.extract_strided_slice %19 {offsets = [0, 128], sizes = [8, 128], strides = [1, 1]} : vector<8x512xf32> to vector<8x128xf32>
    %27 = arith.negf %26 : vector<8x128xf32>
    %28 = math.exp %27 : vector<8x128xf32>
    %cst_22 = arith.constant 1.000000e+00 : f32
    %29 = vector.broadcast %cst_22 : f32 to vector<8x128xf32>
    %30 = arith.addf %29, %28 : vector<8x128xf32>
    %31 = arith.divf %29, %30 : vector<8x128xf32>
    %32 = vector.extract_strided_slice %19 {offsets = [0, 256], sizes = [8, 128], strides = [1, 1]} : vector<8x512xf32> to vector<8x128xf32>
    %33 = math.tanh %32 : vector<8x128xf32>
    %34 = vector.extract_strided_slice %19 {offsets = [0, 384], sizes = [8, 128], strides = [1, 1]} : vector<8x512xf32> to vector<8x128xf32>
    %35 = arith.negf %34 : vector<8x128xf32>
    %36 = math.exp %35 : vector<8x128xf32>
    %cst_23 = arith.constant 1.000000e+00 : f32
    %37 = vector.broadcast %cst_23 : f32 to vector<8x128xf32>
    %38 = arith.addf %37, %36 : vector<8x128xf32>
    %39 = arith.divf %37, %38 : vector<8x128xf32>
    %40 = arith.mulf %31, %16 : vector<8x128xf32>
    %41 = arith.mulf %25, %33 : vector<8x128xf32>
    %42 = arith.addf %40, %41 : vector<8x128xf32>
    %43 = math.tanh %42 : vector<8x128xf32>
    %44 = arith.mulf %39, %43 : vector<8x128xf32>
    %c0_24 = arith.constant 0 : index
    %c0_25 = arith.constant 0 : index
    %c0_26 = arith.constant 0 : index
    %45 = vector.load %arg6[%c0_24, %c0_25, %c0_26] : memref<1x64x128xf32, #tpu.memory_space<vmem>>, vector<1x8x128xf32>
    %46 = vector.shape_cast %45 : vector<1x8x128xf32> to vector<8x128xf32>
    %47 = vector.shape_cast %44 : vector<8x128xf32> to vector<1x8x128xf32>
    tpu.vector_store %arg6[%c0_24, %c0_25, %c0_26], %47 {strides = array<i32>} : memref<1x64x128xf32, #tpu.memory_space<vmem>>, vector<1x8x128xf32>,
    %c8 = arith.constant 8 : index
    %c0_27 = arith.constant 0 : index
    %48 = vector.load %arg9[%c8, %c0_27] : memref<64x512xf32, #tpu.memory_space<vmem>>, vector<8x512xf32>
    %cst_28 = arith.constant dense<0.000000e+00> : vector<8x512xf32>
    %49 = tpu.matmul %44, %14, %cst_28 {dimension_numbers = #tpu.dot_dimension_numbers<[1], [0], [0], [1], [0, 0, 1, 1], [], []>} : vector<8x128xf32>, vector<128x512xf32>, vector<8x512xf32> -> vector<8x512xf32>
    %50 = arith.addf %48, %49 : vector<8x512xf32>
    %51 = vector.extract_strided_slice %50 {offsets = [0, 0], sizes = [8, 128], strides = [1, 1]} : vector<8x512xf32> to vector<8x128xf32>
    %52 = arith.negf %51 : vector<8x128xf32>
    %53 = math.exp %52 : vector<8x128xf32>
    %cst_29 = arith.constant 1.000000e+00 : f32
    %54 = vector.broadcast %cst_29 : f32 to vector<8x128xf32>
    %55 = arith.addf %54, %53 : vector<8x128xf32>
    %56 = arith.divf %54, %55 : vector<8x128xf32>
    %57 = vector.extract_strided_slice %50 {offsets = [0, 128], sizes = [8, 128], strides = [1, 1]} : vector<8x512xf32> to vector<8x128xf32>
    %58 = arith.negf %57 : vector<8x128xf32>
    %59 = math.exp %58 : vector<8x128xf32>
    %cst_30 = arith.constant 1.000000e+00 : f32
    %60 = vector.broadcast %cst_30 : f32 to vector<8x128xf32>
    %61 = arith.addf %60, %59 : vector<8x128xf32>
    %62 = arith.divf %60, %61 : vector<8x128xf32>
    %63 = vector.extract_strided_slice %50 {offsets = [0, 256], sizes = [8, 128], strides = [1, 1]} : vector<8x512xf32> to vector<8x128xf32>
    %64 = math.tanh %63 : vector<8x128xf32>
    %65 = vector.extract_strided_slice %50 {offsets = [0, 384], sizes = [8, 128], strides = [1, 1]} : vector<8x512xf32> to vector<8x128xf32>
    %66 = arith.negf %65 : vector<8x128xf32>
    %67 = math.exp %66 : vector<8x128xf32>
    %cst_31 = arith.constant 1.000000e+00 : f32
    %68 = vector.broadcast %cst_31 : f32 to vector<8x128xf32>
    %69 = arith.addf %68, %67 : vector<8x128xf32>
    %70 = arith.divf %68, %69 : vector<8x128xf32>
    %71 = arith.mulf %62, %42 : vector<8x128xf32>
    %72 = arith.mulf %56, %64 : vector<8x128xf32>
    %73 = arith.addf %71, %72 : vector<8x128xf32>
    %74 = math.tanh %73 : vector<8x128xf32>
    %75 = arith.mulf %70, %74 : vector<8x128xf32>
    %c0_32 = arith.constant 0 : index
    %c8_33 = arith.constant 8 : index
    %c0_34 = arith.constant 0 : index
    %76 = vector.load %arg6[%c0_32, %c8_33, %c0_34] : memref<1x64x128xf32, #tpu.memory_space<vmem>>, vector<1x8x128xf32>
    %77 = vector.shape_cast %76 : vector<1x8x128xf32> to vector<8x128xf32>
    %78 = vector.shape_cast %75 : vector<8x128xf32> to vector<1x8x128xf32>
    tpu.vector_store %arg6[%c0_32, %c8_33, %c0_34], %78 {strides = array<i32>} : memref<1x64x128xf32, #tpu.memory_space<vmem>>, vector<1x8x128xf32>,
    %c16 = arith.constant 16 : index
    %c0_35 = arith.constant 0 : index
    %79 = vector.load %arg9[%c16, %c0_35] : memref<64x512xf32, #tpu.memory_space<vmem>>, vector<8x512xf32>
    %cst_36 = arith.constant dense<0.000000e+00> : vector<8x512xf32>
    %80 = tpu.matmul %75, %14, %cst_36 {dimension_numbers = #tpu.dot_dimension_numbers<[1], [0], [0], [1], [0, 0, 1, 1], [], []>} : vector<8x128xf32>, vector<128x512xf32>, vector<8x512xf32> -> vector<8x512xf32>
    %81 = arith.addf %79, %80 : vector<8x512xf32>
    %82 = vector.extract_strided_slice %81 {offsets = [0, 0], sizes = [8, 128], strides = [1, 1]} : vector<8x512xf32> to vector<8x128xf32>
    %83 = arith.negf %82 : vector<8x128xf32>
    %84 = math.exp %83 : vector<8x128xf32>
    %cst_37 = arith.constant 1.000000e+00 : f32
    %85 = vector.broadcast %cst_37 : f32 to vector<8x128xf32>
    %86 = arith.addf %85, %84 : vector<8x128xf32>
    %87 = arith.divf %85, %86 : vector<8x128xf32>
    %88 = vector.extract_strided_slice %81 {offsets = [0, 128], sizes = [8, 128], strides = [1, 1]} : vector<8x512xf32> to vector<8x128xf32>
    %89 = arith.negf %88 : vector<8x128xf32>
    %90 = math.exp %89 : vector<8x128xf32>
    %cst_38 = arith.constant 1.000000e+00 : f32
    %91 = vector.broadcast %cst_38 : f32 to vector<8x128xf32>
    %92 = arith.addf %91, %90 : vector<8x128xf32>
    %93 = arith.divf %91, %92 : vector<8x128xf32>
    %94 = vector.extract_strided_slice %81 {offsets = [0, 256], sizes = [8, 128], strides = [1, 1]} : vector<8x512xf32> to vector<8x128xf32>
    %95 = math.tanh %94 : vector<8x128xf32>
    %96 = vector.extract_strided_slice %81 {offsets = [0, 384], sizes = [8, 128], strides = [1, 1]} : vector<8x512xf32> to vector<8x128xf32>
    %97 = arith.negf %96 : vector<8x128xf32>
    %98 = math.exp %97 : vector<8x128xf32>
    %cst_39 = arith.constant 1.000000e+00 : f32
    %99 = vector.broadcast %cst_39 : f32 to vector<8x128xf32>
    %100 = arith.addf %99, %98 : vector<8x128xf32>
    %101 = arith.divf %99, %100 : vector<8x128xf32>
    %102 = arith.mulf %93, %73 : vector<8x128xf32>
    %103 = arith.mulf %87, %95 : vector<8x128xf32>
    %104 = arith.addf %102, %103 : vector<8x128xf32>
    %105 = math.tanh %104 : vector<8x128xf32>
    %106 = arith.mulf %101, %105 : vector<8x128xf32>
    %c0_40 = arith.constant 0 : index
    %c16_41 = arith.constant 16 : index
    %c0_42 = arith.constant 0 : index
    %107 = vector.load %arg6[%c0_40, %c16_41, %c0_42] : memref<1x64x128xf32, #tpu.memory_space<vmem>>, vector<1x8x128xf32>
    %108 = vector.shape_cast %107 : vector<1x8x128xf32> to vector<8x128xf32>
    %109 = vector.shape_cast %106 : vector<8x128xf32> to vector<1x8x128xf32>
    tpu.vector_store %arg6[%c0_40, %c16_41, %c0_42], %109 {strides = array<i32>} : memref<1x64x128xf32, #tpu.memory_space<vmem>>, vector<1x8x128xf32>,
    %c24 = arith.constant 24 : index
    %c0_43 = arith.constant 0 : index
    %110 = vector.load %arg9[%c24, %c0_43] : memref<64x512xf32, #tpu.memory_space<vmem>>, vector<8x512xf32>
    %cst_44 = arith.constant dense<0.000000e+00> : vector<8x512xf32>
    %111 = tpu.matmul %106, %14, %cst_44 {dimension_numbers = #tpu.dot_dimension_numbers<[1], [0], [0], [1], [0, 0, 1, 1], [], []>} : vector<8x128xf32>, vector<128x512xf32>, vector<8x512xf32> -> vector<8x512xf32>
    %112 = arith.addf %110, %111 : vector<8x512xf32>
    %113 = vector.extract_strided_slice %112 {offsets = [0, 0], sizes = [8, 128], strides = [1, 1]} : vector<8x512xf32> to vector<8x128xf32>
    %114 = arith.negf %113 : vector<8x128xf32>
    %115 = math.exp %114 : vector<8x128xf32>
    %cst_45 = arith.constant 1.000000e+00 : f32
    %116 = vector.broadcast %cst_45 : f32 to vector<8x128xf32>
    %117 = arith.addf %116, %115 : vector<8x128xf32>
    %118 = arith.divf %116, %117 : vector<8x128xf32>
    %119 = vector.extract_strided_slice %112 {offsets = [0, 128], sizes = [8, 128], strides = [1, 1]} : vector<8x512xf32> to vector<8x128xf32>
    %120 = arith.negf %119 : vector<8x128xf32>
    %121 = math.exp %120 : vector<8x128xf32>
    %cst_46 = arith.constant 1.000000e+00 : f32
    %122 = vector.broadcast %cst_46 : f32 to vector<8x128xf32>
    %123 = arith.addf %122, %121 : vector<8x128xf32>
    %124 = arith.divf %122, %123 : vector<8x128xf32>
    %125 = vector.extract_strided_slice %112 {offsets = [0, 256], sizes = [8, 128], strides = [1, 1]} : vector<8x512xf32> to vector<8x128xf32>
    %126 = math.tanh %125 : vector<8x128xf32>
    %127 = vector.extract_strided_slice %112 {offsets = [0, 384], sizes = [8, 128], strides = [1, 1]} : vector<8x512xf32> to vector<8x128xf32>
    %128 = arith.negf %127 : vector<8x128xf32>
    %129 = math.exp %128 : vector<8x128xf32>
    %cst_47 = arith.constant 1.000000e+00 : f32
    %130 = vector.broadcast %cst_47 : f32 to vector<8x128xf32>
    %131 = arith.addf %130, %129 : vector<8x128xf32>
    %132 = arith.divf %130, %131 : vector<8x128xf32>
    %133 = arith.mulf %124, %104 : vector<8x128xf32>
    %134 = arith.mulf %118, %126 : vector<8x128xf32>
    %135 = arith.addf %133, %134 : vector<8x128xf32>
    %136 = math.tanh %135 : vector<8x128xf32>
    %137 = arith.mulf %132, %136 : vector<8x128xf32>
    %c0_48 = arith.constant 0 : index
    %c24_49 = arith.constant 24 : index
    %c0_50 = arith.constant 0 : index
    %138 = vector.load %arg6[%c0_48, %c24_49, %c0_50] : memref<1x64x128xf32, #tpu.memory_space<vmem>>, vector<1x8x128xf32>
    %139 = vector.shape_cast %138 : vector<1x8x128xf32> to vector<8x128xf32>
    %140 = vector.shape_cast %137 : vector<8x128xf32> to vector<1x8x128xf32>
    tpu.vector_store %arg6[%c0_48, %c24_49, %c0_50], %140 {strides = array<i32>} : memref<1x64x128xf32, #tpu.memory_space<vmem>>, vector<1x8x128xf32>,
    %c32 = arith.constant 32 : index
    %c0_51 = arith.constant 0 : index
    %141 = vector.load %arg9[%c32, %c0_51] : memref<64x512xf32, #tpu.memory_space<vmem>>, vector<8x512xf32>
    %cst_52 = arith.constant dense<0.000000e+00> : vector<8x512xf32>
    %142 = tpu.matmul %137, %14, %cst_52 {dimension_numbers = #tpu.dot_dimension_numbers<[1], [0], [0], [1], [0, 0, 1, 1], [], []>} : vector<8x128xf32>, vector<128x512xf32>, vector<8x512xf32> -> vector<8x512xf32>
    %143 = arith.addf %141, %142 : vector<8x512xf32>
    %144 = vector.extract_strided_slice %143 {offsets = [0, 0], sizes = [8, 128], strides = [1, 1]} : vector<8x512xf32> to vector<8x128xf32>
    %145 = arith.negf %144 : vector<8x128xf32>
    %146 = math.exp %145 : vector<8x128xf32>
    %cst_53 = arith.constant 1.000000e+00 : f32
    %147 = vector.broadcast %cst_53 : f32 to vector<8x128xf32>
    %148 = arith.addf %147, %146 : vector<8x128xf32>
    %149 = arith.divf %147, %148 : vector<8x128xf32>
    %150 = vector.extract_strided_slice %143 {offsets = [0, 128], sizes = [8, 128], strides = [1, 1]} : vector<8x512xf32> to vector<8x128xf32>
    %151 = arith.negf %150 : vector<8x128xf32>
    %152 = math.exp %151 : vector<8x128xf32>
    %cst_54 = arith.constant 1.000000e+00 : f32
    %153 = vector.broadcast %cst_54 : f32 to vector<8x128xf32>
    %154 = arith.addf %153, %152 : vector<8x128xf32>
    %155 = arith.divf %153, %154 : vector<8x128xf32>
    %156 = vector.extract_strided_slice %143 {offsets = [0, 256], sizes = [8, 128], strides = [1, 1]} : vector<8x512xf32> to vector<8x128xf32>
    %157 = math.tanh %156 : vector<8x128xf32>
    %158 = vector.extract_strided_slice %143 {offsets = [0, 384], sizes = [8, 128], strides = [1, 1]} : vector<8x512xf32> to vector<8x128xf32>
    %159 = arith.negf %158 : vector<8x128xf32>
    %160 = math.exp %159 : vector<8x128xf32>
    %cst_55 = arith.constant 1.000000e+00 : f32
    %161 = vector.broadcast %cst_55 : f32 to vector<8x128xf32>
    %162 = arith.addf %161, %160 : vector<8x128xf32>
    %163 = arith.divf %161, %162 : vector<8x128xf32>
    %164 = arith.mulf %155, %135 : vector<8x128xf32>
    %165 = arith.mulf %149, %157 : vector<8x128xf32>
    %166 = arith.addf %164, %165 : vector<8x128xf32>
    %167 = math.tanh %166 : vector<8x128xf32>
    %168 = arith.mulf %163, %167 : vector<8x128xf32>
    %c0_56 = arith.constant 0 : index
    %c32_57 = arith.constant 32 : index
    %c0_58 = arith.constant 0 : index
    %169 = vector.load %arg6[%c0_56, %c32_57, %c0_58] : memref<1x64x128xf32, #tpu.memory_space<vmem>>, vector<1x8x128xf32>
    %170 = vector.shape_cast %169 : vector<1x8x128xf32> to vector<8x128xf32>
    %171 = vector.shape_cast %168 : vector<8x128xf32> to vector<1x8x128xf32>
    tpu.vector_store %arg6[%c0_56, %c32_57, %c0_58], %171 {strides = array<i32>} : memref<1x64x128xf32, #tpu.memory_space<vmem>>, vector<1x8x128xf32>,
    %c40 = arith.constant 40 : index
    %c0_59 = arith.constant 0 : index
    %172 = vector.load %arg9[%c40, %c0_59] : memref<64x512xf32, #tpu.memory_space<vmem>>, vector<8x512xf32>
    %cst_60 = arith.constant dense<0.000000e+00> : vector<8x512xf32>
    %173 = tpu.matmul %168, %14, %cst_60 {dimension_numbers = #tpu.dot_dimension_numbers<[1], [0], [0], [1], [0, 0, 1, 1], [], []>} : vector<8x128xf32>, vector<128x512xf32>, vector<8x512xf32> -> vector<8x512xf32>
    %174 = arith.addf %172, %173 : vector<8x512xf32>
    %175 = vector.extract_strided_slice %174 {offsets = [0, 0], sizes = [8, 128], strides = [1, 1]} : vector<8x512xf32> to vector<8x128xf32>
    %176 = arith.negf %175 : vector<8x128xf32>
    %177 = math.exp %176 : vector<8x128xf32>
    %cst_61 = arith.constant 1.000000e+00 : f32
    %178 = vector.broadcast %cst_61 : f32 to vector<8x128xf32>
    %179 = arith.addf %178, %177 : vector<8x128xf32>
    %180 = arith.divf %178, %179 : vector<8x128xf32>
    %181 = vector.extract_strided_slice %174 {offsets = [0, 128], sizes = [8, 128], strides = [1, 1]} : vector<8x512xf32> to vector<8x128xf32>
    %182 = arith.negf %181 : vector<8x128xf32>
    %183 = math.exp %182 : vector<8x128xf32>
    %cst_62 = arith.constant 1.000000e+00 : f32
    %184 = vector.broadcast %cst_62 : f32 to vector<8x128xf32>
    %185 = arith.addf %184, %183 : vector<8x128xf32>
    %186 = arith.divf %184, %185 : vector<8x128xf32>
    %187 = vector.extract_strided_slice %174 {offsets = [0, 256], sizes = [8, 128], strides = [1, 1]} : vector<8x512xf32> to vector<8x128xf32>
    %188 = math.tanh %187 : vector<8x128xf32>
    %189 = vector.extract_strided_slice %174 {offsets = [0, 384], sizes = [8, 128], strides = [1, 1]} : vector<8x512xf32> to vector<8x128xf32>
    %190 = arith.negf %189 : vector<8x128xf32>
    %191 = math.exp %190 : vector<8x128xf32>
    %cst_63 = arith.constant 1.000000e+00 : f32
    %192 = vector.broadcast %cst_63 : f32 to vector<8x128xf32>
    %193 = arith.addf %192, %191 : vector<8x128xf32>
    %194 = arith.divf %192, %193 : vector<8x128xf32>
    %195 = arith.mulf %186, %166 : vector<8x128xf32>
    %196 = arith.mulf %180, %188 : vector<8x128xf32>
    %197 = arith.addf %195, %196 : vector<8x128xf32>
    %198 = math.tanh %197 : vector<8x128xf32>
    %199 = arith.mulf %194, %198 : vector<8x128xf32>
    %c0_64 = arith.constant 0 : index
    %c40_65 = arith.constant 40 : index
    %c0_66 = arith.constant 0 : index
    %200 = vector.load %arg6[%c0_64, %c40_65, %c0_66] : memref<1x64x128xf32, #tpu.memory_space<vmem>>, vector<1x8x128xf32>
    %201 = vector.shape_cast %200 : vector<1x8x128xf32> to vector<8x128xf32>
    %202 = vector.shape_cast %199 : vector<8x128xf32> to vector<1x8x128xf32>
    tpu.vector_store %arg6[%c0_64, %c40_65, %c0_66], %202 {strides = array<i32>} : memref<1x64x128xf32, #tpu.memory_space<vmem>>, vector<1x8x128xf32>,
    %c48 = arith.constant 48 : index
    %c0_67 = arith.constant 0 : index
    %203 = vector.load %arg9[%c48, %c0_67] : memref<64x512xf32, #tpu.memory_space<vmem>>, vector<8x512xf32>
    %cst_68 = arith.constant dense<0.000000e+00> : vector<8x512xf32>
    %204 = tpu.matmul %199, %14, %cst_68 {dimension_numbers = #tpu.dot_dimension_numbers<[1], [0], [0], [1], [0, 0, 1, 1], [], []>} : vector<8x128xf32>, vector<128x512xf32>, vector<8x512xf32> -> vector<8x512xf32>
    %205 = arith.addf %203, %204 : vector<8x512xf32>
    %206 = vector.extract_strided_slice %205 {offsets = [0, 0], sizes = [8, 128], strides = [1, 1]} : vector<8x512xf32> to vector<8x128xf32>
    %207 = arith.negf %206 : vector<8x128xf32>
    %208 = math.exp %207 : vector<8x128xf32>
    %cst_69 = arith.constant 1.000000e+00 : f32
    %209 = vector.broadcast %cst_69 : f32 to vector<8x128xf32>
    %210 = arith.addf %209, %208 : vector<8x128xf32>
    %211 = arith.divf %209, %210 : vector<8x128xf32>
    %212 = vector.extract_strided_slice %205 {offsets = [0, 128], sizes = [8, 128], strides = [1, 1]} : vector<8x512xf32> to vector<8x128xf32>
    %213 = arith.negf %212 : vector<8x128xf32>
    %214 = math.exp %213 : vector<8x128xf32>
    %cst_70 = arith.constant 1.000000e+00 : f32
    %215 = vector.broadcast %cst_70 : f32 to vector<8x128xf32>
    %216 = arith.addf %215, %214 : vector<8x128xf32>
    %217 = arith.divf %215, %216 : vector<8x128xf32>
    %218 = vector.extract_strided_slice %205 {offsets = [0, 256], sizes = [8, 128], strides = [1, 1]} : vector<8x512xf32> to vector<8x128xf32>
    %219 = math.tanh %218 : vector<8x128xf32>
    %220 = vector.extract_strided_slice %205 {offsets = [0, 384], sizes = [8, 128], strides = [1, 1]} : vector<8x512xf32> to vector<8x128xf32>
    %221 = arith.negf %220 : vector<8x128xf32>
    %222 = math.exp %221 : vector<8x128xf32>
    %cst_71 = arith.constant 1.000000e+00 : f32
    %223 = vector.broadcast %cst_71 : f32 to vector<8x128xf32>
    %224 = arith.addf %223, %222 : vector<8x128xf32>
    %225 = arith.divf %223, %224 : vector<8x128xf32>
    %226 = arith.mulf %217, %197 : vector<8x128xf32>
    %227 = arith.mulf %211, %219 : vector<8x128xf32>
    %228 = arith.addf %226, %227 : vector<8x128xf32>
    %229 = math.tanh %228 : vector<8x128xf32>
    %230 = arith.mulf %225, %229 : vector<8x128xf32>
    %c0_72 = arith.constant 0 : index
    %c48_73 = arith.constant 48 : index
    %c0_74 = arith.constant 0 : index
    %231 = vector.load %arg6[%c0_72, %c48_73, %c0_74] : memref<1x64x128xf32, #tpu.memory_space<vmem>>, vector<1x8x128xf32>
    %232 = vector.shape_cast %231 : vector<1x8x128xf32> to vector<8x128xf32>
    %233 = vector.shape_cast %230 : vector<8x128xf32> to vector<1x8x128xf32>
    tpu.vector_store %arg6[%c0_72, %c48_73, %c0_74], %233 {strides = array<i32>} : memref<1x64x128xf32, #tpu.memory_space<vmem>>, vector<1x8x128xf32>,
    %c56 = arith.constant 56 : index
    %c0_75 = arith.constant 0 : index
    %234 = vector.load %arg9[%c56, %c0_75] : memref<64x512xf32, #tpu.memory_space<vmem>>, vector<8x512xf32>
    %cst_76 = arith.constant dense<0.000000e+00> : vector<8x512xf32>
    %235 = tpu.matmul %230, %14, %cst_76 {dimension_numbers = #tpu.dot_dimension_numbers<[1], [0], [0], [1], [0, 0, 1, 1], [], []>} : vector<8x128xf32>, vector<128x512xf32>, vector<8x512xf32> -> vector<8x512xf32>
    %236 = arith.addf %234, %235 : vector<8x512xf32>
    %237 = vector.extract_strided_slice %236 {offsets = [0, 0], sizes = [8, 128], strides = [1, 1]} : vector<8x512xf32> to vector<8x128xf32>
    %238 = arith.negf %237 : vector<8x128xf32>
    %239 = math.exp %238 : vector<8x128xf32>
    %cst_77 = arith.constant 1.000000e+00 : f32
    %240 = vector.broadcast %cst_77 : f32 to vector<8x128xf32>
    %241 = arith.addf %240, %239 : vector<8x128xf32>
    %242 = arith.divf %240, %241 : vector<8x128xf32>
    %243 = vector.extract_strided_slice %236 {offsets = [0, 128], sizes = [8, 128], strides = [1, 1]} : vector<8x512xf32> to vector<8x128xf32>
    %244 = arith.negf %243 : vector<8x128xf32>
    %245 = math.exp %244 : vector<8x128xf32>
    %cst_78 = arith.constant 1.000000e+00 : f32
    %246 = vector.broadcast %cst_78 : f32 to vector<8x128xf32>
    %247 = arith.addf %246, %245 : vector<8x128xf32>
    %248 = arith.divf %246, %247 : vector<8x128xf32>
    %249 = vector.extract_strided_slice %236 {offsets = [0, 256], sizes = [8, 128], strides = [1, 1]} : vector<8x512xf32> to vector<8x128xf32>
    %250 = math.tanh %249 : vector<8x128xf32>
    %251 = vector.extract_strided_slice %236 {offsets = [0, 384], sizes = [8, 128], strides = [1, 1]} : vector<8x512xf32> to vector<8x128xf32>
    %252 = arith.negf %251 : vector<8x128xf32>
    %253 = math.exp %252 : vector<8x128xf32>
    %cst_79 = arith.constant 1.000000e+00 : f32
    %254 = vector.broadcast %cst_79 : f32 to vector<8x128xf32>
    %255 = arith.addf %254, %253 : vector<8x128xf32>
    %256 = arith.divf %254, %255 : vector<8x128xf32>
    %257 = arith.mulf %248, %228 : vector<8x128xf32>
    %258 = arith.mulf %242, %250 : vector<8x128xf32>
    %259 = arith.addf %257, %258 : vector<8x128xf32>
    %260 = math.tanh %259 : vector<8x128xf32>
    %261 = arith.mulf %256, %260 : vector<8x128xf32>
    %c0_80 = arith.constant 0 : index
    %c56_81 = arith.constant 56 : index
    %c0_82 = arith.constant 0 : index
    %262 = vector.load %arg6[%c0_80, %c56_81, %c0_82] : memref<1x64x128xf32, #tpu.memory_space<vmem>>, vector<1x8x128xf32>
    %263 = vector.shape_cast %262 : vector<1x8x128xf32> to vector<8x128xf32>
    %264 = vector.shape_cast %261 : vector<8x128xf32> to vector<1x8x128xf32>
    tpu.vector_store %arg6[%c0_80, %c56_81, %c0_82], %264 {strides = array<i32>} : memref<1x64x128xf32, #tpu.memory_space<vmem>>, vector<1x8x128xf32>,
    %c0_83 = arith.constant 0 : index
    %c0_84 = arith.constant 0 : index
    %265 = vector.load %arg7[%c0_83, %c0_84] : memref<8x128xf32, #tpu.memory_space<vmem>>, vector<8x128xf32>
    tpu.vector_store %arg7[%c0_83, %c0_84], %261 {strides = array<i32>} : memref<8x128xf32, #tpu.memory_space<vmem>>, vector<8x128xf32>,
    %c0_85 = arith.constant 0 : index
    %c0_86 = arith.constant 0 : index
    %266 = vector.load %arg8[%c0_85, %c0_86] : memref<8x128xf32, #tpu.memory_space<vmem>>, vector<8x128xf32>
    tpu.vector_store %arg8[%c0_85, %c0_86], %259 {strides = array<i32>} : memref<8x128xf32, #tpu.memory_space<vmem>>, vector<8x128xf32>,
    return
  }
  func.func @transform_0(%arg0: i32, %arg1: i32) -> (i32, i32, i32) {
    %c0_i32 = arith.constant 0 : i32
    %c0_i32_0 = arith.constant 0 : i32
    return %arg0, %arg1, %c0_i32 : i32, i32, i32
  }
  func.func @transform_1(%arg0: i32, %arg1: i32) -> (i32, i32, i32) {
    %c0_i32 = arith.constant 0 : i32
    %c0_i32_0 = arith.constant 0 : i32
    %c0_i32_1 = arith.constant 0 : i32
    return %arg0, %c0_i32, %c0_i32_0 : i32, i32, i32
  }
  func.func @transform_2(%arg0: i32, %arg1: i32) -> (i32, i32, i32) {
    %c0_i32 = arith.constant 0 : i32
    %c0_i32_0 = arith.constant 0 : i32
    %c0_i32_1 = arith.constant 0 : i32
    return %arg0, %c0_i32, %c0_i32_0 : i32, i32, i32
  }
  func.func @transform_3(%arg0: i32, %arg1: i32) -> (i32, i32, i32) {
    %c0_i32 = arith.constant 0 : i32
    %c0_i32_0 = arith.constant 0 : i32
    %c0_i32_1 = arith.constant 0 : i32
    return %arg0, %c0_i32, %c0_i32_0 : i32, i32, i32
  }
  func.func @transform_4(%arg0: i32, %arg1: i32) -> (i32, i32, i32) {
    %c0_i32 = arith.constant 0 : i32
    %c0_i32_0 = arith.constant 0 : i32
    return %arg0, %arg1, %c0_i32 : i32, i32, i32
  }
}

</mosaic_0001>

<llo_original>
// kernel: a_call__.2
$region0: #{a_call__.2}
  #allocation0 [shape = 'u32[]', space=smem, size = 0x4, offset = 0x4, fixed_abs, tag = 'smem constant byte address 0x4 - core index']
  #allocation1 [shape = 'u32[72,128]{1,0:T(1,128)}', space=vmem, size = 0x9000, scoped, tag = 'internal scratch']
  #allocation2 [shape = 'f32[8,128]{1,0:T(8,128)}', space=vmem, size = 0x1000, scoped, tag = 'scratch operand']
  #allocation3 [shape = 'f32[8,128]{1,0:T(8,128)}', space=vmem, size = 0x1000, scoped, tag = 'scratch operand']
  #allocation4 [shape = 'f32[64,512]{1,0:T(8,128)}', space=vmem, size = 0x20000, scoped, tag = 'scratch operand']
  %s0 = inlined_call_operand.vmem [shape: f32[3,64,128], index: 0, kind: input, shape index: {}]
  %s1 = inlined_call_operand.vmem [shape: f32[3,128,512], index: 1, kind: input, shape index: {}]
  %s2 = inlined_call_operand.vmem [shape: f32[3,128,512], index: 2, kind: input, shape index: {}]
  %s3 = inlined_call_operand.vmem [shape: f32[3,1,512], index: 3, kind: input, shape index: {}]
  %s4 = inlined_call_operand.vmem [shape: f32[3,64,128], index: 4, kind: output, shape index: {}]
  %s5 = sld [smem:[#allocation0]]
  $region53: #{a_call__.2} parent=0
    _
  %s7 = ssub.s32 1, %s5
  %s8 = scalar_select 0, %s7, %s5
  loop: start=0, step=1, limit=5
  $region2: #{a_call__.2} parent=0 // loop_pre_header
    _
  $region3: #{a_call__.2} parent=0 // loop_header
    %s10 = sphi 0, %s14
    %p11 = scmp.ge.s32.totalorder %s10, 5
    %s17 = sphi 0, %s29
    %s18 = sphi 0, %s25
    %s19 = sphi 0, %s17
    %s20 = sphi 0, %s18
    %s21 = sphi 0, %s19
    %s22 = sphi 0, %s20
    %s34 = sphi 0, %s36
    %s37 = sphi 0, %s34
    %s38 = sphi 0, %s37
    %s54 = sphi 0, %s38
    %s60 = sphi 0, %s62
    %s63 = sphi 0, %s60
    %s64 = sphi 0, %s63
    %s80 = sphi 0, %s64
    %s86 = sphi 0, %s88
    %s89 = sphi 0, %s86
    %s90 = sphi 0, %s89
    %s106 = sphi 0, %s90
    %s112 = sphi 0, %s114
    %s115 = sphi 0, %s112
    %s116 = sphi 0, %s115
    %s132 = sphi 0, %s116
    %s140 = sphi 0, %s142
    %s143 = sphi 0, %s140
    %s144 = sphi 0, %s143
    %s160 = sphi 0, %s144
  $region4: #{a_call__.2} parent=0 // loop_header_branch
    %13 = sbr.rel (%p11) target = $region8
  $region5: #{a_call__.2} parent=0 // loop_body
    %s15 = ssub.s32 %s10, 1
    %s16 = ssub.s32 %s10, 2
    %s23 = sadd.s32 1, %s18
    %p24 = scmp.ge.s32.totalorder %s23, 1
    %s25 = scalar_select %p24, 0, %s23
    %s26 = sadd.s32 1, %s17
    %s27 = scalar_select %p24, %s26, %s17
    %p28 = scmp.ge.s32.totalorder %s27, 3
    %s29 = scalar_select %p28, 0, %s27
    %s30 = ssub.s32 %s17, %s29
    %s31 = ssub.s32 %s18, %s25
    %s32 = sor.u32 %s30, %s31
    %p33 = scmp.eq.s32.totalorder %s32, 0
    %s35 = sadd.s32 %s34, 1
    %s36 = scalar_select %p33, %s34, %s35
    %p39 = pneg %p33
    %p40 = scmp.eq.s32.totalorder %s10, 2
    %p41 = por %p39, %p40
    %p42 = scmp.ne.s32.totalorder %s34, %s37
    %p43 = scmp.eq.s32.totalorder %s10, 0
    %p44 = por %p42, %p43
    %p45 = scmp.ne.s32.totalorder %s34, %s37
    %p46 = scmp.eq.s32.totalorder %s15, 2
    %p47 = por %p45, %p46
    %p48 = scmp.ne.s32.totalorder %s37, %s38
    %p49 = scmp.eq.s32.totalorder %s15, 0
    %p50 = por %p48, %p49
    %p51 = scmp.ne.s32.totalorder %s37, %s38
    %p52 = scmp.eq.s32.totalorder %s16, 2
    %p53 = por %p51, %p52
    %p55 = scmp.ne.s32.totalorder %s38, %s54
    %p56 = scmp.eq.s32.totalorder %s16, 0
    %p57 = por %p55, %p56
    %s58 = ssub.s32 %s17, %s29
    %p59 = scmp.eq.s32.totalorder %s58, 0
    %s61 = sadd.s32 %s60, 1
    %s62 = scalar_select %p59, %s60, %s61
    %p65 = pneg %p59
    %p66 = scmp.eq.s32.totalorder %s10, 2
    %p67 = por %p65, %p66
    %p68 = scmp.ne.s32.totalorder %s60, %s63
    %p69 = scmp.eq.s32.totalorder %s10, 0
    %p70 = por %p68, %p69
    %p71 = scmp.ne.s32.totalorder %s60, %s63
    %p72 = scmp.eq.s32.totalorder %s15, 2
    %p73 = por %p71, %p72
    %p74 = scmp.ne.s32.totalorder %s63, %s64
    %p75 = scmp.eq.s32.totalorder %s15, 0
    %p76 = por %p74, %p75
    %p77 = scmp.ne.s32.totalorder %s63, %s64
    %p78 = scmp.eq.s32.totalorder %s16, 2
    %p79 = por %p77, %p78
    %p81 = scmp.ne.s32.totalorder %s64, %s80
    %p82 = scmp.eq.s32.totalorder %s16, 0
    %p83 = por %p81, %p82
    %s84 = ssub.s32 %s17, %s29
    %p85 = scmp.eq.s32.totalorder %s84, 0
    %s87 = sadd.s32 %s86, 1
    %s88 = scalar_select %p85, %s86, %s87
    %p91 = pneg %p85
    %p92 = scmp.eq.s32.totalorder %s10, 2
    %p93 = por %p91, %p92
    %p94 = scmp.ne.s32.totalorder %s86, %s89
    %p95 = scmp.eq.s32.totalorder %s10, 0
    %p96 = por %p94, %p95
    %p97 = scmp.ne.s32.totalorder %s86, %s89
    %p98 = scmp.eq.s32.totalorder %s15, 2
    %p99 = por %p97, %p98
    %p100 = scmp.ne.s32.totalorder %s89, %s90
    %p101 = scmp.eq.s32.totalorder %s15, 0
    %p102 = por %p100, %p101
    %p103 = scmp.ne.s32.totalorder %s89, %s90
    %p104 = scmp.eq.s32.totalorder %s16, 2
    %p105 = por %p103, %p104
    %p107 = scmp.ne.s32.totalorder %s90, %s106
    %p108 = scmp.eq.s32.totalorder %s16, 0
    %p109 = por %p107, %p108
    %s110 = ssub.s32 %s17, %s29
    %p111 = scmp.eq.s32.totalorder %s110, 0
    %s113 = sadd.s32 %s112, 1
    %s114 = scalar_select %p111, %s112, %s113
    %p117 = pneg %p111
    %p118 = scmp.eq.s32.totalorder %s10, 2
    %p119 = por %p117, %p118
    %p120 = scmp.ne.s32.totalorder %s112, %s115
    %p121 = scmp.eq.s32.totalorder %s10, 0
    %p122 = por %p120, %p121
    %p123 = scmp.ne.s32.totalorder %s112, %s115
    %p124 = scmp.eq.s32.totalorder %s15, 2
    %p125 = por %p123, %p124
    %p126 = scmp.ne.s32.totalorder %s115, %s116
    %p127 = scmp.eq.s32.totalorder %s15, 0
    %p128 = por %p126, %p127
    %p129 = scmp.ne.s32.totalorder %s115, %s116
    %p130 = scmp.eq.s32.totalorder %s16, 2
    %p131 = por %p129, %p130
    %p133 = scmp.ne.s32.totalorder %s116, %s132
    %p134 = scmp.eq.s32.totalorder %s16, 0
    %p135 = por %p133, %p134
    %s136 = ssub.s32 %s17, %s29
    %s137 = ssub.s32 %s18, %s25
    %s138 = sor.u32 %s136, %s137
    %p139 = scmp.eq.s32.totalorder %s138, 0
    %s141 = sadd.s32 %s140, 1
    %s142 = scalar_select %p139, %s140, %s141
    %p145 = pneg %p139
    %p146 = scmp.eq.s32.totalorder %s10, 2
    %p147 = por %p145, %p146
    %p148 = scmp.ne.s32.totalorder %s140, %s143
    %p149 = scmp.eq.s32.totalorder %s10, 0
    %p150 = por %p148, %p149
    %p151 = scmp.ne.s32.totalorder %s140, %s143
    %p152 = scmp.eq.s32.totalorder %s15, 2
    %p153 = por %p151, %p152
    %p154 = scmp.ne.s32.totalorder %s143, %s144
    %p155 = scmp.eq.s32.totalorder %s15, 0
    %p156 = por %p154, %p155
    %p157 = scmp.ne.s32.totalorder %s143, %s144
    %p158 = scmp.eq.s32.totalorder %s16, 2
    %p159 = por %p157, %p158
    %p161 = scmp.ne.s32.totalorder %s144, %s160
    %p162 = scmp.eq.s32.totalorder %s16, 0
    %p163 = por %p161, %p162
    %p164 = scmp.le.s32.totalorder 1, %s10
    %p165 = scmp.lt.s32.totalorder %s10, 4
    %p166 = pnand %p164, %p165
    %p167 = pneg %p166
    // Predicated region
    $region9: #{a_call__.2} parent=5 // pred_check
      _
    $region10: #{a_call__.2} parent=5 // pred_check_branch
      %169 = sbr.rel (%p166) target = $region12
    $region11: #{a_call__.2} parent=5 // pred_region
      %s170 = ssub.s32 %s10, 1
    $region12: #{a_call__.2} parent=5 // pred_fallthru
      _
    %p171 = scmp.lt.s32.totalorder %s10, 3
    // Predicated region
    $region13: #{a_call__.2} parent=5 // pred_check
      %p172 = pneg %p171
    $region14: #{a_call__.2} parent=5 // pred_check_branch
      %174 = sbr.rel (%p172) target = $region16
    $region15: #{a_call__.2} parent=5 // pred_region
      // Predicated region
      $region17: #{a_call__.2} parent=15 // pred_check
        %p175 = pneg %p44
      $region18: #{a_call__.2} parent=15 // pred_check_branch
        %177 = sbr.rel (%p175) target = $region20
      $region19: #{a_call__.2} parent=15 // pred_region
        %s178 = smul.u32 8, %s18
        %p179 = scmp.lt.s32.totalorder %s17, 2
        %s180 = scalar_select %p179, %s17, 2
        %p181 = scmp.lt.s32.totalorder %s178, 7
        %s182 = scalar_select %p181, %s178, 7
        %s183 = smul.addr %s180, 8
        %s184 = sadd.s32 %s182, %s183
        %s185 = smul.addr %s184, 8
        %s186 = scalar_lea.vmem %s0, %s185
        %s187 = smul.u32 8, %s18
      $region20: #{a_call__.2} parent=15 // pred_fallthru
        _
      // Predicated region
      $region21: #{a_call__.2} parent=15 // pred_check
        %p188 = pneg %p70
      $region22: #{a_call__.2} parent=15 // pred_check_branch
        %190 = sbr.rel (%p188) target = $region24
      $region23: #{a_call__.2} parent=15 // pred_region
        %p191 = scmp.lt.s32.totalorder %s17, 2
        %s192 = scalar_select %p191, %s17, 2
        %s193 = smul.addr %s192, 64
        %s194 = smul.addr %s193, 8
        %s195 = scalar_lea.vmem %s1, %s194
      $region24: #{a_call__.2} parent=15 // pred_fallthru
        _
      // Predicated region
      $region25: #{a_call__.2} parent=15 // pred_check
        %p196 = pneg %p96
      $region26: #{a_call__.2} parent=15 // pred_check_branch
        %198 = sbr.rel (%p196) target = $region28
      $region27: #{a_call__.2} parent=15 // pred_region
        %p199 = scmp.lt.s32.totalorder %s17, 2
        %s200 = scalar_select %p199, %s17, 2
        %s201 = smul.addr %s200, 64
        %s202 = smul.addr %s201, 8
        %s203 = scalar_lea.vmem %s2, %s202
      $region28: #{a_call__.2} parent=15 // pred_fallthru
        _
      // Predicated region
      $region29: #{a_call__.2} parent=15 // pred_check
        %p204 = pneg %p122
      $region30: #{a_call__.2} parent=15 // pred_check_branch
        %206 = sbr.rel (%p204) target = $region32
      $region31: #{a_call__.2} parent=15 // pred_region
        %p207 = scmp.lt.s32.totalorder %s17, 2
        %s208 = scalar_select %p207, %s17, 2
        %s209 = smul.addr %s208, 4
        %s210 = scalar_lea.vmem %s3, %s209
      $region32: #{a_call__.2} parent=15 // pred_fallthru
        _
    $region16: #{a_call__.2} parent=5 // pred_fallthru
      _
    %p211 = scmp.le.s32.totalorder 1, %s10
    %p212 = scmp.lt.s32.totalorder %s10, 4
    %p213 = pnand %p211, %p212
    %p214 = pneg %p213
    // Predicated region
    $region33: #{a_call__.2} parent=5 // pred_check
      _
    $region34: #{a_call__.2} parent=5 // pred_check_branch
      %216 = sbr.rel (%p213) target = $region36
    $region35: #{a_call__.2} parent=5 // pred_region
      %s217 = ssub.s32 %s10, 1
      %s218 = smul.u32 8, %s20
      %p219 = scmp.lt.s32.totalorder %s19, 2
      %s220 = scalar_select %p219, %s19, 2
      %p221 = scmp.lt.s32.totalorder %s218, 7
      %s222 = scalar_select %p221, %s218, 7
      %s223 = smul.addr %s220, 8
      %s224 = sadd.s32 %s222, %s223
      %s225 = smul.addr %s224, 8
      %s226 = scalar_lea.vmem %s0, %s225
      %p227 = pneg %p50
      %p228 = pneg %p47
      %p229 = scmp.lt.s32.totalorder %s19, 2
      %s230 = scalar_select %p229, %s19, 2
      %s231 = smul.addr %s230, 64
      %s232 = smul.addr %s231, 8
      %s233 = scalar_lea.vmem %s1, %s232
      %p234 = pneg %p76
      %p235 = pneg %p73
      %p236 = scmp.lt.s32.totalorder %s19, 2
      %s237 = scalar_select %p236, %s19, 2
      %s238 = smul.addr %s237, 64
      %s239 = smul.addr %s238, 8
      %s240 = scalar_lea.vmem %s2, %s239
      %p241 = pneg %p102
      %p242 = pneg %p99
      %p243 = scmp.lt.s32.totalorder %s19, 2
      %s244 = scalar_select %p243, %s19, 2
      %s245 = smul.addr %s244, 4
      %s246 = scalar_lea.vmem %s3, %s245
      %p247 = pneg %p128
      %p248 = pneg %p125
      %p249 = pneg %p156
      %p250 = pneg %p153
      %s251 = smul.u32 8, %s20
      %p252 = scmp.lt.s32.totalorder %s19, 2
      %s253 = scalar_select %p252, %s19, 2
      %p254 = scmp.lt.s32.totalorder %s251, 7
      %s255 = scalar_select %p254, %s251, 7
      %s256 = smul.addr %s253, 8
      %s257 = sadd.s32 %s255, %s256
      %s258 = smul.addr %s257, 8
      %s259 = scalar_lea.vmem %s4, %s258
      %s260 = smul.u32 8, %s20
      %p261 = scmp.lt.s32.totalorder %s19, 2
      %s262 = scalar_select %p261, %s19, 2
      %p263 = scmp.lt.s32.totalorder %s260, 7
      %s264 = scalar_select %p263, %s260, 7
      %s265 = smul.addr %s262, 8
      %s266 = sadd.s32 %s264, %s265
      %s267 = smul.addr %s266, 8
      %s268 = scalar_lea.vmem %s0, %s267
      %s269 = smul.u32 8, %s20
      %p270 = scmp.lt.s32.totalorder %s19, 2
      %s271 = scalar_select %p270, %s19, 2
      %s272 = smul.addr %s271, 64
      %s273 = smul.addr %s272, 8
      %s274 = scalar_lea.vmem %s1, %s273
      %p275 = scmp.lt.s32.totalorder %s19, 2
      %s276 = scalar_select %p275, %s19, 2
      %s277 = smul.addr %s276, 64
      %s278 = smul.addr %s277, 8
      %s279 = scalar_lea.vmem %s2, %s278
      %p280 = scmp.lt.s32.totalorder %s19, 2
      %s281 = scalar_select %p280, %s19, 2
      %s282 = smul.addr %s281, 4
      %s283 = scalar_lea.vmem %s3, %s282
      %s284 = smul.u32 8, %s20
      %p285 = scmp.lt.s32.totalorder %s19, 2
      %s286 = scalar_select %p285, %s19, 2
      %p287 = scmp.lt.s32.totalorder %s284, 7
      %s288 = scalar_select %p287, %s284, 7
      %s289 = smul.addr %s286, 8
      %s290 = sadd.s32 %s288, %s289
      %s291 = smul.addr %s290, 8
      %s292 = scalar_lea.vmem %s4, %s291
      %s293 = smul.u32 8, %s20
      %p294 = scmp.eq.s32.totalorder %s20, 0
      // Predicated region
      $region37: #{a_call__.2} parent=35 // pred_check
        %p295 = pneg %p294
      $region38: #{a_call__.2} parent=35 // pred_check_branch
        %297 = sbr.rel (%p295) target = $region40
      $region39: #{a_call__.2} parent=35 // pred_region
        %298 = vst [vmem:[#allocation2] sm:$0xff] 0.0
        %299 = vst [vmem:[#allocation3] sm:$0xff] 0.0
      $region40: #{a_call__.2} parent=35 // pred_fallthru
        _
      %v300 = vld [vmem:[%s268] sm:$0xff]
      %v301 = vld [vmem:[%s268 + $0x8] sm:$0xff]
      %v302 = vld [vmem:[%s268 + $0x10] sm:$0xff]
      %v303 = vld [vmem:[%s268 + $0x18] sm:$0xff]
      %v304 = vld [vmem:[%s268 + $0x20] sm:$0xff]
      %v305 = vld [vmem:[%s268 + $0x28] sm:$0xff]
      %v306 = vld [vmem:[%s268 + $0x30] sm:$0xff]
      %v307 = vld [vmem:[%s268 + $0x38] sm:$0xff]
      %v308 = vld [vmem:[%s274] sm:$0xff]
      %v309 = vld [vmem:[%s274 + $0x8] sm:$0xff]
      %v310 = vld [vmem:[%s274 + $0x10] sm:$0xff]
      %v311 = vld [vmem:[%s274 + $0x18] sm:$0xff]
      %v312 = vld [vmem:[%s274 + $0x20] sm:$0xff]
      %v313 = vld [vmem:[%s274 + $0x28] sm:$0xff]
      %v314 = vld [vmem:[%s274 + $0x30] sm:$0xff]
      %v315 = vld [vmem:[%s274 + $0x38] sm:$0xff]
      %v316 = vld [vmem:[%s274 + $0x40] sm:$0xff]
      %v317 = vld [vmem:[%s274 + $0x48] sm:$0xff]
      %v318 = vld [vmem:[%s274 + $0x50] sm:$0xff]
      %v319 = vld [vmem:[%s274 + $0x58] sm:$0xff]
      %v320 = vld [vmem:[%s274 + $0x60] sm:$0xff]
      %v321 = vld [vmem:[%s274 + $0x68] sm:$0xff]
      %v322 = vld [vmem:[%s274 + $0x70] sm:$0xff]
      %v323 = vld [vmem:[%s274 + $0x78] sm:$0xff]
      %v324 = vld [vmem:[%s274 + $0x80] sm:$0xff]
      %v325 = vld [vmem:[%s274 + $0x88] sm:$0xff]
      %v326 = vld [vmem:[%s274 + $0x90] sm:$0xff]
      %v327 = vld [vmem:[%s274 + $0x98] sm:$0xff]
      %v328 = vld [vmem:[%s274 + $0xa0] sm:$0xff]
      %v329 = vld [vmem:[%s274 + $0xa8] sm:$0xff]
      %v330 = vld [vmem:[%s274 + $0xb0] sm:$0xff]
      %v331 = vld [vmem:[%s274 + $0xb8] sm:$0xff]
      %v332 = vld [vmem:[%s274 + $0xc0] sm:$0xff]
      %v333 = vld [vmem:[%s274 + $0xc8] sm:$0xff]
      %v334 = vld [vmem:[%s274 + $0xd0] sm:$0xff]
      %v335 = vld [vmem:[%s274 + $0xd8] sm:$0xff]
      %v336 = vld [vmem:[%s274 + $0xe0] sm:$0xff]
      %v337 = vld [vmem:[%s274 + $0xe8] sm:$0xff]
      %v338 = vld [vmem:[%s274 + $0xf0] sm:$0xff]
      %v339 = vld [vmem:[%s274 + $0xf8] sm:$0xff]
      %v340 = vld [vmem:[%s274 + $0x100] sm:$0xff]
      %v341 = vld [vmem:[%s274 + $0x108] sm:$0xff]
      %v342 = vld [vmem:[%s274 + $0x110] sm:$0xff]
      %v343 = vld [vmem:[%s274 + $0x118] sm:$0xff]
      %v344 = vld [vmem:[%s274 + $0x120] sm:$0xff]
      %v345 = vld [vmem:[%s274 + $0x128] sm:$0xff]
      %v346 = vld [vmem:[%s274 + $0x130] sm:$0xff]
      %v347 = vld [vmem:[%s274 + $0x138] sm:$0xff]
      %v348 = vld [vmem:[%s274 + $0x140] sm:$0xff]
      %v349 = vld [vmem:[%s274 + $0x148] sm:$0xff]
      %v350 = vld [vmem:[%s274 + $0x150] sm:$0xff]
      %v351 = vld [vmem:[%s274 + $0x158] sm:$0xff]
      %v352 = vld [vmem:[%s274 + $0x160] sm:$0xff]
      %v353 = vld [vmem:[%s274 + $0x168] sm:$0xff]
      %v354 = vld [vmem:[%s274 + $0x170] sm:$0xff]
      %v355 = vld [vmem:[%s274 + $0x178] sm:$0xff]
      %v356 = vld [vmem:[%s274 + $0x180] sm:$0xff]
      %v357 = vld [vmem:[%s274 + $0x188] sm:$0xff]
      %v358 = vld [vmem:[%s274 + $0x190] sm:$0xff]
      %v359 = vld [vmem:[%s274 + $0x198] sm:$0xff]
      %v360 = vld [vmem:[%s274 + $0x1a0] sm:$0xff]
      %v361 = vld [vmem:[%s274 + $0x1a8] sm:$0xff]
      %v362 = vld [vmem:[%s274 + $0x1b0] sm:$0xff]
      %v363 = vld [vmem:[%s274 + $0x1b8] sm:$0xff]
      %v364 = vld [vmem:[%s274 + $0x1c0] sm:$0xff]
      %v365 = vld [vmem:[%s274 + $0x1c8] sm:$0xff]
      %v366 = vld [vmem:[%s274 + $0x1d0] sm:$0xff]
      %v367 = vld [vmem:[%s274 + $0x1d8] sm:$0xff]
      %v368 = vld [vmem:[%s274 + $0x1e0] sm:$0xff]
      %v369 = vld [vmem:[%s274 + $0x1e8] sm:$0xff]
      %v370 = vld [vmem:[%s274 + $0x1f0] sm:$0xff]
      %v371 = vld [vmem:[%s274 + $0x1f8] sm:$0xff]
      %v372 = vld [vmem:[%s283] sm:$0xf]
      %v374 = vperm.slane %v372, 0
      %v375 = vperm.slane %v372, 1
      %v376 = vperm.slane %v372, 2
      %v377 = vperm.slane %v372, 3
      %382 = vmatpush.msra.mxu0 %v368
      %383 = vmatpush.msra.mxu0 %v364
      %384 = vmatpush.msra.mxu0 %v360
      %385 = vmatpush.msra.mxu0 %v356
      %386 = vmatpush.msra.mxu0 %v352
      %387 = vmatpush.msra.mxu0 %v348
      %388 = vmatpush.msra.mxu0 %v344
      %389 = vmatpush.msra.mxu0 %v340
      %390 = vmatpush.msra.mxu0 %v336
      %391 = vmatpush.msra.mxu0 %v332
      %392 = vmatpush.msra.mxu0 %v328
      %393 = vmatpush.msra.mxu0 %v324
      %394 = vmatpush.msra.mxu0 %v320
      %395 = vmatpush.msra.mxu0 %v316
      %396 = vmatpush.msra.mxu0 %v312
      %397 = vmatpush.msra.mxu0 %v308
      %398 = vmatmul.f32.gmra.mxu0 %v300
      %v399 = vpop.f32.mrf.mxu0
      %v400 = vadd.f32 %v374, %v399
      %401 = vmatmul.f32.gmra.mxu0 %v301
      %v402 = vpop.f32.mrf.mxu0
      %v403 = vadd.f32 %v374, %v402
      %404 = vmatmul.f32.gmra.mxu0 %v302
      %v405 = vpop.f32.mrf.mxu0
      %v406 = vadd.f32 %v374, %v405
      %407 = vmatmul.f32.gmra.mxu0 %v303
      %v408 = vpop.f32.mrf.mxu0
      %v409 = vadd.f32 %v374, %v408
      %410 = vmatmul.f32.gmra.mxu0 %v304
      %v411 = vpop.f32.mrf.mxu0
      %v412 = vadd.f32 %v374, %v411
      %413 = vmatmul.f32.gmra.mxu0 %v305
      %v414 = vpop.f32.mrf.mxu0
      %v415 = vadd.f32 %v374, %v414
      %416 = vmatmul.f32.gmra.mxu0 %v306
      %v417 = vpop.f32.mrf.mxu0
      %v418 = vadd.f32 %v374, %v417
      %419 = vmatmul.f32.gmra.mxu0 %v307
      %v420 = vpop.f32.mrf.mxu0
      %v421 = vadd.f32 %v374, %v420
      %422 = vdwg.mxu0
      %423 = vmatpush.msra.mxu0 %v369
      %424 = vmatpush.msra.mxu0 %v365
      %425 = vmatpush.msra.mxu0 %v361
      %426 = vmatpush.msra.mxu0 %v357
      %427 = vmatpush.msra.mxu0 %v353
      %428 = vmatpush.msra.mxu0 %v349
      %429 = vmatpush.msra.mxu0 %v345
      %430 = vmatpush.msra.mxu0 %v341
      %431 = vmatpush.msra.mxu0 %v337
      %432 = vmatpush.msra.mxu0 %v333
      %433 = vmatpush.msra.mxu0 %v329
      %434 = vmatpush.msra.mxu0 %v325
      %435 = vmatpush.msra.mxu0 %v321
      %436 = vmatpush.msra.mxu0 %v317
      %437 = vmatpush.msra.mxu0 %v313
      %438 = vmatpush.msra.mxu0 %v309
      %439 = vmatmul.f32.gmra.mxu0 %v300
      %v440 = vpop.f32.mrf.mxu0
      %v441 = vadd.f32 %v375, %v440
      %442 = vmatmul.f32.gmra.mxu0 %v301
      %v443 = vpop.f32.mrf.mxu0
      %v444 = vadd.f32 %v375, %v443
      %445 = vmatmul.f32.gmra.mxu0 %v302
      %v446 = vpop.f32.mrf.mxu0
      %v447 = vadd.f32 %v375, %v446
      %448 = vmatmul.f32.gmra.mxu0 %v303
      %v449 = vpop.f32.mrf.mxu0
      %v450 = vadd.f32 %v375, %v449
      %451 = vmatmul.f32.gmra.mxu0 %v304
      %v452 = vpop.f32.mrf.mxu0
      %v453 = vadd.f32 %v375, %v452
      %454 = vmatmul.f32.gmra.mxu0 %v305
      %v455 = vpop.f32.mrf.mxu0
      %v456 = vadd.f32 %v375, %v455
      %457 = vmatmul.f32.gmra.mxu0 %v306
      %v458 = vpop.f32.mrf.mxu0
      %v459 = vadd.f32 %v375, %v458
      %460 = vmatmul.f32.gmra.mxu0 %v307
      %v461 = vpop.f32.mrf.mxu0
      %v462 = vadd.f32 %v375, %v461
      %463 = vdwg.mxu0
      %464 = vmatpush.msra.mxu0 %v370
      %465 = vmatpush.msra.mxu0 %v366
      %466 = vmatpush.msra.mxu0 %v362
      %467 = vmatpush.msra.mxu0 %v358
      %468 = vmatpush.msra.mxu0 %v354
      %469 = vmatpush.msra.mxu0 %v350
      %470 = vmatpush.msra.mxu0 %v346
      %471 = vmatpush.msra.mxu0 %v342
      %472 = vmatpush.msra.mxu0 %v338
      %473 = vmatpush.msra.mxu0 %v334
      %474 = vmatpush.msra.mxu0 %v330
      %475 = vmatpush.msra.mxu0 %v326
      %476 = vmatpush.msra.mxu0 %v322
      %477 = vmatpush.msra.mxu0 %v318
      %478 = vmatpush.msra.mxu0 %v314
      %479 = vmatpush.msra.mxu0 %v310
      %480 = vmatmul.f32.gmra.mxu0 %v300
      %v481 = vpop.f32.mrf.mxu0
      %v482 = vadd.f32 %v376, %v481
      %483 = vmatmul.f32.gmra.mxu0 %v301
      %v484 = vpop.f32.mrf.mxu0
      %v485 = vadd.f32 %v376, %v484
      %486 = vmatmul.f32.gmra.mxu0 %v302
      %v487 = vpop.f32.mrf.mxu0
      %v488 = vadd.f32 %v376, %v487
      %489 = vmatmul.f32.gmra.mxu0 %v303
      %v490 = vpop.f32.mrf.mxu0
      %v491 = vadd.f32 %v376, %v490
      %492 = vmatmul.f32.gmra.mxu0 %v304
      %v493 = vpop.f32.mrf.mxu0
      %v494 = vadd.f32 %v376, %v493
      %495 = vmatmul.f32.gmra.mxu0 %v305
      %v496 = vpop.f32.mrf.mxu0
      %v497 = vadd.f32 %v376, %v496
      %498 = vmatmul.f32.gmra.mxu0 %v306
      %v499 = vpop.f32.mrf.mxu0
      %v500 = vadd.f32 %v376, %v499
      %501 = vmatmul.f32.gmra.mxu0 %v307
      %v502 = vpop.f32.mrf.mxu0
      %v503 = vadd.f32 %v376, %v502
      %504 = vdwg.mxu0
      %505 = vmatpush.msra.mxu0 %v371
      %506 = vmatpush.msra.mxu0 %v367
      %507 = vmatpush.msra.mxu0 %v363
      %508 = vmatpush.msra.mxu0 %v359
      %509 = vmatpush.msra.mxu0 %v355
      %510 = vmatpush.msra.mxu0 %v351
      %511 = vmatpush.msra.mxu0 %v347
      %512 = vmatpush.msra.mxu0 %v343
      %513 = vmatpush.msra.mxu0 %v339
      %514 = vmatpush.msra.mxu0 %v335
      %515 = vmatpush.msra.mxu0 %v331
      %516 = vmatpush.msra.mxu0 %v327
      %517 = vmatpush.msra.mxu0 %v323
      %518 = vmatpush.msra.mxu0 %v319
      %519 = vmatpush.msra.mxu0 %v315
      %520 = vmatpush.msra.mxu0 %v311
      %521 = vmatmul.f32.gmra.mxu0 %v300
      %v522 = vpop.f32.mrf.mxu0
      %v523 = vadd.f32 %v377, %v522
      %524 = vmatmul.f32.gmra.mxu0 %v301
      %v525 = vpop.f32.mrf.mxu0
      %v526 = vadd.f32 %v377, %v525
      %527 = vmatmul.f32.gmra.mxu0 %v302
      %v528 = vpop.f32.mrf.mxu0
      %v529 = vadd.f32 %v377, %v528
      %530 = vmatmul.f32.gmra.mxu0 %v303
      %v531 = vpop.f32.mrf.mxu0
      %v532 = vadd.f32 %v377, %v531
      %533 = vmatmul.f32.gmra.mxu0 %v304
      %v534 = vpop.f32.mrf.mxu0
      %v535 = vadd.f32 %v377, %v534
      %536 = vmatmul.f32.gmra.mxu0 %v305
      %v537 = vpop.f32.mrf.mxu0
      %v538 = vadd.f32 %v377, %v537
      %539 = vmatmul.f32.gmra.mxu0 %v306
      %v540 = vpop.f32.mrf.mxu0
      %v541 = vadd.f32 %v377, %v540
      %542 = vmatmul.f32.gmra.mxu0 %v307
      %v543 = vpop.f32.mrf.mxu0
      %v544 = vadd.f32 %v377, %v543
      %545 = vdwg.mxu0
      %546 = vst [vmem:[#allocation4] sm:$0xff] %v400
      %547 = vst [vmem:[#allocation4 + $0x8] sm:$0xff] %v441
      %548 = vst [vmem:[#allocation4 + $0x10] sm:$0xff] %v482
      %549 = vst [vmem:[#allocation4 + $0x18] sm:$0xff] %v523
      %550 = vst [vmem:[#allocation4 + $0x20] sm:$0xff] %v403
      %551 = vst [vmem:[#allocation4 + $0x28] sm:$0xff] %v444
      %552 = vst [vmem:[#allocation4 + $0x30] sm:$0xff] %v485
      %553 = vst [vmem:[#allocation4 + $0x38] sm:$0xff] %v526
      %554 = vst [vmem:[#allocation4 + $0x40] sm:$0xff] %v406
      %555 = vst [vmem:[#allocation4 + $0x48] sm:$0xff] %v447
      %556 = vst [vmem:[#allocation4 + $0x50] sm:$0xff] %v488
      %557 = vst [vmem:[#allocation4 + $0x58] sm:$0xff] %v529
      %558 = vst [vmem:[#allocation4 + $0x60] sm:$0xff] %v409
      %559 = vst [vmem:[#allocation4 + $0x68] sm:$0xff] %v450
      %560 = vst [vmem:[#allocation4 + $0x70] sm:$0xff] %v491
      %561 = vst [vmem:[#allocation4 + $0x78] sm:$0xff] %v532
      %562 = vst [vmem:[#allocation4 + $0x80] sm:$0xff] %v412
      %563 = vst [vmem:[#allocation4 + $0x88] sm:$0xff] %v453
      %564 = vst [vmem:[#allocation4 + $0x90] sm:$0xff] %v494
      %565 = vst [vmem:[#allocation4 + $0x98] sm:$0xff] %v535
      %566 = vst [vmem:[#allocation4 + $0xa0] sm:$0xff] %v415
      %567 = vst [vmem:[#allocation4 + $0xa8] sm:$0xff] %v456
      %568 = vst [vmem:[#allocation4 + $0xb0] sm:$0xff] %v497
      %569 = vst [vmem:[#allocation4 + $0xb8] sm:$0xff] %v538
      %570 = vst [vmem:[#allocation4 + $0xc0] sm:$0xff] %v418
      %571 = vst [vmem:[#allocation4 + $0xc8] sm:$0xff] %v459
      %572 = vst [vmem:[#allocation4 + $0xd0] sm:$0xff] %v500
      %573 = vst [vmem:[#allocation4 + $0xd8] sm:$0xff] %v541
      %574 = vst [vmem:[#allocation4 + $0xe0] sm:$0xff] %v421
      %575 = vst [vmem:[#allocation4 + $0xe8] sm:$0xff] %v462
      %576 = vst [vmem:[#allocation4 + $0xf0] sm:$0xff] %v503
      %577 = vst [vmem:[#allocation4 + $0xf8] sm:$0xff] %v544
      %v578 = vld [vmem:[%s279] sm:$0xff]
      %v579 = vld [vmem:[%s279 + $0x8] sm:$0xff]
      %v580 = vld [vmem:[%s279 + $0x10] sm:$0xff]
      %v581 = vld [vmem:[%s279 + $0x18] sm:$0xff]
      %v582 = vld [vmem:[%s279 + $0x20] sm:$0xff]
      %v583 = vld [vmem:[%s279 + $0x28] sm:$0xff]
      %v584 = vld [vmem:[%s279 + $0x30] sm:$0xff]
      %v585 = vld [vmem:[%s279 + $0x38] sm:$0xff]
      %v586 = vld [vmem:[%s279 + $0x40] sm:$0xff]
      %v587 = vld [vmem:[%s279 + $0x48] sm:$0xff]
      %v588 = vld [vmem:[%s279 + $0x50] sm:$0xff]
      %v589 = vld [vmem:[%s279 + $0x58] sm:$0xff]
      %v590 = vld [vmem:[%s279 + $0x60] sm:$0xff]
      %v591 = vld [vmem:[%s279 + $0x68] sm:$0xff]
      %v592 = vld [vmem:[%s279 + $0x70] sm:$0xff]
      %v593 = vld [vmem:[%s279 + $0x78] sm:$0xff]
      %v594 = vld [vmem:[%s279 + $0x80] sm:$0xff]
      %v595 = vld [vmem:[%s279 + $0x88] sm:$0xff]
      %v596 = vld [vmem:[%s279 + $0x90] sm:$0xff]
      %v597 = vld [vmem:[%s279 + $0x98] sm:$0xff]
      %v598 = vld [vmem:[%s279 + $0xa0] sm:$0xff]
      %v599 = vld [vmem:[%s279 + $0xa8] sm:$0xff]
      %v600 = vld [vmem:[%s279 + $0xb0] sm:$0xff]
      %v601 = vld [vmem:[%s279 + $0xb8] sm:$0xff]
      %v602 = vld [vmem:[%s279 + $0xc0] sm:$0xff]
      %v603 = vld [vmem:[%s279 + $0xc8] sm:$0xff]
      %v604 = vld [vmem:[%s279 + $0xd0] sm:$0xff]
      %v605 = vld [vmem:[%s279 + $0xd8] sm:$0xff]
      %v606 = vld [vmem:[%s279 + $0xe0] sm:$0xff]
      %v607 = vld [vmem:[%s279 + $0xe8] sm:$0xff]
      %v608 = vld [vmem:[%s279 + $0xf0] sm:$0xff]
      %v609 = vld [vmem:[%s279 + $0xf8] sm:$0xff]
      %v610 = vld [vmem:[%s279 + $0x100] sm:$0xff]
      %v611 = vld [vmem:[%s279 + $0x108] sm:$0xff]
      %v612 = vld [vmem:[%s279 + $0x110] sm:$0xff]
      %v613 = vld [vmem:[%s279 + $0x118] sm:$0xff]
      %v614 = vld [vmem:[%s279 + $0x120] sm:$0xff]
      %v615 = vld [vmem:[%s279 + $0x128] sm:$0xff]
      %v616 = vld [vmem:[%s279 + $0x130] sm:$0xff]
      %v617 = vld [vmem:[%s279 + $0x138] sm:$0xff]
      %v618 = vld [vmem:[%s279 + $0x140] sm:$0xff]
      %v619 = vld [vmem:[%s279 + $0x148] sm:$0xff]
      %v620 = vld [vmem:[%s279 + $0x150] sm:$0xff]
      %v621 = vld [vmem:[%s279 + $0x158] sm:$0xff]
      %v622 = vld [vmem:[%s279 + $0x160] sm:$0xff]
      %v623 = vld [vmem:[%s279 + $0x168] sm:$0xff]
      %v624 = vld [vmem:[%s279 + $0x170] sm:$0xff]
      %v625 = vld [vmem:[%s279 + $0x178] sm:$0xff]
      %v626 = vld [vmem:[%s279 + $0x180] sm:$0xff]
      %v627 = vld [vmem:[%s279 + $0x188] sm:$0xff]
      %v628 = vld [vmem:[%s279 + $0x190] sm:$0xff]
      %v629 = vld [vmem:[%s279 + $0x198] sm:$0xff]
      %v630 = vld [vmem:[%s279 + $0x1a0] sm:$0xff]
      %v631 = vld [vmem:[%s279 + $0x1a8] sm:$0xff]
      %v632 = vld [vmem:[%s279 + $0x1b0] sm:$0xff]
      %v633 = vld [vmem:[%s279 + $0x1b8] sm:$0xff]
      %v634 = vld [vmem:[%s279 + $0x1c0] sm:$0xff]
      %v635 = vld [vmem:[%s279 + $0x1c8] sm:$0xff]
      %v636 = vld [vmem:[%s279 + $0x1d0] sm:$0xff]
      %v637 = vld [vmem:[%s279 + $0x1d8] sm:$0xff]
      %v638 = vld [vmem:[%s279 + $0x1e0] sm:$0xff]
      %v639 = vld [vmem:[%s279 + $0x1e8] sm:$0xff]
      %v640 = vld [vmem:[%s279 + $0x1f0] sm:$0xff]
      %v641 = vld [vmem:[%s279 + $0x1f8] sm:$0xff]
      %v642 = vld [vmem:[#allocation2] sm:$0xff]
      %v643 = vld [vmem:[#allocation3] sm:$0xff]
      %v644 = vld [vmem:[#allocation4] sm:$0xff]
      %v645 = vld [vmem:[#allocation4 + $0x8] sm:$0xff]
      %v646 = vld [vmem:[#allocation4 + $0x10] sm:$0xff]
      %v647 = vld [vmem:[#allocation4 + $0x18] sm:$0xff]
      %648 = vmatpush.msra.mxu0 %v638
      %649 = vmatpush.msra.mxu0 %v634
      %650 = vmatpush.msra.mxu0 %v630
      %651 = vmatpush.msra.mxu0 %v626
      %652 = vmatpush.msra.mxu0 %v622
      %653 = vmatpush.msra.mxu0 %v618
      %654 = vmatpush.msra.mxu0 %v614
      %655 = vmatpush.msra.mxu0 %v610
      %656 = vmatpush.msra.mxu0 %v606
      %657 = vmatpush.msra.mxu0 %v602
      %658 = vmatpush.msra.mxu0 %v598
      %659 = vmatpush.msra.mxu0 %v594
      %660 = vmatpush.msra.mxu0 %v590
      %661 = vmatpush.msra.mxu0 %v586
      %662 = vmatpush.msra.mxu0 %v582
      %663 = vmatpush.msra.mxu0 %v578
      %664 = vmatmul.f32.gmra.mxu0 %v642
      %v665 = vpop.f32.mrf.mxu0
      %v666 = vadd.f32 0.0, %v665
      %667 = vdwg.mxu0
      %668 = vmatpush.msra.mxu0 %v639
      %669 = vmatpush.msra.mxu0 %v635
      %670 = vmatpush.msra.mxu0 %v631
      %671 = vmatpush.msra.mxu0 %v627
      %672 = vmatpush.msra.mxu0 %v623
      %673 = vmatpush.msra.mxu0 %v619
      %674 = vmatpush.msra.mxu0 %v615
      %675 = vmatpush.msra.mxu0 %v611
      %676 = vmatpush.msra.mxu0 %v607
      %677 = vmatpush.msra.mxu0 %v603
      %678 = vmatpush.msra.mxu0 %v599
      %679 = vmatpush.msra.mxu0 %v595
      %680 = vmatpush.msra.mxu0 %v591
      %681 = vmatpush.msra.mxu0 %v587
      %682 = vmatpush.msra.mxu0 %v583
      %683 = vmatpush.msra.mxu0 %v579
      %684 = vmatmul.f32.gmra.mxu0 %v642
      %v685 = vpop.f32.mrf.mxu0
      %v686 = vadd.f32 0.0, %v685
      %687 = vdwg.mxu0
      %688 = vmatpush.msra.mxu0 %v640
      %689 = vmatpush.msra.mxu0 %v636
      %690 = vmatpush.msra.mxu0 %v632
      %691 = vmatpush.msra.mxu0 %v628
      %692 = vmatpush.msra.mxu0 %v624
      %693 = vmatpush.msra.mxu0 %v620
      %694 = vmatpush.msra.mxu0 %v616
      %695 = vmatpush.msra.mxu0 %v612
      %696 = vmatpush.msra.mxu0 %v608
      %697 = vmatpush.msra.mxu0 %v604
      %698 = vmatpush.msra.mxu0 %v600
      %699 = vmatpush.msra.mxu0 %v596
      %700 = vmatpush.msra.mxu0 %v592
      %701 = vmatpush.msra.mxu0 %v588
      %702 = vmatpush.msra.mxu0 %v584
      %703 = vmatpush.msra.mxu0 %v580
      %704 = vmatmul.f32.gmra.mxu0 %v642
      %v705 = vpop.f32.mrf.mxu0
      %v706 = vadd.f32 0.0, %v705
      %707 = vdwg.mxu0
      %708 = vmatpush.msra.mxu0 %v641
      %709 = vmatpush.msra.mxu0 %v637
      %710 = vmatpush.msra.mxu0 %v633
      %711 = vmatpush.msra.mxu0 %v629
      %712 = vmatpush.msra.mxu0 %v625
      %713 = vmatpush.msra.mxu0 %v621
      %714 = vmatpush.msra.mxu0 %v617
      %715 = vmatpush.msra.mxu0 %v613
      %716 = vmatpush.msra.mxu0 %v609
      %717 = vmatpush.msra.mxu0 %v605
      %718 = vmatpush.msra.mxu0 %v601
      %719 = vmatpush.msra.mxu0 %v597
      %720 = vmatpush.msra.mxu0 %v593
      %721 = vmatpush.msra.mxu0 %v589
      %722 = vmatpush.msra.mxu0 %v585
      %723 = vmatpush.msra.mxu0 %v581
      %724 = vmatmul.f32.gmra.mxu0 %v642
      %v725 = vpop.f32.mrf.mxu0
      %v726 = vadd.f32 0.0, %v725
      %727 = vdwg.mxu0
      %v728 = vadd.f32 %v644, %v666
      %v729 = vadd.f32 %v645, %v686
      %v730 = vadd.f32 %v646, %v706
      %v731 = vadd.f32 %v647, %v726
      %v732 = vxor.u32 %v728, 2147483648
      %v733 = vmul.f32 %v732, 1.442695
      %v734 = vpow.pop %v733
      %v735 = vadd.f32 %v734, 1.0
      %v736 = vrcp.pop %v735
      %v737 = vmul.f32 %v735, %v736
      %v738 = vsub.f32 1.0, %v737
      %v739 = vmul.f32 %v736, %v738
      %v740 = vadd.f32 %v736, %v739
      %vm741 = vweird.f32 %v735
      %vm742 = vweird.f32 %v736
      %vm743 = vmor %vm741, %vm742
      %v744 = vsel %vm743, %v736, %v740
      %v745 = vand.u32 2147483647, %v735
      %vm746 = vcmp.eq.f32.partialorder %v745, 8.507059e+37
      %v747 = vand.u32 %v735, 2147483648
      %v748 = vor.u32 1.1754944e-38, %v747
      %v749 = vsel %vm746, %v748, %v744
      %v750 = vmul.f32 1.0, %v749
      %v751 = vxor.u32 %v729, 2147483648
      %v752 = vmul.f32 %v751, 1.442695
      %v753 = vpow.pop %v752
      %v754 = vadd.f32 %v753, 1.0
      %v755 = vrcp.pop %v754
      %v756 = vmul.f32 %v754, %v755
      %v757 = vsub.f32 1.0, %v756
      %v758 = vmul.f32 %v755, %v757
      %v759 = vadd.f32 %v755, %v758
      %vm760 = vweird.f32 %v754
      %vm761 = vweird.f32 %v755
      %vm762 = vmor %vm760, %vm761
      %v763 = vsel %vm762, %v755, %v759
      %v764 = vand.u32 2147483647, %v754
      %vm765 = vcmp.eq.f32.partialorder %v764, 8.507059e+37
      %v766 = vand.u32 %v754, 2147483648
      %v767 = vor.u32 1.1754944e-38, %v766
      %v768 = vsel %vm765, %v767, %v763
      %v769 = vmul.f32 1.0, %v768
      %v770 = vtanh.pop %v730
      %v771 = vxor.u32 %v731, 2147483648
      %v772 = vmul.f32 %v771, 1.442695
      %v773 = vpow.pop %v772
      %v774 = vadd.f32 %v773, 1.0
      %v775 = vrcp.pop %v774
      %v776 = vmul.f32 %v774, %v775
      %v777 = vsub.f32 1.0, %v776
      %v778 = vmul.f32 %v775, %v777
      %v779 = vadd.f32 %v775, %v778
      %vm780 = vweird.f32 %v774
      %vm781 = vweird.f32 %v775
      %vm782 = vmor %vm780, %vm781
      %v783 = vsel %vm782, %v775, %v779
      %v784 = vand.u32 2147483647, %v774
      %vm785 = vcmp.eq.f32.partialorder %v784, 8.507059e+37
      %v786 = vand.u32 %v774, 2147483648
      %v787 = vor.u32 1.1754944e-38, %v786
      %v788 = vsel %vm785, %v787, %v783
      %v789 = vmul.f32 1.0, %v788
      %v790 = vmul.f32 %v769, %v643
      %v791 = vmul.f32 %v750, %v770
      %v792 = vadd.f32 %v790, %v791
      %v793 = vtanh.pop %v792
      %v794 = vmul.f32 %v789, %v793
      %795 = vst [vmem:[%s292] sm:$0xff] %v794
      %v796 = vld [vmem:[#allocation4 + $0x20] sm:$0xff]
      %v797 = vld [vmem:[#allocation4 + $0x28] sm:$0xff]
      %v798 = vld [vmem:[#allocation4 + $0x30] sm:$0xff]
      %v799 = vld [vmem:[#allocation4 + $0x38] sm:$0xff]
      %800 = vmatpush.msra.mxu0 %v638
      %801 = vmatpush.msra.mxu0 %v634
      %802 = vmatpush.msra.mxu0 %v630
      %803 = vmatpush.msra.mxu0 %v626
      %804 = vmatpush.msra.mxu0 %v622
      %805 = vmatpush.msra.mxu0 %v618
      %806 = vmatpush.msra.mxu0 %v614
      %807 = vmatpush.msra.mxu0 %v610
      %808 = vmatpush.msra.mxu0 %v606
      %809 = vmatpush.msra.mxu0 %v602
      %810 = vmatpush.msra.mxu0 %v598
      %811 = vmatpush.msra.mxu0 %v594
      %812 = vmatpush.msra.mxu0 %v590
      %813 = vmatpush.msra.mxu0 %v586
      %814 = vmatpush.msra.mxu0 %v582
      %815 = vmatpush.msra.mxu0 %v578
      %816 = vmatmul.f32.gmra.mxu0 %v794
      %v817 = vpop.f32.mrf.mxu0
      %v818 = vadd.f32 0.0, %v817
      %819 = vdwg.mxu0
      %820 = vmatpush.msra.mxu0 %v639
      %821 = vmatpush.msra.mxu0 %v635
      %822 = vmatpush.msra.mxu0 %v631
      %823 = vmatpush.msra.mxu0 %v627
      %824 = vmatpush.msra.mxu0 %v623
      %825 = vmatpush.msra.mxu0 %v619
      %826 = vmatpush.msra.mxu0 %v615
      %827 = vmatpush.msra.mxu0 %v611
      %828 = vmatpush.msra.mxu0 %v607
      %829 = vmatpush.msra.mxu0 %v603
      %830 = vmatpush.msra.mxu0 %v599
      %831 = vmatpush.msra.mxu0 %v595
      %832 = vmatpush.msra.mxu0 %v591
      %833 = vmatpush.msra.mxu0 %v587
      %834 = vmatpush.msra.mxu0 %v583
      %835 = vmatpush.msra.mxu0 %v579
      %836 = vmatmul.f32.gmra.mxu0 %v794
      %v837 = vpop.f32.mrf.mxu0
      %v838 = vadd.f32 0.0, %v837
      %839 = vdwg.mxu0
      %840 = vmatpush.msra.mxu0 %v640
      %841 = vmatpush.msra.mxu0 %v636
      %842 = vmatpush.msra.mxu0 %v632
      %843 = vmatpush.msra.mxu0 %v628
      %844 = vmatpush.msra.mxu0 %v624
      %845 = vmatpush.msra.mxu0 %v620
      %846 = vmatpush.msra.mxu0 %v616
      %847 = vmatpush.msra.mxu0 %v612
      %848 = vmatpush.msra.mxu0 %v608
      %849 = vmatpush.msra.mxu0 %v604
      %850 = vmatpush.msra.mxu0 %v600
      %851 = vmatpush.msra.mxu0 %v596
      %852 = vmatpush.msra.mxu0 %v592
      %853 = vmatpush.msra.mxu0 %v588
      %854 = vmatpush.msra.mxu0 %v584
      %855 = vmatpush.msra.mxu0 %v580
      %856 = vmatmul.f32.gmra.mxu0 %v794
      %v857 = vpop.f32.mrf.mxu0
      %v858 = vadd.f32 0.0, %v857
      %859 = vdwg.mxu0
      %860 = vmatpush.msra.mxu0 %v641
      %861 = vmatpush.msra.mxu0 %v637
      %862 = vmatpush.msra.mxu0 %v633
      %863 = vmatpush.msra.mxu0 %v629
      %864 = vmatpush.msra.mxu0 %v625
      %865 = vmatpush.msra.mxu0 %v621
      %866 = vmatpush.msra.mxu0 %v617
      %867 = vmatpush.msra.mxu0 %v613
      %868 = vmatpush.msra.mxu0 %v609
      %869 = vmatpush.msra.mxu0 %v605
      %870 = vmatpush.msra.mxu0 %v601
      %871 = vmatpush.msra.mxu0 %v597
      %872 = vmatpush.msra.mxu0 %v593
      %873 = vmatpush.msra.mxu0 %v589
      %874 = vmatpush.msra.mxu0 %v585
      %875 = vmatpush.msra.mxu0 %v581
      %876 = vmatmul.f32.gmra.mxu0 %v794
      %v877 = vpop.f32.mrf.mxu0
      %v878 = vadd.f32 0.0, %v877
      %879 = vdwg.mxu0
      %v880 = vadd.f32 %v796, %v818
      %v881 = vadd.f32 %v797, %v838
      %v882 = vadd.f32 %v798, %v858
      %v883 = vadd.f32 %v799, %v878
      %v884 = vxor.u32 %v880, 2147483648
      %v885 = vmul.f32 %v884, 1.442695
      %v886 = vpow.pop %v885
      %v887 = vadd.f32 %v886, 1.0
      %v888 = vrcp.pop %v887
      %v889 = vmul.f32 %v887, %v888
      %v890 = vsub.f32 1.0, %v889
      %v891 = vmul.f32 %v888, %v890
      %v892 = vadd.f32 %v888, %v891
      %vm893 = vweird.f32 %v887
      %vm894 = vweird.f32 %v888
      %vm895 = vmor %vm893, %vm894
      %v896 = vsel %vm895, %v888, %v892
      %v897 = vand.u32 2147483647, %v887
      %vm898 = vcmp.eq.f32.partialorder %v897, 8.507059e+37
      %v899 = vand.u32 %v887, 2147483648
      %v900 = vor.u32 1.1754944e-38, %v899
      %v901 = vsel %vm898, %v900, %v896
      %v902 = vmul.f32 1.0, %v901
      %v903 = vxor.u32 %v881, 2147483648
      %v904 = vmul.f32 %v903, 1.442695
      %v905 = vpow.pop %v904
      %v906 = vadd.f32 %v905, 1.0
      %v907 = vrcp.pop %v906
      %v908 = vmul.f32 %v906, %v907
      %v909 = vsub.f32 1.0, %v908
      %v910 = vmul.f32 %v907, %v909
      %v911 = vadd.f32 %v907, %v910
      %vm912 = vweird.f32 %v906
      %vm913 = vweird.f32 %v907
      %vm914 = vmor %vm912, %vm913
      %v915 = vsel %vm914, %v907, %v911
      %v916 = vand.u32 2147483647, %v906
      %vm917 = vcmp.eq.f32.partialorder %v916, 8.507059e+37
      %v918 = vand.u32 %v906, 2147483648
      %v919 = vor.u32 1.1754944e-38, %v918
      %v920 = vsel %vm917, %v919, %v915
      %v921 = vmul.f32 1.0, %v920
      %v922 = vtanh.pop %v882
      %v923 = vxor.u32 %v883, 2147483648
      %v924 = vmul.f32 %v923, 1.442695
      %v925 = vpow.pop %v924
      %v926 = vadd.f32 %v925, 1.0
      %v927 = vrcp.pop %v926
      %v928 = vmul.f32 %v926, %v927
      %v929 = vsub.f32 1.0, %v928
      %v930 = vmul.f32 %v927, %v929
      %v931 = vadd.f32 %v927, %v930
      %vm932 = vweird.f32 %v926
      %vm933 = vweird.f32 %v927
      %vm934 = vmor %vm932, %vm933
      %v935 = vsel %vm934, %v927, %v931
      %v936 = vand.u32 2147483647, %v926
      %vm937 = vcmp.eq.f32.partialorder %v936, 8.507059e+37
      %v938 = vand.u32 %v926, 2147483648
      %v939 = vor.u32 1.1754944e-38, %v938
      %v940 = vsel %vm937, %v939, %v935
      %v941 = vmul.f32 1.0, %v940
      %v942 = vmul.f32 %v921, %v792
      %v943 = vmul.f32 %v902, %v922
      %v944 = vadd.f32 %v942, %v943
      %v945 = vtanh.pop %v944
      %v946 = vmul.f32 %v941, %v945
      %947 = vst [vmem:[%s292 + $0x8] sm:$0xff] %v946
      %v948 = vld [vmem:[#allocation4 + $0x40] sm:$0xff]
      %v949 = vld [vmem:[#allocation4 + $0x48] sm:$0xff]
      %v950 = vld [vmem:[#allocation4 + $0x50] sm:$0xff]
      %v951 = vld [vmem:[#allocation4 + $0x58] sm:$0xff]
      %952 = vmatpush.msra.mxu0 %v638
      %953 = vmatpush.msra.mxu0 %v634
      %954 = vmatpush.msra.mxu0 %v630
      %955 = vmatpush.msra.mxu0 %v626
      %956 = vmatpush.msra.mxu0 %v622
      %957 = vmatpush.msra.mxu0 %v618
      %958 = vmatpush.msra.mxu0 %v614
      %959 = vmatpush.msra.mxu0 %v610
      %960 = vmatpush.msra.mxu0 %v606
      %961 = vmatpush.msra.mxu0 %v602
      %962 = vmatpush.msra.mxu0 %v598
      %963 = vmatpush.msra.mxu0 %v594
      %964 = vmatpush.msra.mxu0 %v590
      %965 = vmatpush.msra.mxu0 %v586
      %966 = vmatpush.msra.mxu0 %v582
      %967 = vmatpush.msra.mxu0 %v578
      %968 = vmatmul.f32.gmra.mxu0 %v946
      %v969 = vpop.f32.mrf.mxu0
      %v970 = vadd.f32 0.0, %v969
      %971 = vdwg.mxu0
      %972 = vmatpush.msra.mxu0 %v639
      %973 = vmatpush.msra.mxu0 %v635
      %974 = vmatpush.msra.mxu0 %v631
      %975 = vmatpush.msra.mxu0 %v627
      %976 = vmatpush.msra.mxu0 %v623
      %977 = vmatpush.msra.mxu0 %v619
      %978 = vmatpush.msra.mxu0 %v615
      %979 = vmatpush.msra.mxu0 %v611
      %980 = vmatpush.msra.mxu0 %v607
      %981 = vmatpush.msra.mxu0 %v603
      %982 = vmatpush.msra.mxu0 %v599
      %983 = vmatpush.msra.mxu0 %v595
      %984 = vmatpush.msra.mxu0 %v591
      %985 = vmatpush.msra.mxu0 %v587
      %986 = vmatpush.msra.mxu0 %v583
      %987 = vmatpush.msra.mxu0 %v579
      %988 = vmatmul.f32.gmra.mxu0 %v946
      %v989 = vpop.f32.mrf.mxu0
      %v990 = vadd.f32 0.0, %v989
      %991 = vdwg.mxu0
      %992 = vmatpush.msra.mxu0 %v640
      %993 = vmatpush.msra.mxu0 %v636
      %994 = vmatpush.msra.mxu0 %v632
      %995 = vmatpush.msra.mxu0 %v628
      %996 = vmatpush.msra.mxu0 %v624
      %997 = vmatpush.msra.mxu0 %v620
      %998 = vmatpush.msra.mxu0 %v616
      %999 = vmatpush.msra.mxu0 %v612
      %1000 = vmatpush.msra.mxu0 %v608
      %1001 = vmatpush.msra.mxu0 %v604
      %1002 = vmatpush.msra.mxu0 %v600
      %1003 = vmatpush.msra.mxu0 %v596
      %1004 = vmatpush.msra.mxu0 %v592
      %1005 = vmatpush.msra.mxu0 %v588
      %1006 = vmatpush.msra.mxu0 %v584
      %1007 = vmatpush.msra.mxu0 %v580
      %1008 = vmatmul.f32.gmra.mxu0 %v946
      %v1009 = vpop.f32.mrf.mxu0
      %v1010 = vadd.f32 0.0, %v1009
      %1011 = vdwg.mxu0
      %1012 = vmatpush.msra.mxu0 %v641
      %1013 = vmatpush.msra.mxu0 %v637
      %1014 = vmatpush.msra.mxu0 %v633
      %1015 = vmatpush.msra.mxu0 %v629
      %1016 = vmatpush.msra.mxu0 %v625
      %1017 = vmatpush.msra.mxu0 %v621
      %1018 = vmatpush.msra.mxu0 %v617
      %1019 = vmatpush.msra.mxu0 %v613
      %1020 = vmatpush.msra.mxu0 %v609
      %1021 = vmatpush.msra.mxu0 %v605
      %1022 = vmatpush.msra.mxu0 %v601
      %1023 = vmatpush.msra.mxu0 %v597
      %1024 = vmatpush.msra.mxu0 %v593
      %1025 = vmatpush.msra.mxu0 %v589
      %1026 = vmatpush.msra.mxu0 %v585
      %1027 = vmatpush.msra.mxu0 %v581
      %1028 = vmatmul.f32.gmra.mxu0 %v946
      %v1029 = vpop.f32.mrf.mxu0
      %v1030 = vadd.f32 0.0, %v1029
      %1031 = vdwg.mxu0
      %v1032 = vadd.f32 %v948, %v970
      %v1033 = vadd.f32 %v949, %v990
      %v1034 = vadd.f32 %v950, %v1010
      %v1035 = vadd.f32 %v951, %v1030
      %v1036 = vxor.u32 %v1032, 2147483648
      %v1037 = vmul.f32 %v1036, 1.442695
      %v1038 = vpow.pop %v1037
      %v1039 = vadd.f32 %v1038, 1.0
      %v1040 = vrcp.pop %v1039
      %v1041 = vmul.f32 %v1039, %v1040
      %v1042 = vsub.f32 1.0, %v1041
      %v1043 = vmul.f32 %v1040, %v1042
      %v1044 = vadd.f32 %v1040, %v1043
      %vm1045 = vweird.f32 %v1039
      %vm1046 = vweird.f32 %v1040
      %vm1047 = vmor %vm1045, %vm1046
      %v1048 = vsel %vm1047, %v1040, %v1044
      %v1049 = vand.u32 2147483647, %v1039
      %vm1050 = vcmp.eq.f32.partialorder %v1049, 8.507059e+37
      %v1051 = vand.u32 %v1039, 2147483648
      %v1052 = vor.u32 1.1754944e-38, %v1051
      %v1053 = vsel %vm1050, %v1052, %v1048
      %v1054 = vmul.f32 1.0, %v1053
      %v1055 = vxor.u32 %v1033, 2147483648
      %v1056 = vmul.f32 %v1055, 1.442695
      %v1057 = vpow.pop %v1056
      %v1058 = vadd.f32 %v1057, 1.0
      %v1059 = vrcp.pop %v1058
      %v1060 = vmul.f32 %v1058, %v1059
      %v1061 = vsub.f32 1.0, %v1060
      %v1062 = vmul.f32 %v1059, %v1061
      %v1063 = vadd.f32 %v1059, %v1062
      %vm1064 = vweird.f32 %v1058
      %vm1065 = vweird.f32 %v1059
      %vm1066 = vmor %vm1064, %vm1065
      %v1067 = vsel %vm1066, %v1059, %v1063
      %v1068 = vand.u32 2147483647, %v1058
      %vm1069 = vcmp.eq.f32.partialorder %v1068, 8.507059e+37
      %v1070 = vand.u32 %v1058, 2147483648
      %v1071 = vor.u32 1.1754944e-38, %v1070
      %v1072 = vsel %vm1069, %v1071, %v1067
      %v1073 = vmul.f32 1.0, %v1072
      %v1074 = vtanh.pop %v1034
      %v1075 = vxor.u32 %v1035, 2147483648
      %v1076 = vmul.f32 %v1075, 1.442695
      %v1077 = vpow.pop %v1076
      %v1078 = vadd.f32 %v1077, 1.0
      %v1079 = vrcp.pop %v1078
      %v1080 = vmul.f32 %v1078, %v1079
      %v1081 = vsub.f32 1.0, %v1080
      %v1082 = vmul.f32 %v1079, %v1081
      %v1083 = vadd.f32 %v1079, %v1082
      %vm1084 = vweird.f32 %v1078
      %vm1085 = vweird.f32 %v1079
      %vm1086 = vmor %vm1084, %vm1085
      %v1087 = vsel %vm1086, %v1079, %v1083
      %v1088 = vand.u32 2147483647, %v1078
      %vm1089 = vcmp.eq.f32.partialorder %v1088, 8.507059e+37
      %v1090 = vand.u32 %v1078, 2147483648
      %v1091 = vor.u32 1.1754944e-38, %v1090
      %v1092 = vsel %vm1089, %v1091, %v1087
      %v1093 = vmul.f32 1.0, %v1092
      %v1094 = vmul.f32 %v1073, %v944
      %v1095 = vmul.f32 %v1054, %v1074
      %v1096 = vadd.f32 %v1094, %v1095
      %v1097 = vtanh.pop %v1096
      %v1098 = vmul.f32 %v1093, %v1097
      %1099 = vst [vmem:[%s292 + $0x10] sm:$0xff] %v1098
      %v1100 = vld [vmem:[#allocation4 + $0x60] sm:$0xff]
      %v1101 = vld [vmem:[#allocation4 + $0x68] sm:$0xff]
      %v1102 = vld [vmem:[#allocation4 + $0x70] sm:$0xff]
      %v1103 = vld [vmem:[#allocation4 + $0x78] sm:$0xff]
      %1104 = vmatpush.msra.mxu0 %v638
      %1105 = vmatpush.msra.mxu0 %v634
      %1106 = vmatpush.msra.mxu0 %v630
      %1107 = vmatpush.msra.mxu0 %v626
      %1108 = vmatpush.msra.mxu0 %v622
      %1109 = vmatpush.msra.mxu0 %v618
      %1110 = vmatpush.msra.mxu0 %v614
      %1111 = vmatpush.msra.mxu0 %v610
      %1112 = vmatpush.msra.mxu0 %v606
      %1113 = vmatpush.msra.mxu0 %v602
      %1114 = vmatpush.msra.mxu0 %v598
      %1115 = vmatpush.msra.mxu0 %v594
      %1116 = vmatpush.msra.mxu0 %v590
      %1117 = vmatpush.msra.mxu0 %v586
      %1118 = vmatpush.msra.mxu0 %v582
      %1119 = vmatpush.msra.mxu0 %v578
      %1120 = vmatmul.f32.gmra.mxu0 %v1098
      %v1121 = vpop.f32.mrf.mxu0
      %v1122 = vadd.f32 0.0, %v1121
      %1123 = vdwg.mxu0
      %1124 = vmatpush.msra.mxu0 %v639
      %1125 = vmatpush.msra.mxu0 %v635
      %1126 = vmatpush.msra.mxu0 %v631
      %1127 = vmatpush.msra.mxu0 %v627
      %1128 = vmatpush.msra.mxu0 %v623
      %1129 = vmatpush.msra.mxu0 %v619
      %1130 = vmatpush.msra.mxu0 %v615
      %1131 = vmatpush.msra.mxu0 %v611
      %1132 = vmatpush.msra.mxu0 %v607
      %1133 = vmatpush.msra.mxu0 %v603
      %1134 = vmatpush.msra.mxu0 %v599
      %1135 = vmatpush.msra.mxu0 %v595
      %1136 = vmatpush.msra.mxu0 %v591
      %1137 = vmatpush.msra.mxu0 %v587
      %1138 = vmatpush.msra.mxu0 %v583
      %1139 = vmatpush.msra.mxu0 %v579
      %1140 = vmatmul.f32.gmra.mxu0 %v1098
      %v1141 = vpop.f32.mrf.mxu0
      %v1142 = vadd.f32 0.0, %v1141
      %1143 = vdwg.mxu0
      %1144 = vmatpush.msra.mxu0 %v640
      %1145 = vmatpush.msra.mxu0 %v636
      %1146 = vmatpush.msra.mxu0 %v632
      %1147 = vmatpush.msra.mxu0 %v628
      %1148 = vmatpush.msra.mxu0 %v624
      %1149 = vmatpush.msra.mxu0 %v620
      %1150 = vmatpush.msra.mxu0 %v616
      %1151 = vmatpush.msra.mxu0 %v612
      %1152 = vmatpush.msra.mxu0 %v608
      %1153 = vmatpush.msra.mxu0 %v604
      %1154 = vmatpush.msra.mxu0 %v600
      %1155 = vmatpush.msra.mxu0 %v596
      %1156 = vmatpush.msra.mxu0 %v592
      %1157 = vmatpush.msra.mxu0 %v588
      %1158 = vmatpush.msra.mxu0 %v584
      %1159 = vmatpush.msra.mxu0 %v580
      %1160 = vmatmul.f32.gmra.mxu0 %v1098
      %v1161 = vpop.f32.mrf.mxu0
      %v1162 = vadd.f32 0.0, %v1161
      %1163 = vdwg.mxu0
      %1164 = vmatpush.msra.mxu0 %v641
      %1165 = vmatpush.msra.mxu0 %v637
      %1166 = vmatpush.msra.mxu0 %v633
      %1167 = vmatpush.msra.mxu0 %v629
      %1168 = vmatpush.msra.mxu0 %v625
      %1169 = vmatpush.msra.mxu0 %v621
      %1170 = vmatpush.msra.mxu0 %v617
      %1171 = vmatpush.msra.mxu0 %v613
      %1172 = vmatpush.msra.mxu0 %v609
      %1173 = vmatpush.msra.mxu0 %v605
      %1174 = vmatpush.msra.mxu0 %v601
      %1175 = vmatpush.msra.mxu0 %v597
      %1176 = vmatpush.msra.mxu0 %v593
      %1177 = vmatpush.msra.mxu0 %v589
      %1178 = vmatpush.msra.mxu0 %v585
      %1179 = vmatpush.msra.mxu0 %v581
      %1180 = vmatmul.f32.gmra.mxu0 %v1098
      %v1181 = vpop.f32.mrf.mxu0
      %v1182 = vadd.f32 0.0, %v1181
      %1183 = vdwg.mxu0
      %v1184 = vadd.f32 %v1100, %v1122
      %v1185 = vadd.f32 %v1101, %v1142
      %v1186 = vadd.f32 %v1102, %v1162
      %v1187 = vadd.f32 %v1103, %v1182
      %v1188 = vxor.u32 %v1184, 2147483648
      %v1189 = vmul.f32 %v1188, 1.442695
      %v1190 = vpow.pop %v1189
      %v1191 = vadd.f32 %v1190, 1.0
      %v1192 = vrcp.pop %v1191
      %v1193 = vmul.f32 %v1191, %v1192
      %v1194 = vsub.f32 1.0, %v1193
      %v1195 = vmul.f32 %v1192, %v1194
      %v1196 = vadd.f32 %v1192, %v1195
      %vm1197 = vweird.f32 %v1191
      %vm1198 = vweird.f32 %v1192
      %vm1199 = vmor %vm1197, %vm1198
      %v1200 = vsel %vm1199, %v1192, %v1196
      %v1201 = vand.u32 2147483647, %v1191
      %vm1202 = vcmp.eq.f32.partialorder %v1201, 8.507059e+37
      %v1203 = vand.u32 %v1191, 2147483648
      %v1204 = vor.u32 1.1754944e-38, %v1203
      %v1205 = vsel %vm1202, %v1204, %v1200
      %v1206 = vmul.f32 1.0, %v1205
      %v1207 = vxor.u32 %v1185, 2147483648
      %v1208 = vmul.f32 %v1207, 1.442695
      %v1209 = vpow.pop %v1208
      %v1210 = vadd.f32 %v1209, 1.0
      %v1211 = vrcp.pop %v1210
      %v1212 = vmul.f32 %v1210, %v1211
      %v1213 = vsub.f32 1.0, %v1212
      %v1214 = vmul.f32 %v1211, %v1213
      %v1215 = vadd.f32 %v1211, %v1214
      %vm1216 = vweird.f32 %v1210
      %vm1217 = vweird.f32 %v1211
      %vm1218 = vmor %vm1216, %vm1217
      %v1219 = vsel %vm1218, %v1211, %v1215
      %v1220 = vand.u32 2147483647, %v1210
      %vm1221 = vcmp.eq.f32.partialorder %v1220, 8.507059e+37
      %v1222 = vand.u32 %v1210, 2147483648
      %v1223 = vor.u32 1.1754944e-38, %v1222
      %v1224 = vsel %vm1221, %v1223, %v1219
      %v1225 = vmul.f32 1.0, %v1224
      %v1226 = vtanh.pop %v1186
      %v1227 = vxor.u32 %v1187, 2147483648
      %v1228 = vmul.f32 %v1227, 1.442695
      %v1229 = vpow.pop %v1228
      %v1230 = vadd.f32 %v1229, 1.0
      %v1231 = vrcp.pop %v1230
      %v1232 = vmul.f32 %v1230, %v1231
      %v1233 = vsub.f32 1.0, %v1232
      %v1234 = vmul.f32 %v1231, %v1233
      %v1235 = vadd.f32 %v1231, %v1234
      %vm1236 = vweird.f32 %v1230
      %vm1237 = vweird.f32 %v1231
      %vm1238 = vmor %vm1236, %vm1237
      %v1239 = vsel %vm1238, %v1231, %v1235
      %v1240 = vand.u32 2147483647, %v1230
      %vm1241 = vcmp.eq.f32.partialorder %v1240, 8.507059e+37
      %v1242 = vand.u32 %v1230, 2147483648
      %v1243 = vor.u32 1.1754944e-38, %v1242
      %v1244 = vsel %vm1241, %v1243, %v1239
      %v1245 = vmul.f32 1.0, %v1244
      %v1246 = vmul.f32 %v1225, %v1096
      %v1247 = vmul.f32 %v1206, %v1226
      %v1248 = vadd.f32 %v1246, %v1247
      %v1249 = vtanh.pop %v1248
      %v1250 = vmul.f32 %v1245, %v1249
      %1251 = vst [vmem:[%s292 + $0x18] sm:$0xff] %v1250
      %v1252 = vld [vmem:[#allocation4 + $0x80] sm:$0xff]
      %v1253 = vld [vmem:[#allocation4 + $0x88] sm:$0xff]
      %v1254 = vld [vmem:[#allocation4 + $0x90] sm:$0xff]
      %v1255 = vld [vmem:[#allocation4 + $0x98] sm:$0xff]
      %1256 = vmatpush.msra.mxu0 %v638
      %1257 = vmatpush.msra.mxu0 %v634
      %1258 = vmatpush.msra.mxu0 %v630
      %1259 = vmatpush.msra.mxu0 %v626
      %1260 = vmatpush.msra.mxu0 %v622
      %1261 = vmatpush.msra.mxu0 %v618
      %1262 = vmatpush.msra.mxu0 %v614
      %1263 = vmatpush.msra.mxu0 %v610
      %1264 = vmatpush.msra.mxu0 %v606
      %1265 = vmatpush.msra.mxu0 %v602
      %1266 = vmatpush.msra.mxu0 %v598
      %1267 = vmatpush.msra.mxu0 %v594
      %1268 = vmatpush.msra.mxu0 %v590
      %1269 = vmatpush.msra.mxu0 %v586
      %1270 = vmatpush.msra.mxu0 %v582
      %1271 = vmatpush.msra.mxu0 %v578
      %1272 = vmatmul.f32.gmra.mxu0 %v1250
      %v1273 = vpop.f32.mrf.mxu0
      %v1274 = vadd.f32 0.0, %v1273
      %1275 = vdwg.mxu0
      %1276 = vmatpush.msra.mxu0 %v639
      %1277 = vmatpush.msra.mxu0 %v635
      %1278 = vmatpush.msra.mxu0 %v631
      %1279 = vmatpush.msra.mxu0 %v627
      %1280 = vmatpush.msra.mxu0 %v623
      %1281 = vmatpush.msra.mxu0 %v619
      %1282 = vmatpush.msra.mxu0 %v615
      %1283 = vmatpush.msra.mxu0 %v611
      %1284 = vmatpush.msra.mxu0 %v607
      %1285 = vmatpush.msra.mxu0 %v603
      %1286 = vmatpush.msra.mxu0 %v599
      %1287 = vmatpush.msra.mxu0 %v595
      %1288 = vmatpush.msra.mxu0 %v591
      %1289 = vmatpush.msra.mxu0 %v587
      %1290 = vmatpush.msra.mxu0 %v583
      %1291 = vmatpush.msra.mxu0 %v579
      %1292 = vmatmul.f32.gmra.mxu0 %v1250
      %v1293 = vpop.f32.mrf.mxu0
      %v1294 = vadd.f32 0.0, %v1293
      %1295 = vdwg.mxu0
      %1296 = vmatpush.msra.mxu0 %v640
      %1297 = vmatpush.msra.mxu0 %v636
      %1298 = vmatpush.msra.mxu0 %v632
      %1299 = vmatpush.msra.mxu0 %v628
      %1300 = vmatpush.msra.mxu0 %v624
      %1301 = vmatpush.msra.mxu0 %v620
      %1302 = vmatpush.msra.mxu0 %v616
      %1303 = vmatpush.msra.mxu0 %v612
      %1304 = vmatpush.msra.mxu0 %v608
      %1305 = vmatpush.msra.mxu0 %v604
      %1306 = vmatpush.msra.mxu0 %v600
      %1307 = vmatpush.msra.mxu0 %v596
      %1308 = vmatpush.msra.mxu0 %v592
      %1309 = vmatpush.msra.mxu0 %v588
      %1310 = vmatpush.msra.mxu0 %v584
      %1311 = vmatpush.msra.mxu0 %v580
      %1312 = vmatmul.f32.gmra.mxu0 %v1250
      %v1313 = vpop.f32.mrf.mxu0
      %v1314 = vadd.f32 0.0, %v1313
      %1315 = vdwg.mxu0
      %1316 = vmatpush.msra.mxu0 %v641
      %1317 = vmatpush.msra.mxu0 %v637
      %1318 = vmatpush.msra.mxu0 %v633
      %1319 = vmatpush.msra.mxu0 %v629
      %1320 = vmatpush.msra.mxu0 %v625
      %1321 = vmatpush.msra.mxu0 %v621
      %1322 = vmatpush.msra.mxu0 %v617
      %1323 = vmatpush.msra.mxu0 %v613
      %1324 = vmatpush.msra.mxu0 %v609
      %1325 = vmatpush.msra.mxu0 %v605
      %1326 = vmatpush.msra.mxu0 %v601
      %1327 = vmatpush.msra.mxu0 %v597
      %1328 = vmatpush.msra.mxu0 %v593
      %1329 = vmatpush.msra.mxu0 %v589
      %1330 = vmatpush.msra.mxu0 %v585
      %1331 = vmatpush.msra.mxu0 %v581
      %1332 = vmatmul.f32.gmra.mxu0 %v1250
      %v1333 = vpop.f32.mrf.mxu0
      %v1334 = vadd.f32 0.0, %v1333
      %1335 = vdwg.mxu0
      %v1336 = vadd.f32 %v1252, %v1274
      %v1337 = vadd.f32 %v1253, %v1294
      %v1338 = vadd.f32 %v1254, %v1314
      %v1339 = vadd.f32 %v1255, %v1334
      %v1340 = vxor.u32 %v1336, 2147483648
      %v1341 = vmul.f32 %v1340, 1.442695
      %v1342 = vpow.pop %v1341
      %v1343 = vadd.f32 %v1342, 1.0
      %v1344 = vrcp.pop %v1343
      %v1345 = vmul.f32 %v1343, %v1344
      %v1346 = vsub.f32 1.0, %v1345
      %v1347 = vmul.f32 %v1344, %v1346
      %v1348 = vadd.f32 %v1344, %v1347
      %vm1349 = vweird.f32 %v1343
      %vm1350 = vweird.f32 %v1344
      %vm1351 = vmor %vm1349, %vm1350
      %v1352 = vsel %vm1351, %v1344, %v1348
      %v1353 = vand.u32 2147483647, %v1343
      %vm1354 = vcmp.eq.f32.partialorder %v1353, 8.507059e+37
      %v1355 = vand.u32 %v1343, 2147483648
      %v1356 = vor.u32 1.1754944e-38, %v1355
      %v1357 = vsel %vm1354, %v1356, %v1352
      %v1358 = vmul.f32 1.0, %v1357
      %v1359 = vxor.u32 %v1337, 2147483648
      %v1360 = vmul.f32 %v1359, 1.442695
      %v1361 = vpow.pop %v1360
      %v1362 = vadd.f32 %v1361, 1.0
      %v1363 = vrcp.pop %v1362
      %v1364 = vmul.f32 %v1362, %v1363
      %v1365 = vsub.f32 1.0, %v1364
      %v1366 = vmul.f32 %v1363, %v1365
      %v1367 = vadd.f32 %v1363, %v1366
      %vm1368 = vweird.f32 %v1362
      %vm1369 = vweird.f32 %v1363
      %vm1370 = vmor %vm1368, %vm1369
      %v1371 = vsel %vm1370, %v1363, %v1367
      %v1372 = vand.u32 2147483647, %v1362
      %vm1373 = vcmp.eq.f32.partialorder %v1372, 8.507059e+37
      %v1374 = vand.u32 %v1362, 2147483648
      %v1375 = vor.u32 1.1754944e-38, %v1374
      %v1376 = vsel %vm1373, %v1375, %v1371
      %v1377 = vmul.f32 1.0, %v1376
      %v1378 = vtanh.pop %v1338
      %v1379 = vxor.u32 %v1339, 2147483648
      %v1380 = vmul.f32 %v1379, 1.442695
      %v1381 = vpow.pop %v1380
      %v1382 = vadd.f32 %v1381, 1.0
      %v1383 = vrcp.pop %v1382
      %v1384 = vmul.f32 %v1382, %v1383
      %v1385 = vsub.f32 1.0, %v1384
      %v1386 = vmul.f32 %v1383, %v1385
      %v1387 = vadd.f32 %v1383, %v1386
      %vm1388 = vweird.f32 %v1382
      %vm1389 = vweird.f32 %v1383
      %vm1390 = vmor %vm1388, %vm1389
      %v1391 = vsel %vm1390, %v1383, %v1387
      %v1392 = vand.u32 2147483647, %v1382
      %vm1393 = vcmp.eq.f32.partialorder %v1392, 8.507059e+37
      %v1394 = vand.u32 %v1382, 2147483648
      %v1395 = vor.u32 1.1754944e-38, %v1394
      %v1396 = vsel %vm1393, %v1395, %v1391
      %v1397 = vmul.f32 1.0, %v1396
      %v1398 = vmul.f32 %v1377, %v1248
      %v1399 = vmul.f32 %v1358, %v1378
      %v1400 = vadd.f32 %v1398, %v1399
      %v1401 = vtanh.pop %v1400
      %v1402 = vmul.f32 %v1397, %v1401
      %1403 = vst [vmem:[%s292 + $0x20] sm:$0xff] %v1402
      %v1404 = vld [vmem:[#allocation4 + $0xa0] sm:$0xff]
      %v1405 = vld [vmem:[#allocation4 + $0xa8] sm:$0xff]
      %v1406 = vld [vmem:[#allocation4 + $0xb0] sm:$0xff]
      %v1407 = vld [vmem:[#allocation4 + $0xb8] sm:$0xff]
      %1408 = vmatpush.msra.mxu0 %v638
      %1409 = vmatpush.msra.mxu0 %v634
      %1410 = vmatpush.msra.mxu0 %v630
      %1411 = vmatpush.msra.mxu0 %v626
      %1412 = vmatpush.msra.mxu0 %v622
      %1413 = vmatpush.msra.mxu0 %v618
      %1414 = vmatpush.msra.mxu0 %v614
      %1415 = vmatpush.msra.mxu0 %v610
      %1416 = vmatpush.msra.mxu0 %v606
      %1417 = vmatpush.msra.mxu0 %v602
      %1418 = vmatpush.msra.mxu0 %v598
      %1419 = vmatpush.msra.mxu0 %v594
      %1420 = vmatpush.msra.mxu0 %v590
      %1421 = vmatpush.msra.mxu0 %v586
      %1422 = vmatpush.msra.mxu0 %v582
      %1423 = vmatpush.msra.mxu0 %v578
      %1424 = vmatmul.f32.gmra.mxu0 %v1402
      %v1425 = vpop.f32.mrf.mxu0
      %v1426 = vadd.f32 0.0, %v1425
      %1427 = vdwg.mxu0
      %1428 = vmatpush.msra.mxu0 %v639
      %1429 = vmatpush.msra.mxu0 %v635
      %1430 = vmatpush.msra.mxu0 %v631
      %1431 = vmatpush.msra.mxu0 %v627
      %1432 = vmatpush.msra.mxu0 %v623
      %1433 = vmatpush.msra.mxu0 %v619
      %1434 = vmatpush.msra.mxu0 %v615
      %1435 = vmatpush.msra.mxu0 %v611
      %1436 = vmatpush.msra.mxu0 %v607
      %1437 = vmatpush.msra.mxu0 %v603
      %1438 = vmatpush.msra.mxu0 %v599
      %1439 = vmatpush.msra.mxu0 %v595
      %1440 = vmatpush.msra.mxu0 %v591
      %1441 = vmatpush.msra.mxu0 %v587
      %1442 = vmatpush.msra.mxu0 %v583
      %1443 = vmatpush.msra.mxu0 %v579
      %1444 = vmatmul.f32.gmra.mxu0 %v1402
      %v1445 = vpop.f32.mrf.mxu0
      %v1446 = vadd.f32 0.0, %v1445
      %1447 = vdwg.mxu0
      %1448 = vmatpush.msra.mxu0 %v640
      %1449 = vmatpush.msra.mxu0 %v636
      %1450 = vmatpush.msra.mxu0 %v632
      %1451 = vmatpush.msra.mxu0 %v628
      %1452 = vmatpush.msra.mxu0 %v624
      %1453 = vmatpush.msra.mxu0 %v620
      %1454 = vmatpush.msra.mxu0 %v616
      %1455 = vmatpush.msra.mxu0 %v612
      %1456 = vmatpush.msra.mxu0 %v608
      %1457 = vmatpush.msra.mxu0 %v604
      %1458 = vmatpush.msra.mxu0 %v600
      %1459 = vmatpush.msra.mxu0 %v596
      %1460 = vmatpush.msra.mxu0 %v592
      %1461 = vmatpush.msra.mxu0 %v588
      %1462 = vmatpush.msra.mxu0 %v584
      %1463 = vmatpush.msra.mxu0 %v580
      %1464 = vmatmul.f32.gmra.mxu0 %v1402
      %v1465 = vpop.f32.mrf.mxu0
      %v1466 = vadd.f32 0.0, %v1465
      %1467 = vdwg.mxu0
      %1468 = vmatpush.msra.mxu0 %v641
      %1469 = vmatpush.msra.mxu0 %v637
      %1470 = vmatpush.msra.mxu0 %v633
      %1471 = vmatpush.msra.mxu0 %v629
      %1472 = vmatpush.msra.mxu0 %v625
      %1473 = vmatpush.msra.mxu0 %v621
      %1474 = vmatpush.msra.mxu0 %v617
      %1475 = vmatpush.msra.mxu0 %v613
      %1476 = vmatpush.msra.mxu0 %v609
      %1477 = vmatpush.msra.mxu0 %v605
      %1478 = vmatpush.msra.mxu0 %v601
      %1479 = vmatpush.msra.mxu0 %v597
      %1480 = vmatpush.msra.mxu0 %v593
      %1481 = vmatpush.msra.mxu0 %v589
      %1482 = vmatpush.msra.mxu0 %v585
      %1483 = vmatpush.msra.mxu0 %v581
      %1484 = vmatmul.f32.gmra.mxu0 %v1402
      %v1485 = vpop.f32.mrf.mxu0
      %v1486 = vadd.f32 0.0, %v1485
      %1487 = vdwg.mxu0
      %v1488 = vadd.f32 %v1404, %v1426
      %v1489 = vadd.f32 %v1405, %v1446
      %v1490 = vadd.f32 %v1406, %v1466
      %v1491 = vadd.f32 %v1407, %v1486
      %v1492 = vxor.u32 %v1488, 2147483648
      %v1493 = vmul.f32 %v1492, 1.442695
      %v1494 = vpow.pop %v1493
      %v1495 = vadd.f32 %v1494, 1.0
      %v1496 = vrcp.pop %v1495
      %v1497 = vmul.f32 %v1495, %v1496
      %v1498 = vsub.f32 1.0, %v1497
      %v1499 = vmul.f32 %v1496, %v1498
      %v1500 = vadd.f32 %v1496, %v1499
      %vm1501 = vweird.f32 %v1495
      %vm1502 = vweird.f32 %v1496
      %vm1503 = vmor %vm1501, %vm1502
      %v1504 = vsel %vm1503, %v1496, %v1500
      %v1505 = vand.u32 2147483647, %v1495
      %vm1506 = vcmp.eq.f32.partialorder %v1505, 8.507059e+37
      %v1507 = vand.u32 %v1495, 2147483648
      %v1508 = vor.u32 1.1754944e-38, %v1507
      %v1509 = vsel %vm1506, %v1508, %v1504
      %v1510 = vmul.f32 1.0, %v1509
      %v1511 = vxor.u32 %v1489, 2147483648
      %v1512 = vmul.f32 %v1511, 1.442695
      %v1513 = vpow.pop %v1512
      %v1514 = vadd.f32 %v1513, 1.0
      %v1515 = vrcp.pop %v1514
      %v1516 = vmul.f32 %v1514, %v1515
      %v1517 = vsub.f32 1.0, %v1516
      %v1518 = vmul.f32 %v1515, %v1517
      %v1519 = vadd.f32 %v1515, %v1518
      %vm1520 = vweird.f32 %v1514
      %vm1521 = vweird.f32 %v1515
      %vm1522 = vmor %vm1520, %vm1521
      %v1523 = vsel %vm1522, %v1515, %v1519
      %v1524 = vand.u32 2147483647, %v1514
      %vm1525 = vcmp.eq.f32.partialorder %v1524, 8.507059e+37
      %v1526 = vand.u32 %v1514, 2147483648
      %v1527 = vor.u32 1.1754944e-38, %v1526
      %v1528 = vsel %vm1525, %v1527, %v1523
      %v1529 = vmul.f32 1.0, %v1528
      %v1530 = vtanh.pop %v1490
      %v1531 = vxor.u32 %v1491, 2147483648
      %v1532 = vmul.f32 %v1531, 1.442695
      %v1533 = vpow.pop %v1532
      %v1534 = vadd.f32 %v1533, 1.0
      %v1535 = vrcp.pop %v1534
      %v1536 = vmul.f32 %v1534, %v1535
      %v1537 = vsub.f32 1.0, %v1536
      %v1538 = vmul.f32 %v1535, %v1537
      %v1539 = vadd.f32 %v1535, %v1538
      %vm1540 = vweird.f32 %v1534
      %vm1541 = vweird.f32 %v1535
      %vm1542 = vmor %vm1540, %vm1541
      %v1543 = vsel %vm1542, %v1535, %v1539
      %v1544 = vand.u32 2147483647, %v1534
      %vm1545 = vcmp.eq.f32.partialorder %v1544, 8.507059e+37
      %v1546 = vand.u32 %v1534, 2147483648
      %v1547 = vor.u32 1.1754944e-38, %v1546
      %v1548 = vsel %vm1545, %v1547, %v1543
      %v1549 = vmul.f32 1.0, %v1548
      %v1550 = vmul.f32 %v1529, %v1400
      %v1551 = vmul.f32 %v1510, %v1530
      %v1552 = vadd.f32 %v1550, %v1551
      %v1553 = vtanh.pop %v1552
      %v1554 = vmul.f32 %v1549, %v1553
      %1555 = vst [vmem:[%s292 + $0x28] sm:$0xff] %v1554
      %v1556 = vld [vmem:[#allocation4 + $0xc0] sm:$0xff]
      %v1557 = vld [vmem:[#allocation4 + $0xc8] sm:$0xff]
      %v1558 = vld [vmem:[#allocation4 + $0xd0] sm:$0xff]
      %v1559 = vld [vmem:[#allocation4 + $0xd8] sm:$0xff]
      %1560 = vmatpush.msra.mxu0 %v638
      %1561 = vmatpush.msra.mxu0 %v634
      %1562 = vmatpush.msra.mxu0 %v630
      %1563 = vmatpush.msra.mxu0 %v626
      %1564 = vmatpush.msra.mxu0 %v622
      %1565 = vmatpush.msra.mxu0 %v618
      %1566 = vmatpush.msra.mxu0 %v614
      %1567 = vmatpush.msra.mxu0 %v610
      %1568 = vmatpush.msra.mxu0 %v606
      %1569 = vmatpush.msra.mxu0 %v602
      %1570 = vmatpush.msra.mxu0 %v598
      %1571 = vmatpush.msra.mxu0 %v594
      %1572 = vmatpush.msra.mxu0 %v590
      %1573 = vmatpush.msra.mxu0 %v586
      %1574 = vmatpush.msra.mxu0 %v582
      %1575 = vmatpush.msra.mxu0 %v578
      %1576 = vmatmul.f32.gmra.mxu0 %v1554
      %v1577 = vpop.f32.mrf.mxu0
      %v1578 = vadd.f32 0.0, %v1577
      %1579 = vdwg.mxu0
      %1580 = vmatpush.msra.mxu0 %v639
      %1581 = vmatpush.msra.mxu0 %v635
      %1582 = vmatpush.msra.mxu0 %v631
      %1583 = vmatpush.msra.mxu0 %v627
      %1584 = vmatpush.msra.mxu0 %v623
      %1585 = vmatpush.msra.mxu0 %v619
      %1586 = vmatpush.msra.mxu0 %v615
      %1587 = vmatpush.msra.mxu0 %v611
      %1588 = vmatpush.msra.mxu0 %v607
      %1589 = vmatpush.msra.mxu0 %v603
      %1590 = vmatpush.msra.mxu0 %v599
      %1591 = vmatpush.msra.mxu0 %v595
      %1592 = vmatpush.msra.mxu0 %v591
      %1593 = vmatpush.msra.mxu0 %v587
      %1594 = vmatpush.msra.mxu0 %v583
      %1595 = vmatpush.msra.mxu0 %v579
      %1596 = vmatmul.f32.gmra.mxu0 %v1554
      %v1597 = vpop.f32.mrf.mxu0
      %v1598 = vadd.f32 0.0, %v1597
      %1599 = vdwg.mxu0
      %1600 = vmatpush.msra.mxu0 %v640
      %1601 = vmatpush.msra.mxu0 %v636
      %1602 = vmatpush.msra.mxu0 %v632
      %1603 = vmatpush.msra.mxu0 %v628
      %1604 = vmatpush.msra.mxu0 %v624
      %1605 = vmatpush.msra.mxu0 %v620
      %1606 = vmatpush.msra.mxu0 %v616
      %1607 = vmatpush.msra.mxu0 %v612
      %1608 = vmatpush.msra.mxu0 %v608
      %1609 = vmatpush.msra.mxu0 %v604
      %1610 = vmatpush.msra.mxu0 %v600
      %1611 = vmatpush.msra.mxu0 %v596
      %1612 = vmatpush.msra.mxu0 %v592
      %1613 = vmatpush.msra.mxu0 %v588
      %1614 = vmatpush.msra.mxu0 %v584
      %1615 = vmatpush.msra.mxu0 %v580
      %1616 = vmatmul.f32.gmra.mxu0 %v1554
      %v1617 = vpop.f32.mrf.mxu0
      %v1618 = vadd.f32 0.0, %v1617
      %1619 = vdwg.mxu0
      %1620 = vmatpush.msra.mxu0 %v641
      %1621 = vmatpush.msra.mxu0 %v637
      %1622 = vmatpush.msra.mxu0 %v633
      %1623 = vmatpush.msra.mxu0 %v629
      %1624 = vmatpush.msra.mxu0 %v625
      %1625 = vmatpush.msra.mxu0 %v621
      %1626 = vmatpush.msra.mxu0 %v617
      %1627 = vmatpush.msra.mxu0 %v613
      %1628 = vmatpush.msra.mxu0 %v609
      %1629 = vmatpush.msra.mxu0 %v605
      %1630 = vmatpush.msra.mxu0 %v601
      %1631 = vmatpush.msra.mxu0 %v597
      %1632 = vmatpush.msra.mxu0 %v593
      %1633 = vmatpush.msra.mxu0 %v589
      %1634 = vmatpush.msra.mxu0 %v585
      %1635 = vmatpush.msra.mxu0 %v581
      %1636 = vmatmul.f32.gmra.mxu0 %v1554
      %v1637 = vpop.f32.mrf.mxu0
      %v1638 = vadd.f32 0.0, %v1637
      %1639 = vdwg.mxu0
      %v1640 = vadd.f32 %v1556, %v1578
      %v1641 = vadd.f32 %v1557, %v1598
      %v1642 = vadd.f32 %v1558, %v1618
      %v1643 = vadd.f32 %v1559, %v1638
      %v1644 = vxor.u32 %v1640, 2147483648
      %v1645 = vmul.f32 %v1644, 1.442695
      %v1646 = vpow.pop %v1645
      %v1647 = vadd.f32 %v1646, 1.0
      %v1648 = vrcp.pop %v1647
      %v1649 = vmul.f32 %v1647, %v1648
      %v1650 = vsub.f32 1.0, %v1649
      %v1651 = vmul.f32 %v1648, %v1650
      %v1652 = vadd.f32 %v1648, %v1651
      %vm1653 = vweird.f32 %v1647
      %vm1654 = vweird.f32 %v1648
      %vm1655 = vmor %vm1653, %vm1654
      %v1656 = vsel %vm1655, %v1648, %v1652
      %v1657 = vand.u32 2147483647, %v1647
      %vm1658 = vcmp.eq.f32.partialorder %v1657, 8.507059e+37
      %v1659 = vand.u32 %v1647, 2147483648
      %v1660 = vor.u32 1.1754944e-38, %v1659
      %v1661 = vsel %vm1658, %v1660, %v1656
      %v1662 = vmul.f32 1.0, %v1661
      %v1663 = vxor.u32 %v1641, 2147483648
      %v1664 = vmul.f32 %v1663, 1.442695
      %v1665 = vpow.pop %v1664
      %v1666 = vadd.f32 %v1665, 1.0
      %v1667 = vrcp.pop %v1666
      %v1668 = vmul.f32 %v1666, %v1667
      %v1669 = vsub.f32 1.0, %v1668
      %v1670 = vmul.f32 %v1667, %v1669
      %v1671 = vadd.f32 %v1667, %v1670
      %vm1672 = vweird.f32 %v1666
      %vm1673 = vweird.f32 %v1667
      %vm1674 = vmor %vm1672, %vm1673
      %v1675 = vsel %vm1674, %v1667, %v1671
      %v1676 = vand.u32 2147483647, %v1666
      %vm1677 = vcmp.eq.f32.partialorder %v1676, 8.507059e+37
      %v1678 = vand.u32 %v1666, 2147483648
      %v1679 = vor.u32 1.1754944e-38, %v1678
      %v1680 = vsel %vm1677, %v1679, %v1675
      %v1681 = vmul.f32 1.0, %v1680
      %v1682 = vtanh.pop %v1642
      %v1683 = vxor.u32 %v1643, 2147483648
      %v1684 = vmul.f32 %v1683, 1.442695
      %v1685 = vpow.pop %v1684
      %v1686 = vadd.f32 %v1685, 1.0
      %v1687 = vrcp.pop %v1686
      %v1688 = vmul.f32 %v1686, %v1687
      %v1689 = vsub.f32 1.0, %v1688
      %v1690 = vmul.f32 %v1687, %v1689
      %v1691 = vadd.f32 %v1687, %v1690
      %vm1692 = vweird.f32 %v1686
      %vm1693 = vweird.f32 %v1687
      %vm1694 = vmor %vm1692, %vm1693
      %v1695 = vsel %vm1694, %v1687, %v1691
      %v1696 = vand.u32 2147483647, %v1686
      %vm1697 = vcmp.eq.f32.partialorder %v1696, 8.507059e+37
      %v1698 = vand.u32 %v1686, 2147483648
      %v1699 = vor.u32 1.1754944e-38, %v1698
      %v1700 = vsel %vm1697, %v1699, %v1695
      %v1701 = vmul.f32 1.0, %v1700
      %v1702 = vmul.f32 %v1681, %v1552
      %v1703 = vmul.f32 %v1662, %v1682
      %v1704 = vadd.f32 %v1702, %v1703
      %v1705 = vtanh.pop %v1704
      %v1706 = vmul.f32 %v1701, %v1705
      %1707 = vst [vmem:[%s292 + $0x30] sm:$0xff] %v1706
      %v1708 = vld [vmem:[#allocation4 + $0xe0] sm:$0xff]
      %v1709 = vld [vmem:[#allocation4 + $0xe8] sm:$0xff]
      %v1710 = vld [vmem:[#allocation4 + $0xf0] sm:$0xff]
      %v1711 = vld [vmem:[#allocation4 + $0xf8] sm:$0xff]
      %1712 = vmatpush.msra.mxu0 %v638
      %1713 = vmatpush.msra.mxu0 %v634
      %1714 = vmatpush.msra.mxu0 %v630
      %1715 = vmatpush.msra.mxu0 %v626
      %1716 = vmatpush.msra.mxu0 %v622
      %1717 = vmatpush.msra.mxu0 %v618
      %1718 = vmatpush.msra.mxu0 %v614
      %1719 = vmatpush.msra.mxu0 %v610
      %1720 = vmatpush.msra.mxu0 %v606
      %1721 = vmatpush.msra.mxu0 %v602
      %1722 = vmatpush.msra.mxu0 %v598
      %1723 = vmatpush.msra.mxu0 %v594
      %1724 = vmatpush.msra.mxu0 %v590
      %1725 = vmatpush.msra.mxu0 %v586
      %1726 = vmatpush.msra.mxu0 %v582
      %1727 = vmatpush.msra.mxu0 %v578
      %1728 = vmatmul.f32.gmra.mxu0 %v1706
      %v1729 = vpop.f32.mrf.mxu0
      %v1730 = vadd.f32 0.0, %v1729
      %1731 = vdwg.mxu0
      %1732 = vmatpush.msra.mxu0 %v639
      %1733 = vmatpush.msra.mxu0 %v635
      %1734 = vmatpush.msra.mxu0 %v631
      %1735 = vmatpush.msra.mxu0 %v627
      %1736 = vmatpush.msra.mxu0 %v623
      %1737 = vmatpush.msra.mxu0 %v619
      %1738 = vmatpush.msra.mxu0 %v615
      %1739 = vmatpush.msra.mxu0 %v611
      %1740 = vmatpush.msra.mxu0 %v607
      %1741 = vmatpush.msra.mxu0 %v603
      %1742 = vmatpush.msra.mxu0 %v599
      %1743 = vmatpush.msra.mxu0 %v595
      %1744 = vmatpush.msra.mxu0 %v591
      %1745 = vmatpush.msra.mxu0 %v587
      %1746 = vmatpush.msra.mxu0 %v583
      %1747 = vmatpush.msra.mxu0 %v579
      %1748 = vmatmul.f32.gmra.mxu0 %v1706
      %v1749 = vpop.f32.mrf.mxu0
      %v1750 = vadd.f32 0.0, %v1749
      %1751 = vdwg.mxu0
      %1752 = vmatpush.msra.mxu0 %v640
      %1753 = vmatpush.msra.mxu0 %v636
      %1754 = vmatpush.msra.mxu0 %v632
      %1755 = vmatpush.msra.mxu0 %v628
      %1756 = vmatpush.msra.mxu0 %v624
      %1757 = vmatpush.msra.mxu0 %v620
      %1758 = vmatpush.msra.mxu0 %v616
      %1759 = vmatpush.msra.mxu0 %v612
      %1760 = vmatpush.msra.mxu0 %v608
      %1761 = vmatpush.msra.mxu0 %v604
      %1762 = vmatpush.msra.mxu0 %v600
      %1763 = vmatpush.msra.mxu0 %v596
      %1764 = vmatpush.msra.mxu0 %v592
      %1765 = vmatpush.msra.mxu0 %v588
      %1766 = vmatpush.msra.mxu0 %v584
      %1767 = vmatpush.msra.mxu0 %v580
      %1768 = vmatmul.f32.gmra.mxu0 %v1706
      %v1769 = vpop.f32.mrf.mxu0
      %v1770 = vadd.f32 0.0, %v1769
      %1771 = vdwg.mxu0
      %1772 = vmatpush.msra.mxu0 %v641
      %1773 = vmatpush.msra.mxu0 %v637
      %1774 = vmatpush.msra.mxu0 %v633
      %1775 = vmatpush.msra.mxu0 %v629
      %1776 = vmatpush.msra.mxu0 %v625
      %1777 = vmatpush.msra.mxu0 %v621
      %1778 = vmatpush.msra.mxu0 %v617
      %1779 = vmatpush.msra.mxu0 %v613
      %1780 = vmatpush.msra.mxu0 %v609
      %1781 = vmatpush.msra.mxu0 %v605
      %1782 = vmatpush.msra.mxu0 %v601
      %1783 = vmatpush.msra.mxu0 %v597
      %1784 = vmatpush.msra.mxu0 %v593
      %1785 = vmatpush.msra.mxu0 %v589
      %1786 = vmatpush.msra.mxu0 %v585
      %1787 = vmatpush.msra.mxu0 %v581
      %1788 = vmatmul.f32.gmra.mxu0 %v1706
      %v1789 = vpop.f32.mrf.mxu0
      %v1790 = vadd.f32 0.0, %v1789
      %1791 = vdwg.mxu0
      %v1792 = vadd.f32 %v1708, %v1730
      %v1793 = vadd.f32 %v1709, %v1750
      %v1794 = vadd.f32 %v1710, %v1770
      %v1795 = vadd.f32 %v1711, %v1790
      %v1796 = vxor.u32 %v1792, 2147483648
      %v1797 = vmul.f32 %v1796, 1.442695
      %v1798 = vpow.pop %v1797
      %v1799 = vadd.f32 %v1798, 1.0
      %v1800 = vrcp.pop %v1799
      %v1801 = vmul.f32 %v1799, %v1800
      %v1802 = vsub.f32 1.0, %v1801
      %v1803 = vmul.f32 %v1800, %v1802
      %v1804 = vadd.f32 %v1800, %v1803
      %vm1805 = vweird.f32 %v1799
      %vm1806 = vweird.f32 %v1800
      %vm1807 = vmor %vm1805, %vm1806
      %v1808 = vsel %vm1807, %v1800, %v1804
      %v1809 = vand.u32 2147483647, %v1799
      %vm1810 = vcmp.eq.f32.partialorder %v1809, 8.507059e+37
      %v1811 = vand.u32 %v1799, 2147483648
      %v1812 = vor.u32 1.1754944e-38, %v1811
      %v1813 = vsel %vm1810, %v1812, %v1808
      %v1814 = vmul.f32 1.0, %v1813
      %v1815 = vxor.u32 %v1793, 2147483648
      %v1816 = vmul.f32 %v1815, 1.442695
      %v1817 = vpow.pop %v1816
      %v1818 = vadd.f32 %v1817, 1.0
      %v1819 = vrcp.pop %v1818
      %v1820 = vmul.f32 %v1818, %v1819
      %v1821 = vsub.f32 1.0, %v1820
      %v1822 = vmul.f32 %v1819, %v1821
      %v1823 = vadd.f32 %v1819, %v1822
      %vm1824 = vweird.f32 %v1818
      %vm1825 = vweird.f32 %v1819
      %vm1826 = vmor %vm1824, %vm1825
      %v1827 = vsel %vm1826, %v1819, %v1823
      %v1828 = vand.u32 2147483647, %v1818
      %vm1829 = vcmp.eq.f32.partialorder %v1828, 8.507059e+37
      %v1830 = vand.u32 %v1818, 2147483648
      %v1831 = vor.u32 1.1754944e-38, %v1830
      %v1832 = vsel %vm1829, %v1831, %v1827
      %v1833 = vmul.f32 1.0, %v1832
      %v1834 = vtanh.pop %v1794
      %v1835 = vxor.u32 %v1795, 2147483648
      %v1836 = vmul.f32 %v1835, 1.442695
      %v1837 = vpow.pop %v1836
      %v1838 = vadd.f32 %v1837, 1.0
      %v1839 = vrcp.pop %v1838
      %v1840 = vmul.f32 %v1838, %v1839
      %v1841 = vsub.f32 1.0, %v1840
      %v1842 = vmul.f32 %v1839, %v1841
      %v1843 = vadd.f32 %v1839, %v1842
      %vm1844 = vweird.f32 %v1838
      %vm1845 = vweird.f32 %v1839
      %vm1846 = vmor %vm1844, %vm1845
      %v1847 = vsel %vm1846, %v1839, %v1843
      %v1848 = vand.u32 2147483647, %v1838
      %vm1849 = vcmp.eq.f32.partialorder %v1848, 8.507059e+37
      %v1850 = vand.u32 %v1838, 2147483648
      %v1851 = vor.u32 1.1754944e-38, %v1850
      %v1852 = vsel %vm1849, %v1851, %v1847
      %v1853 = vmul.f32 1.0, %v1852
      %v1854 = vmul.f32 %v1833, %v1704
      %v1855 = vmul.f32 %v1814, %v1834
      %v1856 = vadd.f32 %v1854, %v1855
      %v1857 = vtanh.pop %v1856
      %v1858 = vmul.f32 %v1853, %v1857
      %1859 = vst [vmem:[%s292 + $0x38] sm:$0xff] %v1858
      %1860 = vst [vmem:[#allocation2] sm:$0xff] %v1858
      %1861 = vst [vmem:[#allocation3] sm:$0xff] %v1856
      %s1862 = smul.u32 8, %s20
      %p1863 = scmp.lt.s32.totalorder %s19, 2
      %s1864 = scalar_select %p1863, %s19, 2
      %p1865 = scmp.lt.s32.totalorder %s1862, 7
      %s1866 = scalar_select %p1865, %s1862, 7
      %s1867 = smul.addr %s1864, 8
      %s1868 = sadd.s32 %s1866, %s1867
      %s1869 = smul.addr %s1868, 8
      %s1870 = scalar_lea.vmem %s4, %s1869
      // Predicated region
      $region41: #{a_call__.2} parent=35 // pred_check
        %p1871 = pneg %p153
      $region42: #{a_call__.2} parent=35 // pred_check_branch
        %1873 = sbr.rel (%p1871) target = $region44
      $region43: #{a_call__.2} parent=35 // pred_region
        %s1874 = smul.u32 8, %s20
      $region44: #{a_call__.2} parent=35 // pred_fallthru
        _
    $region36: #{a_call__.2} parent=5 // pred_fallthru
      _
    %p1875 = scmp.le.s32.totalorder 2, %s10
    // Predicated region
    $region45: #{a_call__.2} parent=5 // pred_check
      %p1876 = pneg %p1875
    $region46: #{a_call__.2} parent=5 // pred_check_branch
      %1878 = sbr.rel (%p1876) target = $region48
    $region47: #{a_call__.2} parent=5 // pred_region
      %s1879 = ssub.s32 %s10, 2
      // Predicated region
      $region49: #{a_call__.2} parent=47 // pred_check
        %p1880 = pneg %p159
      $region50: #{a_call__.2} parent=47 // pred_check_branch
        %1882 = sbr.rel (%p1880) target = $region52
      $region51: #{a_call__.2} parent=47 // pred_region
        %s1883 = smul.u32 8, %s22
        %p1884 = scmp.lt.s32.totalorder %s21, 2
        %s1885 = scalar_select %p1884, %s21, 2
        %p1886 = scmp.lt.s32.totalorder %s1883, 7
        %s1887 = scalar_select %p1886, %s1883, 7
        %s1888 = smul.addr %s1885, 8
        %s1889 = sadd.s32 %s1887, %s1888
        %s1890 = smul.addr %s1889, 8
        %s1891 = scalar_lea.vmem %s4, %s1890
      $region52: #{a_call__.2} parent=47 // pred_fallthru
        _
    $region48: #{a_call__.2} parent=5 // pred_fallthru
      _
  $region6: #{a_call__.2} parent=0 // loop_footer
    %s14 = sadd.s32 1, %s10
  $region7: #{a_call__.2} parent=0 // loop_footer_branch
    %9 = sbr.rel target = $region3
  $region8: #{a_call__.2} parent=0 // loop_exit
    _

// kernel: a_call__.3
$region0: #{a_call__.3}
  #allocation0 [shape = 'u32[]', space=smem, size = 0x4, offset = 0x4, fixed_abs, tag = 'smem constant byte address 0x4 - core index']
  #allocation1 [shape = 'u32[72,128]{1,0:T(1,128)}', space=vmem, size = 0x9000, scoped, tag = 'internal scratch']
  #allocation2 [shape = 'f32[8,128]{1,0:T(8,128)}', space=vmem, size = 0x1000, scoped, tag = 'scratch operand']
  #allocation3 [shape = 'f32[8,128]{1,0:T(8,128)}', space=vmem, size = 0x1000, scoped, tag = 'scratch operand']
  #allocation4 [shape = 'f32[64,512]{1,0:T(8,128)}', space=vmem, size = 0x20000, scoped, tag = 'scratch operand']
  %s0 = inlined_call_operand.vmem [shape: f32[1,64,128], index: 0, kind: input, shape index: {}]
  %s1 = inlined_call_operand.vmem [shape: f32[1,128,512], index: 1, kind: input, shape index: {}]
  %s2 = inlined_call_operand.vmem [shape: f32[1,128,512], index: 2, kind: input, shape index: {}]
  %s3 = inlined_call_operand.vmem [shape: f32[1,1,512], index: 3, kind: input, shape index: {}]
  %s4 = inlined_call_operand.vmem [shape: f32[1,64,128], index: 4, kind: output, shape index: {}]
  %s5 = sld [smem:[#allocation0]]
  $region30: #{a_call__.3} parent=0
    _
  %s7 = ssub.s32 1, %s5
  %s8 = scalar_select 0, %s7, %s5
  // Predicated region
  $region2: #{a_call__.3} parent=0 // pred_check
    _
  $region3: #{a_call__.3} parent=0 // pred_check_branch
    %10 = sbr.rel (0) target = $region5
  $region4: #{a_call__.3} parent=0 // pred_region
    _
  $region5: #{a_call__.3} parent=0 // pred_fallthru
    _
  // Predicated region
  $region6: #{a_call__.3} parent=0 // pred_check
    _
  $region7: #{a_call__.3} parent=0 // pred_check_branch
    %12 = sbr.rel (0) target = $region9
  $region8: #{a_call__.3} parent=0 // pred_region
    _
  $region9: #{a_call__.3} parent=0 // pred_fallthru
    _
  // Predicated region
  $region10: #{a_call__.3} parent=0 // pred_check
    _
  $region11: #{a_call__.3} parent=0 // pred_check_branch
    %14 = sbr.rel (0) target = $region13
  $region12: #{a_call__.3} parent=0 // pred_region
    _
  $region13: #{a_call__.3} parent=0 // pred_fallthru
    _
  // Predicated region
  $region14: #{a_call__.3} parent=0 // pred_check
    _
  $region15: #{a_call__.3} parent=0 // pred_check_branch
    %16 = sbr.rel (0) target = $region17
  $region16: #{a_call__.3} parent=0 // pred_region
    _
  $region17: #{a_call__.3} parent=0 // pred_fallthru
    _
  %p17 = scmp.eq.s32.totalorder 0, 0
  // Predicated region
  $region18: #{a_call__.3} parent=0 // pred_check
    %p18 = pneg %p17
  $region19: #{a_call__.3} parent=0 // pred_check_branch
    %20 = sbr.rel (%p18) target = $region21
  $region20: #{a_call__.3} parent=0 // pred_region
    %21 = vst [vmem:[#allocation2] sm:$0xff] 0.0
    %22 = vst [vmem:[#allocation3] sm:$0xff] 0.0
  $region21: #{a_call__.3} parent=0 // pred_fallthru
    _
  %v23 = vld [vmem:[%s0] sm:$0xff]
  %v24 = vld [vmem:[%s0 + $0x8] sm:$0xff]
  %v25 = vld [vmem:[%s0 + $0x10] sm:$0xff]
  %v26 = vld [vmem:[%s0 + $0x18] sm:$0xff]
  %v27 = vld [vmem:[%s0 + $0x20] sm:$0xff]
  %v28 = vld [vmem:[%s0 + $0x28] sm:$0xff]
  %v29 = vld [vmem:[%s0 + $0x30] sm:$0xff]
  %v30 = vld [vmem:[%s0 + $0x38] sm:$0xff]
  %v31 = vld [vmem:[%s1] sm:$0xff]
  %v32 = vld [vmem:[%s1 + $0x8] sm:$0xff]
  %v33 = vld [vmem:[%s1 + $0x10] sm:$0xff]
  %v34 = vld [vmem:[%s1 + $0x18] sm:$0xff]
  %v35 = vld [vmem:[%s1 + $0x20] sm:$0xff]
  %v36 = vld [vmem:[%s1 + $0x28] sm:$0xff]
  %v37 = vld [vmem:[%s1 + $0x30] sm:$0xff]
  %v38 = vld [vmem:[%s1 + $0x38] sm:$0xff]
  %v39 = vld [vmem:[%s1 + $0x40] sm:$0xff]
  %v40 = vld [vmem:[%s1 + $0x48] sm:$0xff]
  %v41 = vld [vmem:[%s1 + $0x50] sm:$0xff]
  %v42 = vld [vmem:[%s1 + $0x58] sm:$0xff]
  %v43 = vld [vmem:[%s1 + $0x60] sm:$0xff]
  %v44 = vld [vmem:[%s1 + $0x68] sm:$0xff]
  %v45 = vld [vmem:[%s1 + $0x70] sm:$0xff]
  %v46 = vld [vmem:[%s1 + $0x78] sm:$0xff]
  %v47 = vld [vmem:[%s1 + $0x80] sm:$0xff]
  %v48 = vld [vmem:[%s1 + $0x88] sm:$0xff]
  %v49 = vld [vmem:[%s1 + $0x90] sm:$0xff]
  %v50 = vld [vmem:[%s1 + $0x98] sm:$0xff]
  %v51 = vld [vmem:[%s1 + $0xa0] sm:$0xff]
  %v52 = vld [vmem:[%s1 + $0xa8] sm:$0xff]
  %v53 = vld [vmem:[%s1 + $0xb0] sm:$0xff]
  %v54 = vld [vmem:[%s1 + $0xb8] sm:$0xff]
  %v55 = vld [vmem:[%s1 + $0xc0] sm:$0xff]
  %v56 = vld [vmem:[%s1 + $0xc8] sm:$0xff]
  %v57 = vld [vmem:[%s1 + $0xd0] sm:$0xff]
  %v58 = vld [vmem:[%s1 + $0xd8] sm:$0xff]
  %v59 = vld [vmem:[%s1 + $0xe0] sm:$0xff]
  %v60 = vld [vmem:[%s1 + $0xe8] sm:$0xff]
  %v61 = vld [vmem:[%s1 + $0xf0] sm:$0xff]
  %v62 = vld [vmem:[%s1 + $0xf8] sm:$0xff]
  %v63 = vld [vmem:[%s1 + $0x100] sm:$0xff]
  %v64 = vld [vmem:[%s1 + $0x108] sm:$0xff]
  %v65 = vld [vmem:[%s1 + $0x110] sm:$0xff]
  %v66 = vld [vmem:[%s1 + $0x118] sm:$0xff]
  %v67 = vld [vmem:[%s1 + $0x120] sm:$0xff]
  %v68 = vld [vmem:[%s1 + $0x128] sm:$0xff]
  %v69 = vld [vmem:[%s1 + $0x130] sm:$0xff]
  %v70 = vld [vmem:[%s1 + $0x138] sm:$0xff]
  %v71 = vld [vmem:[%s1 + $0x140] sm:$0xff]
  %v72 = vld [vmem:[%s1 + $0x148] sm:$0xff]
  %v73 = vld [vmem:[%s1 + $0x150] sm:$0xff]
  %v74 = vld [vmem:[%s1 + $0x158] sm:$0xff]
  %v75 = vld [vmem:[%s1 + $0x160] sm:$0xff]
  %v76 = vld [vmem:[%s1 + $0x168] sm:$0xff]
  %v77 = vld [vmem:[%s1 + $0x170] sm:$0xff]
  %v78 = vld [vmem:[%s1 + $0x178] sm:$0xff]
  %v79 = vld [vmem:[%s1 + $0x180] sm:$0xff]
  %v80 = vld [vmem:[%s1 + $0x188] sm:$0xff]
  %v81 = vld [vmem:[%s1 + $0x190] sm:$0xff]
  %v82 = vld [vmem:[%s1 + $0x198] sm:$0xff]
  %v83 = vld [vmem:[%s1 + $0x1a0] sm:$0xff]
  %v84 = vld [vmem:[%s1 + $0x1a8] sm:$0xff]
  %v85 = vld [vmem:[%s1 + $0x1b0] sm:$0xff]
  %v86 = vld [vmem:[%s1 + $0x1b8] sm:$0xff]
  %v87 = vld [vmem:[%s1 + $0x1c0] sm:$0xff]
  %v88 = vld [vmem:[%s1 + $0x1c8] sm:$0xff]
  %v89 = vld [vmem:[%s1 + $0x1d0] sm:$0xff]
  %v90 = vld [vmem:[%s1 + $0x1d8] sm:$0xff]
  %v91 = vld [vmem:[%s1 + $0x1e0] sm:$0xff]
  %v92 = vld [vmem:[%s1 + $0x1e8] sm:$0xff]
  %v93 = vld [vmem:[%s1 + $0x1f0] sm:$0xff]
  %v94 = vld [vmem:[%s1 + $0x1f8] sm:$0xff]
  %v95 = vld [vmem:[%s3] sm:$0xf]
  %v97 = vperm.slane %v95, 0
  %v98 = vperm.slane %v95, 1
  %v99 = vperm.slane %v95, 2
  %v100 = vperm.slane %v95, 3
  %105 = vmatpush.msra.mxu0 %v91
  %106 = vmatpush.msra.mxu0 %v87
  %107 = vmatpush.msra.mxu0 %v83
  %108 = vmatpush.msra.mxu0 %v79
  %109 = vmatpush.msra.mxu0 %v75
  %110 = vmatpush.msra.mxu0 %v71
  %111 = vmatpush.msra.mxu0 %v67
  %112 = vmatpush.msra.mxu0 %v63
  %113 = vmatpush.msra.mxu0 %v59
  %114 = vmatpush.msra.mxu0 %v55
  %115 = vmatpush.msra.mxu0 %v51
  %116 = vmatpush.msra.mxu0 %v47
  %117 = vmatpush.msra.mxu0 %v43
  %118 = vmatpush.msra.mxu0 %v39
  %119 = vmatpush.msra.mxu0 %v35
  %120 = vmatpush.msra.mxu0 %v31
  %121 = vmatmul.f32.gmra.mxu0 %v23
  %v122 = vpop.f32.mrf.mxu0
  %v123 = vadd.f32 %v97, %v122
  %124 = vmatmul.f32.gmra.mxu0 %v24
  %v125 = vpop.f32.mrf.mxu0
  %v126 = vadd.f32 %v97, %v125
  %127 = vmatmul.f32.gmra.mxu0 %v25
  %v128 = vpop.f32.mrf.mxu0
  %v129 = vadd.f32 %v97, %v128
  %130 = vmatmul.f32.gmra.mxu0 %v26
  %v131 = vpop.f32.mrf.mxu0
  %v132 = vadd.f32 %v97, %v131
  %133 = vmatmul.f32.gmra.mxu0 %v27
  %v134 = vpop.f32.mrf.mxu0
  %v135 = vadd.f32 %v97, %v134
  %136 = vmatmul.f32.gmra.mxu0 %v28
  %v137 = vpop.f32.mrf.mxu0
  %v138 = vadd.f32 %v97, %v137
  %139 = vmatmul.f32.gmra.mxu0 %v29
  %v140 = vpop.f32.mrf.mxu0
  %v141 = vadd.f32 %v97, %v140
  %142 = vmatmul.f32.gmra.mxu0 %v30
  %v143 = vpop.f32.mrf.mxu0
  %v144 = vadd.f32 %v97, %v143
  %145 = vdwg.mxu0
  %146 = vmatpush.msra.mxu0 %v92
  %147 = vmatpush.msra.mxu0 %v88
  %148 = vmatpush.msra.mxu0 %v84
  %149 = vmatpush.msra.mxu0 %v80
  %150 = vmatpush.msra.mxu0 %v76
  %151 = vmatpush.msra.mxu0 %v72
  %152 = vmatpush.msra.mxu0 %v68
  %153 = vmatpush.msra.mxu0 %v64
  %154 = vmatpush.msra.mxu0 %v60
  %155 = vmatpush.msra.mxu0 %v56
  %156 = vmatpush.msra.mxu0 %v52
  %157 = vmatpush.msra.mxu0 %v48
  %158 = vmatpush.msra.mxu0 %v44
  %159 = vmatpush.msra.mxu0 %v40
  %160 = vmatpush.msra.mxu0 %v36
  %161 = vmatpush.msra.mxu0 %v32
  %162 = vmatmul.f32.gmra.mxu0 %v23
  %v163 = vpop.f32.mrf.mxu0
  %v164 = vadd.f32 %v98, %v163
  %165 = vmatmul.f32.gmra.mxu0 %v24
  %v166 = vpop.f32.mrf.mxu0
  %v167 = vadd.f32 %v98, %v166
  %168 = vmatmul.f32.gmra.mxu0 %v25
  %v169 = vpop.f32.mrf.mxu0
  %v170 = vadd.f32 %v98, %v169
  %171 = vmatmul.f32.gmra.mxu0 %v26
  %v172 = vpop.f32.mrf.mxu0
  %v173 = vadd.f32 %v98, %v172
  %174 = vmatmul.f32.gmra.mxu0 %v27
  %v175 = vpop.f32.mrf.mxu0
  %v176 = vadd.f32 %v98, %v175
  %177 = vmatmul.f32.gmra.mxu0 %v28
  %v178 = vpop.f32.mrf.mxu0
  %v179 = vadd.f32 %v98, %v178
  %180 = vmatmul.f32.gmra.mxu0 %v29
  %v181 = vpop.f32.mrf.mxu0
  %v182 = vadd.f32 %v98, %v181
  %183 = vmatmul.f32.gmra.mxu0 %v30
  %v184 = vpop.f32.mrf.mxu0
  %v185 = vadd.f32 %v98, %v184
  %186 = vdwg.mxu0
  %187 = vmatpush.msra.mxu0 %v93
  %188 = vmatpush.msra.mxu0 %v89
  %189 = vmatpush.msra.mxu0 %v85
  %190 = vmatpush.msra.mxu0 %v81
  %191 = vmatpush.msra.mxu0 %v77
  %192 = vmatpush.msra.mxu0 %v73
  %193 = vmatpush.msra.mxu0 %v69
  %194 = vmatpush.msra.mxu0 %v65
  %195 = vmatpush.msra.mxu0 %v61
  %196 = vmatpush.msra.mxu0 %v57
  %197 = vmatpush.msra.mxu0 %v53
  %198 = vmatpush.msra.mxu0 %v49
  %199 = vmatpush.msra.mxu0 %v45
  %200 = vmatpush.msra.mxu0 %v41
  %201 = vmatpush.msra.mxu0 %v37
  %202 = vmatpush.msra.mxu0 %v33
  %203 = vmatmul.f32.gmra.mxu0 %v23
  %v204 = vpop.f32.mrf.mxu0
  %v205 = vadd.f32 %v99, %v204
  %206 = vmatmul.f32.gmra.mxu0 %v24
  %v207 = vpop.f32.mrf.mxu0
  %v208 = vadd.f32 %v99, %v207
  %209 = vmatmul.f32.gmra.mxu0 %v25
  %v210 = vpop.f32.mrf.mxu0
  %v211 = vadd.f32 %v99, %v210
  %212 = vmatmul.f32.gmra.mxu0 %v26
  %v213 = vpop.f32.mrf.mxu0
  %v214 = vadd.f32 %v99, %v213
  %215 = vmatmul.f32.gmra.mxu0 %v27
  %v216 = vpop.f32.mrf.mxu0
  %v217 = vadd.f32 %v99, %v216
  %218 = vmatmul.f32.gmra.mxu0 %v28
  %v219 = vpop.f32.mrf.mxu0
  %v220 = vadd.f32 %v99, %v219
  %221 = vmatmul.f32.gmra.mxu0 %v29
  %v222 = vpop.f32.mrf.mxu0
  %v223 = vadd.f32 %v99, %v222
  %224 = vmatmul.f32.gmra.mxu0 %v30
  %v225 = vpop.f32.mrf.mxu0
  %v226 = vadd.f32 %v99, %v225
  %227 = vdwg.mxu0
  %228 = vmatpush.msra.mxu0 %v94
  %229 = vmatpush.msra.mxu0 %v90
  %230 = vmatpush.msra.mxu0 %v86
  %231 = vmatpush.msra.mxu0 %v82
  %232 = vmatpush.msra.mxu0 %v78
  %233 = vmatpush.msra.mxu0 %v74
  %234 = vmatpush.msra.mxu0 %v70
  %235 = vmatpush.msra.mxu0 %v66
  %236 = vmatpush.msra.mxu0 %v62
  %237 = vmatpush.msra.mxu0 %v58
  %238 = vmatpush.msra.mxu0 %v54
  %239 = vmatpush.msra.mxu0 %v50
  %240 = vmatpush.msra.mxu0 %v46
  %241 = vmatpush.msra.mxu0 %v42
  %242 = vmatpush.msra.mxu0 %v38
  %243 = vmatpush.msra.mxu0 %v34
  %244 = vmatmul.f32.gmra.mxu0 %v23
  %v245 = vpop.f32.mrf.mxu0
  %v246 = vadd.f32 %v100, %v245
  %247 = vmatmul.f32.gmra.mxu0 %v24
  %v248 = vpop.f32.mrf.mxu0
  %v249 = vadd.f32 %v100, %v248
  %250 = vmatmul.f32.gmra.mxu0 %v25
  %v251 = vpop.f32.mrf.mxu0
  %v252 = vadd.f32 %v100, %v251
  %253 = vmatmul.f32.gmra.mxu0 %v26
  %v254 = vpop.f32.mrf.mxu0
  %v255 = vadd.f32 %v100, %v254
  %256 = vmatmul.f32.gmra.mxu0 %v27
  %v257 = vpop.f32.mrf.mxu0
  %v258 = vadd.f32 %v100, %v257
  %259 = vmatmul.f32.gmra.mxu0 %v28
  %v260 = vpop.f32.mrf.mxu0
  %v261 = vadd.f32 %v100, %v260
  %262 = vmatmul.f32.gmra.mxu0 %v29
  %v263 = vpop.f32.mrf.mxu0
  %v264 = vadd.f32 %v100, %v263
  %265 = vmatmul.f32.gmra.mxu0 %v30
  %v266 = vpop.f32.mrf.mxu0
  %v267 = vadd.f32 %v100, %v266
  %268 = vdwg.mxu0
  %269 = vst [vmem:[#allocation4] sm:$0xff] %v123
  %270 = vst [vmem:[#allocation4 + $0x8] sm:$0xff] %v164
  %271 = vst [vmem:[#allocation4 + $0x10] sm:$0xff] %v205
  %272 = vst [vmem:[#allocation4 + $0x18] sm:$0xff] %v246
  %273 = vst [vmem:[#allocation4 + $0x20] sm:$0xff] %v126
  %274 = vst [vmem:[#allocation4 + $0x28] sm:$0xff] %v167
  %275 = vst [vmem:[#allocation4 + $0x30] sm:$0xff] %v208
  %276 = vst [vmem:[#allocation4 + $0x38] sm:$0xff] %v249
  %277 = vst [vmem:[#allocation4 + $0x40] sm:$0xff] %v129
  %278 = vst [vmem:[#allocation4 + $0x48] sm:$0xff] %v170
  %279 = vst [vmem:[#allocation4 + $0x50] sm:$0xff] %v211
  %280 = vst [vmem:[#allocation4 + $0x58] sm:$0xff] %v252
  %281 = vst [vmem:[#allocation4 + $0x60] sm:$0xff] %v132
  %282 = vst [vmem:[#allocation4 + $0x68] sm:$0xff] %v173
  %283 = vst [vmem:[#allocation4 + $0x70] sm:$0xff] %v214
  %284 = vst [vmem:[#allocation4 + $0x78] sm:$0xff] %v255
  %285 = vst [vmem:[#allocation4 + $0x80] sm:$0xff] %v135
  %286 = vst [vmem:[#allocation4 + $0x88] sm:$0xff] %v176
  %287 = vst [vmem:[#allocation4 + $0x90] sm:$0xff] %v217
  %288 = vst [vmem:[#allocation4 + $0x98] sm:$0xff] %v258
  %289 = vst [vmem:[#allocation4 + $0xa0] sm:$0xff] %v138
  %290 = vst [vmem:[#allocation4 + $0xa8] sm:$0xff] %v179
  %291 = vst [vmem:[#allocation4 + $0xb0] sm:$0xff] %v220
  %292 = vst [vmem:[#allocation4 + $0xb8] sm:$0xff] %v261
  %293 = vst [vmem:[#allocation4 + $0xc0] sm:$0xff] %v141
  %294 = vst [vmem:[#allocation4 + $0xc8] sm:$0xff] %v182
  %295 = vst [vmem:[#allocation4 + $0xd0] sm:$0xff] %v223
  %296 = vst [vmem:[#allocation4 + $0xd8] sm:$0xff] %v264
  %297 = vst [vmem:[#allocation4 + $0xe0] sm:$0xff] %v144
  %298 = vst [vmem:[#allocation4 + $0xe8] sm:$0xff] %v185
  %299 = vst [vmem:[#allocation4 + $0xf0] sm:$0xff] %v226
  %300 = vst [vmem:[#allocation4 + $0xf8] sm:$0xff] %v267
  %v301 = vld [vmem:[%s2] sm:$0xff]
  %v302 = vld [vmem:[%s2 + $0x8] sm:$0xff]
  %v303 = vld [vmem:[%s2 + $0x10] sm:$0xff]
  %v304 = vld [vmem:[%s2 + $0x18] sm:$0xff]
  %v305 = vld [vmem:[%s2 + $0x20] sm:$0xff]
  %v306 = vld [vmem:[%s2 + $0x28] sm:$0xff]
  %v307 = vld [vmem:[%s2 + $0x30] sm:$0xff]
  %v308 = vld [vmem:[%s2 + $0x38] sm:$0xff]
  %v309 = vld [vmem:[%s2 + $0x40] sm:$0xff]
  %v310 = vld [vmem:[%s2 + $0x48] sm:$0xff]
  %v311 = vld [vmem:[%s2 + $0x50] sm:$0xff]
  %v312 = vld [vmem:[%s2 + $0x58] sm:$0xff]
  %v313 = vld [vmem:[%s2 + $0x60] sm:$0xff]
  %v314 = vld [vmem:[%s2 + $0x68] sm:$0xff]
  %v315 = vld [vmem:[%s2 + $0x70] sm:$0xff]
  %v316 = vld [vmem:[%s2 + $0x78] sm:$0xff]
  %v317 = vld [vmem:[%s2 + $0x80] sm:$0xff]
  %v318 = vld [vmem:[%s2 + $0x88] sm:$0xff]
  %v319 = vld [vmem:[%s2 + $0x90] sm:$0xff]
  %v320 = vld [vmem:[%s2 + $0x98] sm:$0xff]
  %v321 = vld [vmem:[%s2 + $0xa0] sm:$0xff]
  %v322 = vld [vmem:[%s2 + $0xa8] sm:$0xff]
  %v323 = vld [vmem:[%s2 + $0xb0] sm:$0xff]
  %v324 = vld [vmem:[%s2 + $0xb8] sm:$0xff]
  %v325 = vld [vmem:[%s2 + $0xc0] sm:$0xff]
  %v326 = vld [vmem:[%s2 + $0xc8] sm:$0xff]
  %v327 = vld [vmem:[%s2 + $0xd0] sm:$0xff]
  %v328 = vld [vmem:[%s2 + $0xd8] sm:$0xff]
  %v329 = vld [vmem:[%s2 + $0xe0] sm:$0xff]
  %v330 = vld [vmem:[%s2 + $0xe8] sm:$0xff]
  %v331 = vld [vmem:[%s2 + $0xf0] sm:$0xff]
  %v332 = vld [vmem:[%s2 + $0xf8] sm:$0xff]
  %v333 = vld [vmem:[%s2 + $0x100] sm:$0xff]
  %v334 = vld [vmem:[%s2 + $0x108] sm:$0xff]
  %v335 = vld [vmem:[%s2 + $0x110] sm:$0xff]
  %v336 = vld [vmem:[%s2 + $0x118] sm:$0xff]
  %v337 = vld [vmem:[%s2 + $0x120] sm:$0xff]
  %v338 = vld [vmem:[%s2 + $0x128] sm:$0xff]
  %v339 = vld [vmem:[%s2 + $0x130] sm:$0xff]
  %v340 = vld [vmem:[%s2 + $0x138] sm:$0xff]
  %v341 = vld [vmem:[%s2 + $0x140] sm:$0xff]
  %v342 = vld [vmem:[%s2 + $0x148] sm:$0xff]
  %v343 = vld [vmem:[%s2 + $0x150] sm:$0xff]
  %v344 = vld [vmem:[%s2 + $0x158] sm:$0xff]
  %v345 = vld [vmem:[%s2 + $0x160] sm:$0xff]
  %v346 = vld [vmem:[%s2 + $0x168] sm:$0xff]
  %v347 = vld [vmem:[%s2 + $0x170] sm:$0xff]
  %v348 = vld [vmem:[%s2 + $0x178] sm:$0xff]
  %v349 = vld [vmem:[%s2 + $0x180] sm:$0xff]
  %v350 = vld [vmem:[%s2 + $0x188] sm:$0xff]
  %v351 = vld [vmem:[%s2 + $0x190] sm:$0xff]
  %v352 = vld [vmem:[%s2 + $0x198] sm:$0xff]
  %v353 = vld [vmem:[%s2 + $0x1a0] sm:$0xff]
  %v354 = vld [vmem:[%s2 + $0x1a8] sm:$0xff]
  %v355 = vld [vmem:[%s2 + $0x1b0] sm:$0xff]
  %v356 = vld [vmem:[%s2 + $0x1b8] sm:$0xff]
  %v357 = vld [vmem:[%s2 + $0x1c0] sm:$0xff]
  %v358 = vld [vmem:[%s2 + $0x1c8] sm:$0xff]
  %v359 = vld [vmem:[%s2 + $0x1d0] sm:$0xff]
  %v360 = vld [vmem:[%s2 + $0x1d8] sm:$0xff]
  %v361 = vld [vmem:[%s2 + $0x1e0] sm:$0xff]
  %v362 = vld [vmem:[%s2 + $0x1e8] sm:$0xff]
  %v363 = vld [vmem:[%s2 + $0x1f0] sm:$0xff]
  %v364 = vld [vmem:[%s2 + $0x1f8] sm:$0xff]
  %v365 = vld [vmem:[#allocation2] sm:$0xff]
  %v366 = vld [vmem:[#allocation3] sm:$0xff]
  %v367 = vld [vmem:[#allocation4] sm:$0xff]
  %v368 = vld [vmem:[#allocation4 + $0x8] sm:$0xff]
  %v369 = vld [vmem:[#allocation4 + $0x10] sm:$0xff]
  %v370 = vld [vmem:[#allocation4 + $0x18] sm:$0xff]
  %371 = vmatpush.msra.mxu0 %v361
  %372 = vmatpush.msra.mxu0 %v357
  %373 = vmatpush.msra.mxu0 %v353
  %374 = vmatpush.msra.mxu0 %v349
  %375 = vmatpush.msra.mxu0 %v345
  %376 = vmatpush.msra.mxu0 %v341
  %377 = vmatpush.msra.mxu0 %v337
  %378 = vmatpush.msra.mxu0 %v333
  %379 = vmatpush.msra.mxu0 %v329
  %380 = vmatpush.msra.mxu0 %v325
  %381 = vmatpush.msra.mxu0 %v321
  %382 = vmatpush.msra.mxu0 %v317
  %383 = vmatpush.msra.mxu0 %v313
  %384 = vmatpush.msra.mxu0 %v309
  %385 = vmatpush.msra.mxu0 %v305
  %386 = vmatpush.msra.mxu0 %v301
  %387 = vmatmul.f32.gmra.mxu0 %v365
  %v388 = vpop.f32.mrf.mxu0
  %v389 = vadd.f32 0.0, %v388
  %390 = vdwg.mxu0
  %391 = vmatpush.msra.mxu0 %v362
  %392 = vmatpush.msra.mxu0 %v358
  %393 = vmatpush.msra.mxu0 %v354
  %394 = vmatpush.msra.mxu0 %v350
  %395 = vmatpush.msra.mxu0 %v346
  %396 = vmatpush.msra.mxu0 %v342
  %397 = vmatpush.msra.mxu0 %v338
  %398 = vmatpush.msra.mxu0 %v334
  %399 = vmatpush.msra.mxu0 %v330
  %400 = vmatpush.msra.mxu0 %v326
  %401 = vmatpush.msra.mxu0 %v322
  %402 = vmatpush.msra.mxu0 %v318
  %403 = vmatpush.msra.mxu0 %v314
  %404 = vmatpush.msra.mxu0 %v310
  %405 = vmatpush.msra.mxu0 %v306
  %406 = vmatpush.msra.mxu0 %v302
  %407 = vmatmul.f32.gmra.mxu0 %v365
  %v408 = vpop.f32.mrf.mxu0
  %v409 = vadd.f32 0.0, %v408
  %410 = vdwg.mxu0
  %411 = vmatpush.msra.mxu0 %v363
  %412 = vmatpush.msra.mxu0 %v359
  %413 = vmatpush.msra.mxu0 %v355
  %414 = vmatpush.msra.mxu0 %v351
  %415 = vmatpush.msra.mxu0 %v347
  %416 = vmatpush.msra.mxu0 %v343
  %417 = vmatpush.msra.mxu0 %v339
  %418 = vmatpush.msra.mxu0 %v335
  %419 = vmatpush.msra.mxu0 %v331
  %420 = vmatpush.msra.mxu0 %v327
  %421 = vmatpush.msra.mxu0 %v323
  %422 = vmatpush.msra.mxu0 %v319
  %423 = vmatpush.msra.mxu0 %v315
  %424 = vmatpush.msra.mxu0 %v311
  %425 = vmatpush.msra.mxu0 %v307
  %426 = vmatpush.msra.mxu0 %v303
  %427 = vmatmul.f32.gmra.mxu0 %v365
  %v428 = vpop.f32.mrf.mxu0
  %v429 = vadd.f32 0.0, %v428
  %430 = vdwg.mxu0
  %431 = vmatpush.msra.mxu0 %v364
  %432 = vmatpush.msra.mxu0 %v360
  %433 = vmatpush.msra.mxu0 %v356
  %434 = vmatpush.msra.mxu0 %v352
  %435 = vmatpush.msra.mxu0 %v348
  %436 = vmatpush.msra.mxu0 %v344
  %437 = vmatpush.msra.mxu0 %v340
  %438 = vmatpush.msra.mxu0 %v336
  %439 = vmatpush.msra.mxu0 %v332
  %440 = vmatpush.msra.mxu0 %v328
  %441 = vmatpush.msra.mxu0 %v324
  %442 = vmatpush.msra.mxu0 %v320
  %443 = vmatpush.msra.mxu0 %v316
  %444 = vmatpush.msra.mxu0 %v312
  %445 = vmatpush.msra.mxu0 %v308
  %446 = vmatpush.msra.mxu0 %v304
  %447 = vmatmul.f32.gmra.mxu0 %v365
  %v448 = vpop.f32.mrf.mxu0
  %v449 = vadd.f32 0.0, %v448
  %450 = vdwg.mxu0
  %v451 = vadd.f32 %v367, %v389
  %v452 = vadd.f32 %v368, %v409
  %v453 = vadd.f32 %v369, %v429
  %v454 = vadd.f32 %v370, %v449
  %v455 = vxor.u32 %v451, 2147483648
  %v456 = vmul.f32 %v455, 1.442695
  %v457 = vpow.pop %v456
  %v458 = vadd.f32 %v457, 1.0
  %v459 = vrcp.pop %v458
  %v460 = vmul.f32 %v458, %v459
  %v461 = vsub.f32 1.0, %v460
  %v462 = vmul.f32 %v459, %v461
  %v463 = vadd.f32 %v459, %v462
  %vm464 = vweird.f32 %v458
  %vm465 = vweird.f32 %v459
  %vm466 = vmor %vm464, %vm465
  %v467 = vsel %vm466, %v459, %v463
  %v468 = vand.u32 2147483647, %v458
  %vm469 = vcmp.eq.f32.partialorder %v468, 8.507059e+37
  %v470 = vand.u32 %v458, 2147483648
  %v471 = vor.u32 1.1754944e-38, %v470
  %v472 = vsel %vm469, %v471, %v467
  %v473 = vmul.f32 1.0, %v472
  %v474 = vxor.u32 %v452, 2147483648
  %v475 = vmul.f32 %v474, 1.442695
  %v476 = vpow.pop %v475
  %v477 = vadd.f32 %v476, 1.0
  %v478 = vrcp.pop %v477
  %v479 = vmul.f32 %v477, %v478
  %v480 = vsub.f32 1.0, %v479
  %v481 = vmul.f32 %v478, %v480
  %v482 = vadd.f32 %v478, %v481
  %vm483 = vweird.f32 %v477
  %vm484 = vweird.f32 %v478
  %vm485 = vmor %vm483, %vm484
  %v486 = vsel %vm485, %v478, %v482
  %v487 = vand.u32 2147483647, %v477
  %vm488 = vcmp.eq.f32.partialorder %v487, 8.507059e+37
  %v489 = vand.u32 %v477, 2147483648
  %v490 = vor.u32 1.1754944e-38, %v489
  %v491 = vsel %vm488, %v490, %v486
  %v492 = vmul.f32 1.0, %v491
  %v493 = vtanh.pop %v453
  %v494 = vxor.u32 %v454, 2147483648
  %v495 = vmul.f32 %v494, 1.442695
  %v496 = vpow.pop %v495
  %v497 = vadd.f32 %v496, 1.0
  %v498 = vrcp.pop %v497
  %v499 = vmul.f32 %v497, %v498
  %v500 = vsub.f32 1.0, %v499
  %v501 = vmul.f32 %v498, %v500
  %v502 = vadd.f32 %v498, %v501
  %vm503 = vweird.f32 %v497
  %vm504 = vweird.f32 %v498
  %vm505 = vmor %vm503, %vm504
  %v506 = vsel %vm505, %v498, %v502
  %v507 = vand.u32 2147483647, %v497
  %vm508 = vcmp.eq.f32.partialorder %v507, 8.507059e+37
  %v509 = vand.u32 %v497, 2147483648
  %v510 = vor.u32 1.1754944e-38, %v509
  %v511 = vsel %vm508, %v510, %v506
  %v512 = vmul.f32 1.0, %v511
  %v513 = vmul.f32 %v492, %v366
  %v514 = vmul.f32 %v473, %v493
  %v515 = vadd.f32 %v513, %v514
  %v516 = vtanh.pop %v515
  %v517 = vmul.f32 %v512, %v516
  %518 = vst [vmem:[%s4] sm:$0xff] %v517
  %v519 = vld [vmem:[#allocation4 + $0x20] sm:$0xff]
  %v520 = vld [vmem:[#allocation4 + $0x28] sm:$0xff]
  %v521 = vld [vmem:[#allocation4 + $0x30] sm:$0xff]
  %v522 = vld [vmem:[#allocation4 + $0x38] sm:$0xff]
  %523 = vmatpush.msra.mxu0 %v361
  %524 = vmatpush.msra.mxu0 %v357
  %525 = vmatpush.msra.mxu0 %v353
  %526 = vmatpush.msra.mxu0 %v349
  %527 = vmatpush.msra.mxu0 %v345
  %528 = vmatpush.msra.mxu0 %v341
  %529 = vmatpush.msra.mxu0 %v337
  %530 = vmatpush.msra.mxu0 %v333
  %531 = vmatpush.msra.mxu0 %v329
  %532 = vmatpush.msra.mxu0 %v325
  %533 = vmatpush.msra.mxu0 %v321
  %534 = vmatpush.msra.mxu0 %v317
  %535 = vmatpush.msra.mxu0 %v313
  %536 = vmatpush.msra.mxu0 %v309
  %537 = vmatpush.msra.mxu0 %v305
  %538 = vmatpush.msra.mxu0 %v301
  %539 = vmatmul.f32.gmra.mxu0 %v517
  %v540 = vpop.f32.mrf.mxu0
  %v541 = vadd.f32 0.0, %v540
  %542 = vdwg.mxu0
  %543 = vmatpush.msra.mxu0 %v362
  %544 = vmatpush.msra.mxu0 %v358
  %545 = vmatpush.msra.mxu0 %v354
  %546 = vmatpush.msra.mxu0 %v350
  %547 = vmatpush.msra.mxu0 %v346
  %548 = vmatpush.msra.mxu0 %v342
  %549 = vmatpush.msra.mxu0 %v338
  %550 = vmatpush.msra.mxu0 %v334
  %551 = vmatpush.msra.mxu0 %v330
  %552 = vmatpush.msra.mxu0 %v326
  %553 = vmatpush.msra.mxu0 %v322
  %554 = vmatpush.msra.mxu0 %v318
  %555 = vmatpush.msra.mxu0 %v314
  %556 = vmatpush.msra.mxu0 %v310
  %557 = vmatpush.msra.mxu0 %v306
  %558 = vmatpush.msra.mxu0 %v302
  %559 = vmatmul.f32.gmra.mxu0 %v517
  %v560 = vpop.f32.mrf.mxu0
  %v561 = vadd.f32 0.0, %v560
  %562 = vdwg.mxu0
  %563 = vmatpush.msra.mxu0 %v363
  %564 = vmatpush.msra.mxu0 %v359
  %565 = vmatpush.msra.mxu0 %v355
  %566 = vmatpush.msra.mxu0 %v351
  %567 = vmatpush.msra.mxu0 %v347
  %568 = vmatpush.msra.mxu0 %v343
  %569 = vmatpush.msra.mxu0 %v339
  %570 = vmatpush.msra.mxu0 %v335
  %571 = vmatpush.msra.mxu0 %v331
  %572 = vmatpush.msra.mxu0 %v327
  %573 = vmatpush.msra.mxu0 %v323
  %574 = vmatpush.msra.mxu0 %v319
  %575 = vmatpush.msra.mxu0 %v315
  %576 = vmatpush.msra.mxu0 %v311
  %577 = vmatpush.msra.mxu0 %v307
  %578 = vmatpush.msra.mxu0 %v303
  %579 = vmatmul.f32.gmra.mxu0 %v517
  %v580 = vpop.f32.mrf.mxu0
  %v581 = vadd.f32 0.0, %v580
  %582 = vdwg.mxu0
  %583 = vmatpush.msra.mxu0 %v364
  %584 = vmatpush.msra.mxu0 %v360
  %585 = vmatpush.msra.mxu0 %v356
  %586 = vmatpush.msra.mxu0 %v352
  %587 = vmatpush.msra.mxu0 %v348
  %588 = vmatpush.msra.mxu0 %v344
  %589 = vmatpush.msra.mxu0 %v340
  %590 = vmatpush.msra.mxu0 %v336
  %591 = vmatpush.msra.mxu0 %v332
  %592 = vmatpush.msra.mxu0 %v328
  %593 = vmatpush.msra.mxu0 %v324
  %594 = vmatpush.msra.mxu0 %v320
  %595 = vmatpush.msra.mxu0 %v316
  %596 = vmatpush.msra.mxu0 %v312
  %597 = vmatpush.msra.mxu0 %v308
  %598 = vmatpush.msra.mxu0 %v304
  %599 = vmatmul.f32.gmra.mxu0 %v517
  %v600 = vpop.f32.mrf.mxu0
  %v601 = vadd.f32 0.0, %v600
  %602 = vdwg.mxu0
  %v603 = vadd.f32 %v519, %v541
  %v604 = vadd.f32 %v520, %v561
  %v605 = vadd.f32 %v521, %v581
  %v606 = vadd.f32 %v522, %v601
  %v607 = vxor.u32 %v603, 2147483648
  %v608 = vmul.f32 %v607, 1.442695
  %v609 = vpow.pop %v608
  %v610 = vadd.f32 %v609, 1.0
  %v611 = vrcp.pop %v610
  %v612 = vmul.f32 %v610, %v611
  %v613 = vsub.f32 1.0, %v612
  %v614 = vmul.f32 %v611, %v613
  %v615 = vadd.f32 %v611, %v614
  %vm616 = vweird.f32 %v610
  %vm617 = vweird.f32 %v611
  %vm618 = vmor %vm616, %vm617
  %v619 = vsel %vm618, %v611, %v615
  %v620 = vand.u32 2147483647, %v610
  %vm621 = vcmp.eq.f32.partialorder %v620, 8.507059e+37
  %v622 = vand.u32 %v610, 2147483648
  %v623 = vor.u32 1.1754944e-38, %v622
  %v624 = vsel %vm621, %v623, %v619
  %v625 = vmul.f32 1.0, %v624
  %v626 = vxor.u32 %v604, 2147483648
  %v627 = vmul.f32 %v626, 1.442695
  %v628 = vpow.pop %v627
  %v629 = vadd.f32 %v628, 1.0
  %v630 = vrcp.pop %v629
  %v631 = vmul.f32 %v629, %v630
  %v632 = vsub.f32 1.0, %v631
  %v633 = vmul.f32 %v630, %v632
  %v634 = vadd.f32 %v630, %v633
  %vm635 = vweird.f32 %v629
  %vm636 = vweird.f32 %v630
  %vm637 = vmor %vm635, %vm636
  %v638 = vsel %vm637, %v630, %v634
  %v639 = vand.u32 2147483647, %v629
  %vm640 = vcmp.eq.f32.partialorder %v639, 8.507059e+37
  %v641 = vand.u32 %v629, 2147483648
  %v642 = vor.u32 1.1754944e-38, %v641
  %v643 = vsel %vm640, %v642, %v638
  %v644 = vmul.f32 1.0, %v643
  %v645 = vtanh.pop %v605
  %v646 = vxor.u32 %v606, 2147483648
  %v647 = vmul.f32 %v646, 1.442695
  %v648 = vpow.pop %v647
  %v649 = vadd.f32 %v648, 1.0
  %v650 = vrcp.pop %v649
  %v651 = vmul.f32 %v649, %v650
  %v652 = vsub.f32 1.0, %v651
  %v653 = vmul.f32 %v650, %v652
  %v654 = vadd.f32 %v650, %v653
  %vm655 = vweird.f32 %v649
  %vm656 = vweird.f32 %v650
  %vm657 = vmor %vm655, %vm656
  %v658 = vsel %vm657, %v650, %v654
  %v659 = vand.u32 2147483647, %v649
  %vm660 = vcmp.eq.f32.partialorder %v659, 8.507059e+37
  %v661 = vand.u32 %v649, 2147483648
  %v662 = vor.u32 1.1754944e-38, %v661
  %v663 = vsel %vm660, %v662, %v658
  %v664 = vmul.f32 1.0, %v663
  %v665 = vmul.f32 %v644, %v515
  %v666 = vmul.f32 %v625, %v645
  %v667 = vadd.f32 %v665, %v666
  %v668 = vtanh.pop %v667
  %v669 = vmul.f32 %v664, %v668
  %670 = vst [vmem:[%s4 + $0x8] sm:$0xff] %v669
  %v671 = vld [vmem:[#allocation4 + $0x40] sm:$0xff]
  %v672 = vld [vmem:[#allocation4 + $0x48] sm:$0xff]
  %v673 = vld [vmem:[#allocation4 + $0x50] sm:$0xff]
  %v674 = vld [vmem:[#allocation4 + $0x58] sm:$0xff]
  %675 = vmatpush.msra.mxu0 %v361
  %676 = vmatpush.msra.mxu0 %v357
  %677 = vmatpush.msra.mxu0 %v353
  %678 = vmatpush.msra.mxu0 %v349
  %679 = vmatpush.msra.mxu0 %v345
  %680 = vmatpush.msra.mxu0 %v341
  %681 = vmatpush.msra.mxu0 %v337
  %682 = vmatpush.msra.mxu0 %v333
  %683 = vmatpush.msra.mxu0 %v329
  %684 = vmatpush.msra.mxu0 %v325
  %685 = vmatpush.msra.mxu0 %v321
  %686 = vmatpush.msra.mxu0 %v317
  %687 = vmatpush.msra.mxu0 %v313
  %688 = vmatpush.msra.mxu0 %v309
  %689 = vmatpush.msra.mxu0 %v305
  %690 = vmatpush.msra.mxu0 %v301
  %691 = vmatmul.f32.gmra.mxu0 %v669
  %v692 = vpop.f32.mrf.mxu0
  %v693 = vadd.f32 0.0, %v692
  %694 = vdwg.mxu0
  %695 = vmatpush.msra.mxu0 %v362
  %696 = vmatpush.msra.mxu0 %v358
  %697 = vmatpush.msra.mxu0 %v354
  %698 = vmatpush.msra.mxu0 %v350
  %699 = vmatpush.msra.mxu0 %v346
  %700 = vmatpush.msra.mxu0 %v342
  %701 = vmatpush.msra.mxu0 %v338
  %702 = vmatpush.msra.mxu0 %v334
  %703 = vmatpush.msra.mxu0 %v330
  %704 = vmatpush.msra.mxu0 %v326
  %705 = vmatpush.msra.mxu0 %v322
  %706 = vmatpush.msra.mxu0 %v318
  %707 = vmatpush.msra.mxu0 %v314
  %708 = vmatpush.msra.mxu0 %v310
  %709 = vmatpush.msra.mxu0 %v306
  %710 = vmatpush.msra.mxu0 %v302
  %711 = vmatmul.f32.gmra.mxu0 %v669
  %v712 = vpop.f32.mrf.mxu0
  %v713 = vadd.f32 0.0, %v712
  %714 = vdwg.mxu0
  %715 = vmatpush.msra.mxu0 %v363
  %716 = vmatpush.msra.mxu0 %v359
  %717 = vmatpush.msra.mxu0 %v355
  %718 = vmatpush.msra.mxu0 %v351
  %719 = vmatpush.msra.mxu0 %v347
  %720 = vmatpush.msra.mxu0 %v343
  %721 = vmatpush.msra.mxu0 %v339
  %722 = vmatpush.msra.mxu0 %v335
  %723 = vmatpush.msra.mxu0 %v331
  %724 = vmatpush.msra.mxu0 %v327
  %725 = vmatpush.msra.mxu0 %v323
  %726 = vmatpush.msra.mxu0 %v319
  %727 = vmatpush.msra.mxu0 %v315
  %728 = vmatpush.msra.mxu0 %v311
  %729 = vmatpush.msra.mxu0 %v307
  %730 = vmatpush.msra.mxu0 %v303
  %731 = vmatmul.f32.gmra.mxu0 %v669
  %v732 = vpop.f32.mrf.mxu0
  %v733 = vadd.f32 0.0, %v732
  %734 = vdwg.mxu0
  %735 = vmatpush.msra.mxu0 %v364
  %736 = vmatpush.msra.mxu0 %v360
  %737 = vmatpush.msra.mxu0 %v356
  %738 = vmatpush.msra.mxu0 %v352
  %739 = vmatpush.msra.mxu0 %v348
  %740 = vmatpush.msra.mxu0 %v344
  %741 = vmatpush.msra.mxu0 %v340
  %742 = vmatpush.msra.mxu0 %v336
  %743 = vmatpush.msra.mxu0 %v332
  %744 = vmatpush.msra.mxu0 %v328
  %745 = vmatpush.msra.mxu0 %v324
  %746 = vmatpush.msra.mxu0 %v320
  %747 = vmatpush.msra.mxu0 %v316
  %748 = vmatpush.msra.mxu0 %v312
  %749 = vmatpush.msra.mxu0 %v308
  %750 = vmatpush.msra.mxu0 %v304
  %751 = vmatmul.f32.gmra.mxu0 %v669
  %v752 = vpop.f32.mrf.mxu0
  %v753 = vadd.f32 0.0, %v752
  %754 = vdwg.mxu0
  %v755 = vadd.f32 %v671, %v693
  %v756 = vadd.f32 %v672, %v713
  %v757 = vadd.f32 %v673, %v733
  %v758 = vadd.f32 %v674, %v753
  %v759 = vxor.u32 %v755, 2147483648
  %v760 = vmul.f32 %v759, 1.442695
  %v761 = vpow.pop %v760
  %v762 = vadd.f32 %v761, 1.0
  %v763 = vrcp.pop %v762
  %v764 = vmul.f32 %v762, %v763
  %v765 = vsub.f32 1.0, %v764
  %v766 = vmul.f32 %v763, %v765
  %v767 = vadd.f32 %v763, %v766
  %vm768 = vweird.f32 %v762
  %vm769 = vweird.f32 %v763
  %vm770 = vmor %vm768, %vm769
  %v771 = vsel %vm770, %v763, %v767
  %v772 = vand.u32 2147483647, %v762
  %vm773 = vcmp.eq.f32.partialorder %v772, 8.507059e+37
  %v774 = vand.u32 %v762, 2147483648
  %v775 = vor.u32 1.1754944e-38, %v774
  %v776 = vsel %vm773, %v775, %v771
  %v777 = vmul.f32 1.0, %v776
  %v778 = vxor.u32 %v756, 2147483648
  %v779 = vmul.f32 %v778, 1.442695
  %v780 = vpow.pop %v779
  %v781 = vadd.f32 %v780, 1.0
  %v782 = vrcp.pop %v781
  %v783 = vmul.f32 %v781, %v782
  %v784 = vsub.f32 1.0, %v783
  %v785 = vmul.f32 %v782, %v784
  %v786 = vadd.f32 %v782, %v785
  %vm787 = vweird.f32 %v781
  %vm788 = vweird.f32 %v782
  %vm789 = vmor %vm787, %vm788
  %v790 = vsel %vm789, %v782, %v786
  %v791 = vand.u32 2147483647, %v781
  %vm792 = vcmp.eq.f32.partialorder %v791, 8.507059e+37
  %v793 = vand.u32 %v781, 2147483648
  %v794 = vor.u32 1.1754944e-38, %v793
  %v795 = vsel %vm792, %v794, %v790
  %v796 = vmul.f32 1.0, %v795
  %v797 = vtanh.pop %v757
  %v798 = vxor.u32 %v758, 2147483648
  %v799 = vmul.f32 %v798, 1.442695
  %v800 = vpow.pop %v799
  %v801 = vadd.f32 %v800, 1.0
  %v802 = vrcp.pop %v801
  %v803 = vmul.f32 %v801, %v802
  %v804 = vsub.f32 1.0, %v803
  %v805 = vmul.f32 %v802, %v804
  %v806 = vadd.f32 %v802, %v805
  %vm807 = vweird.f32 %v801
  %vm808 = vweird.f32 %v802
  %vm809 = vmor %vm807, %vm808
  %v810 = vsel %vm809, %v802, %v806
  %v811 = vand.u32 2147483647, %v801
  %vm812 = vcmp.eq.f32.partialorder %v811, 8.507059e+37
  %v813 = vand.u32 %v801, 2147483648
  %v814 = vor.u32 1.1754944e-38, %v813
  %v815 = vsel %vm812, %v814, %v810
  %v816 = vmul.f32 1.0, %v815
  %v817 = vmul.f32 %v796, %v667
  %v818 = vmul.f32 %v777, %v797
  %v819 = vadd.f32 %v817, %v818
  %v820 = vtanh.pop %v819
  %v821 = vmul.f32 %v816, %v820
  %822 = vst [vmem:[%s4 + $0x10] sm:$0xff] %v821
  %v823 = vld [vmem:[#allocation4 + $0x60] sm:$0xff]
  %v824 = vld [vmem:[#allocation4 + $0x68] sm:$0xff]
  %v825 = vld [vmem:[#allocation4 + $0x70] sm:$0xff]
  %v826 = vld [vmem:[#allocation4 + $0x78] sm:$0xff]
  %827 = vmatpush.msra.mxu0 %v361
  %828 = vmatpush.msra.mxu0 %v357
  %829 = vmatpush.msra.mxu0 %v353
  %830 = vmatpush.msra.mxu0 %v349
  %831 = vmatpush.msra.mxu0 %v345
  %832 = vmatpush.msra.mxu0 %v341
  %833 = vmatpush.msra.mxu0 %v337
  %834 = vmatpush.msra.mxu0 %v333
  %835 = vmatpush.msra.mxu0 %v329
  %836 = vmatpush.msra.mxu0 %v325
  %837 = vmatpush.msra.mxu0 %v321
  %838 = vmatpush.msra.mxu0 %v317
  %839 = vmatpush.msra.mxu0 %v313
  %840 = vmatpush.msra.mxu0 %v309
  %841 = vmatpush.msra.mxu0 %v305
  %842 = vmatpush.msra.mxu0 %v301
  %843 = vmatmul.f32.gmra.mxu0 %v821
  %v844 = vpop.f32.mrf.mxu0
  %v845 = vadd.f32 0.0, %v844
  %846 = vdwg.mxu0
  %847 = vmatpush.msra.mxu0 %v362
  %848 = vmatpush.msra.mxu0 %v358
  %849 = vmatpush.msra.mxu0 %v354
  %850 = vmatpush.msra.mxu0 %v350
  %851 = vmatpush.msra.mxu0 %v346
  %852 = vmatpush.msra.mxu0 %v342
  %853 = vmatpush.msra.mxu0 %v338
  %854 = vmatpush.msra.mxu0 %v334
  %855 = vmatpush.msra.mxu0 %v330
  %856 = vmatpush.msra.mxu0 %v326
  %857 = vmatpush.msra.mxu0 %v322
  %858 = vmatpush.msra.mxu0 %v318
  %859 = vmatpush.msra.mxu0 %v314
  %860 = vmatpush.msra.mxu0 %v310
  %861 = vmatpush.msra.mxu0 %v306
  %862 = vmatpush.msra.mxu0 %v302
  %863 = vmatmul.f32.gmra.mxu0 %v821
  %v864 = vpop.f32.mrf.mxu0
  %v865 = vadd.f32 0.0, %v864
  %866 = vdwg.mxu0
  %867 = vmatpush.msra.mxu0 %v363
  %868 = vmatpush.msra.mxu0 %v359
  %869 = vmatpush.msra.mxu0 %v355
  %870 = vmatpush.msra.mxu0 %v351
  %871 = vmatpush.msra.mxu0 %v347
  %872 = vmatpush.msra.mxu0 %v343
  %873 = vmatpush.msra.mxu0 %v339
  %874 = vmatpush.msra.mxu0 %v335
  %875 = vmatpush.msra.mxu0 %v331
  %876 = vmatpush.msra.mxu0 %v327
  %877 = vmatpush.msra.mxu0 %v323
  %878 = vmatpush.msra.mxu0 %v319
  %879 = vmatpush.msra.mxu0 %v315
  %880 = vmatpush.msra.mxu0 %v311
  %881 = vmatpush.msra.mxu0 %v307
  %882 = vmatpush.msra.mxu0 %v303
  %883 = vmatmul.f32.gmra.mxu0 %v821
  %v884 = vpop.f32.mrf.mxu0
  %v885 = vadd.f32 0.0, %v884
  %886 = vdwg.mxu0
  %887 = vmatpush.msra.mxu0 %v364
  %888 = vmatpush.msra.mxu0 %v360
  %889 = vmatpush.msra.mxu0 %v356
  %890 = vmatpush.msra.mxu0 %v352
  %891 = vmatpush.msra.mxu0 %v348
  %892 = vmatpush.msra.mxu0 %v344
  %893 = vmatpush.msra.mxu0 %v340
  %894 = vmatpush.msra.mxu0 %v336
  %895 = vmatpush.msra.mxu0 %v332
  %896 = vmatpush.msra.mxu0 %v328
  %897 = vmatpush.msra.mxu0 %v324
  %898 = vmatpush.msra.mxu0 %v320
  %899 = vmatpush.msra.mxu0 %v316
  %900 = vmatpush.msra.mxu0 %v312
  %901 = vmatpush.msra.mxu0 %v308
  %902 = vmatpush.msra.mxu0 %v304
  %903 = vmatmul.f32.gmra.mxu0 %v821
  %v904 = vpop.f32.mrf.mxu0
  %v905 = vadd.f32 0.0, %v904
  %906 = vdwg.mxu0
  %v907 = vadd.f32 %v823, %v845
  %v908 = vadd.f32 %v824, %v865
  %v909 = vadd.f32 %v825, %v885
  %v910 = vadd.f32 %v826, %v905
  %v911 = vxor.u32 %v907, 2147483648
  %v912 = vmul.f32 %v911, 1.442695
  %v913 = vpow.pop %v912
  %v914 = vadd.f32 %v913, 1.0
  %v915 = vrcp.pop %v914
  %v916 = vmul.f32 %v914, %v915
  %v917 = vsub.f32 1.0, %v916
  %v918 = vmul.f32 %v915, %v917
  %v919 = vadd.f32 %v915, %v918
  %vm920 = vweird.f32 %v914
  %vm921 = vweird.f32 %v915
  %vm922 = vmor %vm920, %vm921
  %v923 = vsel %vm922, %v915, %v919
  %v924 = vand.u32 2147483647, %v914
  %vm925 = vcmp.eq.f32.partialorder %v924, 8.507059e+37
  %v926 = vand.u32 %v914, 2147483648
  %v927 = vor.u32 1.1754944e-38, %v926
  %v928 = vsel %vm925, %v927, %v923
  %v929 = vmul.f32 1.0, %v928
  %v930 = vxor.u32 %v908, 2147483648
  %v931 = vmul.f32 %v930, 1.442695
  %v932 = vpow.pop %v931
  %v933 = vadd.f32 %v932, 1.0
  %v934 = vrcp.pop %v933
  %v935 = vmul.f32 %v933, %v934
  %v936 = vsub.f32 1.0, %v935
  %v937 = vmul.f32 %v934, %v936
  %v938 = vadd.f32 %v934, %v937
  %vm939 = vweird.f32 %v933
  %vm940 = vweird.f32 %v934
  %vm941 = vmor %vm939, %vm940
  %v942 = vsel %vm941, %v934, %v938
  %v943 = vand.u32 2147483647, %v933
  %vm944 = vcmp.eq.f32.partialorder %v943, 8.507059e+37
  %v945 = vand.u32 %v933, 2147483648
  %v946 = vor.u32 1.1754944e-38, %v945
  %v947 = vsel %vm944, %v946, %v942
  %v948 = vmul.f32 1.0, %v947
  %v949 = vtanh.pop %v909
  %v950 = vxor.u32 %v910, 2147483648
  %v951 = vmul.f32 %v950, 1.442695
  %v952 = vpow.pop %v951
  %v953 = vadd.f32 %v952, 1.0
  %v954 = vrcp.pop %v953
  %v955 = vmul.f32 %v953, %v954
  %v956 = vsub.f32 1.0, %v955
  %v957 = vmul.f32 %v954, %v956
  %v958 = vadd.f32 %v954, %v957
  %vm959 = vweird.f32 %v953
  %vm960 = vweird.f32 %v954
  %vm961 = vmor %vm959, %vm960
  %v962 = vsel %vm961, %v954, %v958
  %v963 = vand.u32 2147483647, %v953
  %vm964 = vcmp.eq.f32.partialorder %v963, 8.507059e+37
  %v965 = vand.u32 %v953, 2147483648
  %v966 = vor.u32 1.1754944e-38, %v965
  %v967 = vsel %vm964, %v966, %v962
  %v968 = vmul.f32 1.0, %v967
  %v969 = vmul.f32 %v948, %v819
  %v970 = vmul.f32 %v929, %v949
  %v971 = vadd.f32 %v969, %v970
  %v972 = vtanh.pop %v971
  %v973 = vmul.f32 %v968, %v972
  %974 = vst [vmem:[%s4 + $0x18] sm:$0xff] %v973
  %v975 = vld [vmem:[#allocation4 + $0x80] sm:$0xff]
  %v976 = vld [vmem:[#allocation4 + $0x88] sm:$0xff]
  %v977 = vld [vmem:[#allocation4 + $0x90] sm:$0xff]
  %v978 = vld [vmem:[#allocation4 + $0x98] sm:$0xff]
  %979 = vmatpush.msra.mxu0 %v361
  %980 = vmatpush.msra.mxu0 %v357
  %981 = vmatpush.msra.mxu0 %v353
  %982 = vmatpush.msra.mxu0 %v349
  %983 = vmatpush.msra.mxu0 %v345
  %984 = vmatpush.msra.mxu0 %v341
  %985 = vmatpush.msra.mxu0 %v337
  %986 = vmatpush.msra.mxu0 %v333
  %987 = vmatpush.msra.mxu0 %v329
  %988 = vmatpush.msra.mxu0 %v325
  %989 = vmatpush.msra.mxu0 %v321
  %990 = vmatpush.msra.mxu0 %v317
  %991 = vmatpush.msra.mxu0 %v313
  %992 = vmatpush.msra.mxu0 %v309
  %993 = vmatpush.msra.mxu0 %v305
  %994 = vmatpush.msra.mxu0 %v301
  %995 = vmatmul.f32.gmra.mxu0 %v973
  %v996 = vpop.f32.mrf.mxu0
  %v997 = vadd.f32 0.0, %v996
  %998 = vdwg.mxu0
  %999 = vmatpush.msra.mxu0 %v362
  %1000 = vmatpush.msra.mxu0 %v358
  %1001 = vmatpush.msra.mxu0 %v354
  %1002 = vmatpush.msra.mxu0 %v350
  %1003 = vmatpush.msra.mxu0 %v346
  %1004 = vmatpush.msra.mxu0 %v342
  %1005 = vmatpush.msra.mxu0 %v338
  %1006 = vmatpush.msra.mxu0 %v334
  %1007 = vmatpush.msra.mxu0 %v330
  %1008 = vmatpush.msra.mxu0 %v326
  %1009 = vmatpush.msra.mxu0 %v322
  %1010 = vmatpush.msra.mxu0 %v318
  %1011 = vmatpush.msra.mxu0 %v314
  %1012 = vmatpush.msra.mxu0 %v310
  %1013 = vmatpush.msra.mxu0 %v306
  %1014 = vmatpush.msra.mxu0 %v302
  %1015 = vmatmul.f32.gmra.mxu0 %v973
  %v1016 = vpop.f32.mrf.mxu0
  %v1017 = vadd.f32 0.0, %v1016
  %1018 = vdwg.mxu0
  %1019 = vmatpush.msra.mxu0 %v363
  %1020 = vmatpush.msra.mxu0 %v359
  %1021 = vmatpush.msra.mxu0 %v355
  %1022 = vmatpush.msra.mxu0 %v351
  %1023 = vmatpush.msra.mxu0 %v347
  %1024 = vmatpush.msra.mxu0 %v343
  %1025 = vmatpush.msra.mxu0 %v339
  %1026 = vmatpush.msra.mxu0 %v335
  %1027 = vmatpush.msra.mxu0 %v331
  %1028 = vmatpush.msra.mxu0 %v327
  %1029 = vmatpush.msra.mxu0 %v323
  %1030 = vmatpush.msra.mxu0 %v319
  %1031 = vmatpush.msra.mxu0 %v315
  %1032 = vmatpush.msra.mxu0 %v311
  %1033 = vmatpush.msra.mxu0 %v307
  %1034 = vmatpush.msra.mxu0 %v303
  %1035 = vmatmul.f32.gmra.mxu0 %v973
  %v1036 = vpop.f32.mrf.mxu0
  %v1037 = vadd.f32 0.0, %v1036
  %1038 = vdwg.mxu0
  %1039 = vmatpush.msra.mxu0 %v364
  %1040 = vmatpush.msra.mxu0 %v360
  %1041 = vmatpush.msra.mxu0 %v356
  %1042 = vmatpush.msra.mxu0 %v352
  %1043 = vmatpush.msra.mxu0 %v348
  %1044 = vmatpush.msra.mxu0 %v344
  %1045 = vmatpush.msra.mxu0 %v340
  %1046 = vmatpush.msra.mxu0 %v336
  %1047 = vmatpush.msra.mxu0 %v332
  %1048 = vmatpush.msra.mxu0 %v328
  %1049 = vmatpush.msra.mxu0 %v324
  %1050 = vmatpush.msra.mxu0 %v320
  %1051 = vmatpush.msra.mxu0 %v316
  %1052 = vmatpush.msra.mxu0 %v312
  %1053 = vmatpush.msra.mxu0 %v308
  %1054 = vmatpush.msra.mxu0 %v304
  %1055 = vmatmul.f32.gmra.mxu0 %v973
  %v1056 = vpop.f32.mrf.mxu0
  %v1057 = vadd.f32 0.0, %v1056
  %1058 = vdwg.mxu0
  %v1059 = vadd.f32 %v975, %v997
  %v1060 = vadd.f32 %v976, %v1017
  %v1061 = vadd.f32 %v977, %v1037
  %v1062 = vadd.f32 %v978, %v1057
  %v1063 = vxor.u32 %v1059, 2147483648
  %v1064 = vmul.f32 %v1063, 1.442695
  %v1065 = vpow.pop %v1064
  %v1066 = vadd.f32 %v1065, 1.0
  %v1067 = vrcp.pop %v1066
  %v1068 = vmul.f32 %v1066, %v1067
  %v1069 = vsub.f32 1.0, %v1068
  %v1070 = vmul.f32 %v1067, %v1069
  %v1071 = vadd.f32 %v1067, %v1070
  %vm1072 = vweird.f32 %v1066
  %vm1073 = vweird.f32 %v1067
  %vm1074 = vmor %vm1072, %vm1073
  %v1075 = vsel %vm1074, %v1067, %v1071
  %v1076 = vand.u32 2147483647, %v1066
  %vm1077 = vcmp.eq.f32.partialorder %v1076, 8.507059e+37
  %v1078 = vand.u32 %v1066, 2147483648
  %v1079 = vor.u32 1.1754944e-38, %v1078
  %v1080 = vsel %vm1077, %v1079, %v1075
  %v1081 = vmul.f32 1.0, %v1080
  %v1082 = vxor.u32 %v1060, 2147483648
  %v1083 = vmul.f32 %v1082, 1.442695
  %v1084 = vpow.pop %v1083
  %v1085 = vadd.f32 %v1084, 1.0
  %v1086 = vrcp.pop %v1085
  %v1087 = vmul.f32 %v1085, %v1086
  %v1088 = vsub.f32 1.0, %v1087
  %v1089 = vmul.f32 %v1086, %v1088
  %v1090 = vadd.f32 %v1086, %v1089
  %vm1091 = vweird.f32 %v1085
  %vm1092 = vweird.f32 %v1086
  %vm1093 = vmor %vm1091, %vm1092
  %v1094 = vsel %vm1093, %v1086, %v1090
  %v1095 = vand.u32 2147483647, %v1085
  %vm1096 = vcmp.eq.f32.partialorder %v1095, 8.507059e+37
  %v1097 = vand.u32 %v1085, 2147483648
  %v1098 = vor.u32 1.1754944e-38, %v1097
  %v1099 = vsel %vm1096, %v1098, %v1094
  %v1100 = vmul.f32 1.0, %v1099
  %v1101 = vtanh.pop %v1061
  %v1102 = vxor.u32 %v1062, 2147483648
  %v1103 = vmul.f32 %v1102, 1.442695
  %v1104 = vpow.pop %v1103
  %v1105 = vadd.f32 %v1104, 1.0
  %v1106 = vrcp.pop %v1105
  %v1107 = vmul.f32 %v1105, %v1106
  %v1108 = vsub.f32 1.0, %v1107
  %v1109 = vmul.f32 %v1106, %v1108
  %v1110 = vadd.f32 %v1106, %v1109
  %vm1111 = vweird.f32 %v1105
  %vm1112 = vweird.f32 %v1106
  %vm1113 = vmor %vm1111, %vm1112
  %v1114 = vsel %vm1113, %v1106, %v1110
  %v1115 = vand.u32 2147483647, %v1105
  %vm1116 = vcmp.eq.f32.partialorder %v1115, 8.507059e+37
  %v1117 = vand.u32 %v1105, 2147483648
  %v1118 = vor.u32 1.1754944e-38, %v1117
  %v1119 = vsel %vm1116, %v1118, %v1114
  %v1120 = vmul.f32 1.0, %v1119
  %v1121 = vmul.f32 %v1100, %v971
  %v1122 = vmul.f32 %v1081, %v1101
  %v1123 = vadd.f32 %v1121, %v1122
  %v1124 = vtanh.pop %v1123
  %v1125 = vmul.f32 %v1120, %v1124
  %1126 = vst [vmem:[%s4 + $0x20] sm:$0xff] %v1125
  %v1127 = vld [vmem:[#allocation4 + $0xa0] sm:$0xff]
  %v1128 = vld [vmem:[#allocation4 + $0xa8] sm:$0xff]
  %v1129 = vld [vmem:[#allocation4 + $0xb0] sm:$0xff]
  %v1130 = vld [vmem:[#allocation4 + $0xb8] sm:$0xff]
  %1131 = vmatpush.msra.mxu0 %v361
  %1132 = vmatpush.msra.mxu0 %v357
  %1133 = vmatpush.msra.mxu0 %v353
  %1134 = vmatpush.msra.mxu0 %v349
  %1135 = vmatpush.msra.mxu0 %v345
  %1136 = vmatpush.msra.mxu0 %v341
  %1137 = vmatpush.msra.mxu0 %v337
  %1138 = vmatpush.msra.mxu0 %v333
  %1139 = vmatpush.msra.mxu0 %v329
  %1140 = vmatpush.msra.mxu0 %v325
  %1141 = vmatpush.msra.mxu0 %v321
  %1142 = vmatpush.msra.mxu0 %v317
  %1143 = vmatpush.msra.mxu0 %v313
  %1144 = vmatpush.msra.mxu0 %v309
  %1145 = vmatpush.msra.mxu0 %v305
  %1146 = vmatpush.msra.mxu0 %v301
  %1147 = vmatmul.f32.gmra.mxu0 %v1125
  %v1148 = vpop.f32.mrf.mxu0
  %v1149 = vadd.f32 0.0, %v1148
  %1150 = vdwg.mxu0
  %1151 = vmatpush.msra.mxu0 %v362
  %1152 = vmatpush.msra.mxu0 %v358
  %1153 = vmatpush.msra.mxu0 %v354
  %1154 = vmatpush.msra.mxu0 %v350
  %1155 = vmatpush.msra.mxu0 %v346
  %1156 = vmatpush.msra.mxu0 %v342
  %1157 = vmatpush.msra.mxu0 %v338
  %1158 = vmatpush.msra.mxu0 %v334
  %1159 = vmatpush.msra.mxu0 %v330
  %1160 = vmatpush.msra.mxu0 %v326
  %1161 = vmatpush.msra.mxu0 %v322
  %1162 = vmatpush.msra.mxu0 %v318
  %1163 = vmatpush.msra.mxu0 %v314
  %1164 = vmatpush.msra.mxu0 %v310
  %1165 = vmatpush.msra.mxu0 %v306
  %1166 = vmatpush.msra.mxu0 %v302
  %1167 = vmatmul.f32.gmra.mxu0 %v1125
  %v1168 = vpop.f32.mrf.mxu0
  %v1169 = vadd.f32 0.0, %v1168
  %1170 = vdwg.mxu0
  %1171 = vmatpush.msra.mxu0 %v363
  %1172 = vmatpush.msra.mxu0 %v359
  %1173 = vmatpush.msra.mxu0 %v355
  %1174 = vmatpush.msra.mxu0 %v351
  %1175 = vmatpush.msra.mxu0 %v347
  %1176 = vmatpush.msra.mxu0 %v343
  %1177 = vmatpush.msra.mxu0 %v339
  %1178 = vmatpush.msra.mxu0 %v335
  %1179 = vmatpush.msra.mxu0 %v331
  %1180 = vmatpush.msra.mxu0 %v327
  %1181 = vmatpush.msra.mxu0 %v323
  %1182 = vmatpush.msra.mxu0 %v319
  %1183 = vmatpush.msra.mxu0 %v315
  %1184 = vmatpush.msra.mxu0 %v311
  %1185 = vmatpush.msra.mxu0 %v307
  %1186 = vmatpush.msra.mxu0 %v303
  %1187 = vmatmul.f32.gmra.mxu0 %v1125
  %v1188 = vpop.f32.mrf.mxu0
  %v1189 = vadd.f32 0.0, %v1188
  %1190 = vdwg.mxu0
  %1191 = vmatpush.msra.mxu0 %v364
  %1192 = vmatpush.msra.mxu0 %v360
  %1193 = vmatpush.msra.mxu0 %v356
  %1194 = vmatpush.msra.mxu0 %v352
  %1195 = vmatpush.msra.mxu0 %v348
  %1196 = vmatpush.msra.mxu0 %v344
  %1197 = vmatpush.msra.mxu0 %v340
  %1198 = vmatpush.msra.mxu0 %v336
  %1199 = vmatpush.msra.mxu0 %v332
  %1200 = vmatpush.msra.mxu0 %v328
  %1201 = vmatpush.msra.mxu0 %v324
  %1202 = vmatpush.msra.mxu0 %v320
  %1203 = vmatpush.msra.mxu0 %v316
  %1204 = vmatpush.msra.mxu0 %v312
  %1205 = vmatpush.msra.mxu0 %v308
  %1206 = vmatpush.msra.mxu0 %v304
  %1207 = vmatmul.f32.gmra.mxu0 %v1125
  %v1208 = vpop.f32.mrf.mxu0
  %v1209 = vadd.f32 0.0, %v1208
  %1210 = vdwg.mxu0
  %v1211 = vadd.f32 %v1127, %v1149
  %v1212 = vadd.f32 %v1128, %v1169
  %v1213 = vadd.f32 %v1129, %v1189
  %v1214 = vadd.f32 %v1130, %v1209
  %v1215 = vxor.u32 %v1211, 2147483648
  %v1216 = vmul.f32 %v1215, 1.442695
  %v1217 = vpow.pop %v1216
  %v1218 = vadd.f32 %v1217, 1.0
  %v1219 = vrcp.pop %v1218
  %v1220 = vmul.f32 %v1218, %v1219
  %v1221 = vsub.f32 1.0, %v1220
  %v1222 = vmul.f32 %v1219, %v1221
  %v1223 = vadd.f32 %v1219, %v1222
  %vm1224 = vweird.f32 %v1218
  %vm1225 = vweird.f32 %v1219
  %vm1226 = vmor %vm1224, %vm1225
  %v1227 = vsel %vm1226, %v1219, %v1223
  %v1228 = vand.u32 2147483647, %v1218
  %vm1229 = vcmp.eq.f32.partialorder %v1228, 8.507059e+37
  %v1230 = vand.u32 %v1218, 2147483648
  %v1231 = vor.u32 1.1754944e-38, %v1230
  %v1232 = vsel %vm1229, %v1231, %v1227
  %v1233 = vmul.f32 1.0, %v1232
  %v1234 = vxor.u32 %v1212, 2147483648
  %v1235 = vmul.f32 %v1234, 1.442695
  %v1236 = vpow.pop %v1235
  %v1237 = vadd.f32 %v1236, 1.0
  %v1238 = vrcp.pop %v1237
  %v1239 = vmul.f32 %v1237, %v1238
  %v1240 = vsub.f32 1.0, %v1239
  %v1241 = vmul.f32 %v1238, %v1240
  %v1242 = vadd.f32 %v1238, %v1241
  %vm1243 = vweird.f32 %v1237
  %vm1244 = vweird.f32 %v1238
  %vm1245 = vmor %vm1243, %vm1244
  %v1246 = vsel %vm1245, %v1238, %v1242
  %v1247 = vand.u32 2147483647, %v1237
  %vm1248 = vcmp.eq.f32.partialorder %v1247, 8.507059e+37
  %v1249 = vand.u32 %v1237, 2147483648
  %v1250 = vor.u32 1.1754944e-38, %v1249
  %v1251 = vsel %vm1248, %v1250, %v1246
  %v1252 = vmul.f32 1.0, %v1251
  %v1253 = vtanh.pop %v1213
  %v1254 = vxor.u32 %v1214, 2147483648
  %v1255 = vmul.f32 %v1254, 1.442695
  %v1256 = vpow.pop %v1255
  %v1257 = vadd.f32 %v1256, 1.0
  %v1258 = vrcp.pop %v1257
  %v1259 = vmul.f32 %v1257, %v1258
  %v1260 = vsub.f32 1.0, %v1259
  %v1261 = vmul.f32 %v1258, %v1260
  %v1262 = vadd.f32 %v1258, %v1261
  %vm1263 = vweird.f32 %v1257
  %vm1264 = vweird.f32 %v1258
  %vm1265 = vmor %vm1263, %vm1264
  %v1266 = vsel %vm1265, %v1258, %v1262
  %v1267 = vand.u32 2147483647, %v1257
  %vm1268 = vcmp.eq.f32.partialorder %v1267, 8.507059e+37
  %v1269 = vand.u32 %v1257, 2147483648
  %v1270 = vor.u32 1.1754944e-38, %v1269
  %v1271 = vsel %vm1268, %v1270, %v1266
  %v1272 = vmul.f32 1.0, %v1271
  %v1273 = vmul.f32 %v1252, %v1123
  %v1274 = vmul.f32 %v1233, %v1253
  %v1275 = vadd.f32 %v1273, %v1274
  %v1276 = vtanh.pop %v1275
  %v1277 = vmul.f32 %v1272, %v1276
  %1278 = vst [vmem:[%s4 + $0x28] sm:$0xff] %v1277
  %v1279 = vld [vmem:[#allocation4 + $0xc0] sm:$0xff]
  %v1280 = vld [vmem:[#allocation4 + $0xc8] sm:$0xff]
  %v1281 = vld [vmem:[#allocation4 + $0xd0] sm:$0xff]
  %v1282 = vld [vmem:[#allocation4 + $0xd8] sm:$0xff]
  %1283 = vmatpush.msra.mxu0 %v361
  %1284 = vmatpush.msra.mxu0 %v357
  %1285 = vmatpush.msra.mxu0 %v353
  %1286 = vmatpush.msra.mxu0 %v349
  %1287 = vmatpush.msra.mxu0 %v345
  %1288 = vmatpush.msra.mxu0 %v341
  %1289 = vmatpush.msra.mxu0 %v337
  %1290 = vmatpush.msra.mxu0 %v333
  %1291 = vmatpush.msra.mxu0 %v329
  %1292 = vmatpush.msra.mxu0 %v325
  %1293 = vmatpush.msra.mxu0 %v321
  %1294 = vmatpush.msra.mxu0 %v317
  %1295 = vmatpush.msra.mxu0 %v313
  %1296 = vmatpush.msra.mxu0 %v309
  %1297 = vmatpush.msra.mxu0 %v305
  %1298 = vmatpush.msra.mxu0 %v301
  %1299 = vmatmul.f32.gmra.mxu0 %v1277
  %v1300 = vpop.f32.mrf.mxu0
  %v1301 = vadd.f32 0.0, %v1300
  %1302 = vdwg.mxu0
  %1303 = vmatpush.msra.mxu0 %v362
  %1304 = vmatpush.msra.mxu0 %v358
  %1305 = vmatpush.msra.mxu0 %v354
  %1306 = vmatpush.msra.mxu0 %v350
  %1307 = vmatpush.msra.mxu0 %v346
  %1308 = vmatpush.msra.mxu0 %v342
  %1309 = vmatpush.msra.mxu0 %v338
  %1310 = vmatpush.msra.mxu0 %v334
  %1311 = vmatpush.msra.mxu0 %v330
  %1312 = vmatpush.msra.mxu0 %v326
  %1313 = vmatpush.msra.mxu0 %v322
  %1314 = vmatpush.msra.mxu0 %v318
  %1315 = vmatpush.msra.mxu0 %v314
  %1316 = vmatpush.msra.mxu0 %v310
  %1317 = vmatpush.msra.mxu0 %v306
  %1318 = vmatpush.msra.mxu0 %v302
  %1319 = vmatmul.f32.gmra.mxu0 %v1277
  %v1320 = vpop.f32.mrf.mxu0
  %v1321 = vadd.f32 0.0, %v1320
  %1322 = vdwg.mxu0
  %1323 = vmatpush.msra.mxu0 %v363
  %1324 = vmatpush.msra.mxu0 %v359
  %1325 = vmatpush.msra.mxu0 %v355
  %1326 = vmatpush.msra.mxu0 %v351
  %1327 = vmatpush.msra.mxu0 %v347
  %1328 = vmatpush.msra.mxu0 %v343
  %1329 = vmatpush.msra.mxu0 %v339
  %1330 = vmatpush.msra.mxu0 %v335
  %1331 = vmatpush.msra.mxu0 %v331
  %1332 = vmatpush.msra.mxu0 %v327
  %1333 = vmatpush.msra.mxu0 %v323
  %1334 = vmatpush.msra.mxu0 %v319
  %1335 = vmatpush.msra.mxu0 %v315
  %1336 = vmatpush.msra.mxu0 %v311
  %1337 = vmatpush.msra.mxu0 %v307
  %1338 = vmatpush.msra.mxu0 %v303
  %1339 = vmatmul.f32.gmra.mxu0 %v1277
  %v1340 = vpop.f32.mrf.mxu0
  %v1341 = vadd.f32 0.0, %v1340
  %1342 = vdwg.mxu0
  %1343 = vmatpush.msra.mxu0 %v364
  %1344 = vmatpush.msra.mxu0 %v360
  %1345 = vmatpush.msra.mxu0 %v356
  %1346 = vmatpush.msra.mxu0 %v352
  %1347 = vmatpush.msra.mxu0 %v348
  %1348 = vmatpush.msra.mxu0 %v344
  %1349 = vmatpush.msra.mxu0 %v340
  %1350 = vmatpush.msra.mxu0 %v336
  %1351 = vmatpush.msra.mxu0 %v332
  %1352 = vmatpush.msra.mxu0 %v328
  %1353 = vmatpush.msra.mxu0 %v324
  %1354 = vmatpush.msra.mxu0 %v320
  %1355 = vmatpush.msra.mxu0 %v316
  %1356 = vmatpush.msra.mxu0 %v312
  %1357 = vmatpush.msra.mxu0 %v308
  %1358 = vmatpush.msra.mxu0 %v304
  %1359 = vmatmul.f32.gmra.mxu0 %v1277
  %v1360 = vpop.f32.mrf.mxu0
  %v1361 = vadd.f32 0.0, %v1360
  %1362 = vdwg.mxu0
  %v1363 = vadd.f32 %v1279, %v1301
  %v1364 = vadd.f32 %v1280, %v1321
  %v1365 = vadd.f32 %v1281, %v1341
  %v1366 = vadd.f32 %v1282, %v1361
  %v1367 = vxor.u32 %v1363, 2147483648
  %v1368 = vmul.f32 %v1367, 1.442695
  %v1369 = vpow.pop %v1368
  %v1370 = vadd.f32 %v1369, 1.0
  %v1371 = vrcp.pop %v1370
  %v1372 = vmul.f32 %v1370, %v1371
  %v1373 = vsub.f32 1.0, %v1372
  %v1374 = vmul.f32 %v1371, %v1373
  %v1375 = vadd.f32 %v1371, %v1374
  %vm1376 = vweird.f32 %v1370
  %vm1377 = vweird.f32 %v1371
  %vm1378 = vmor %vm1376, %vm1377
  %v1379 = vsel %vm1378, %v1371, %v1375
  %v1380 = vand.u32 2147483647, %v1370
  %vm1381 = vcmp.eq.f32.partialorder %v1380, 8.507059e+37
  %v1382 = vand.u32 %v1370, 2147483648
  %v1383 = vor.u32 1.1754944e-38, %v1382
  %v1384 = vsel %vm1381, %v1383, %v1379
  %v1385 = vmul.f32 1.0, %v1384
  %v1386 = vxor.u32 %v1364, 2147483648
  %v1387 = vmul.f32 %v1386, 1.442695
  %v1388 = vpow.pop %v1387
  %v1389 = vadd.f32 %v1388, 1.0
  %v1390 = vrcp.pop %v1389
  %v1391 = vmul.f32 %v1389, %v1390
  %v1392 = vsub.f32 1.0, %v1391
  %v1393 = vmul.f32 %v1390, %v1392
  %v1394 = vadd.f32 %v1390, %v1393
  %vm1395 = vweird.f32 %v1389
  %vm1396 = vweird.f32 %v1390
  %vm1397 = vmor %vm1395, %vm1396
  %v1398 = vsel %vm1397, %v1390, %v1394
  %v1399 = vand.u32 2147483647, %v1389
  %vm1400 = vcmp.eq.f32.partialorder %v1399, 8.507059e+37
  %v1401 = vand.u32 %v1389, 2147483648
  %v1402 = vor.u32 1.1754944e-38, %v1401
  %v1403 = vsel %vm1400, %v1402, %v1398
  %v1404 = vmul.f32 1.0, %v1403
  %v1405 = vtanh.pop %v1365
  %v1406 = vxor.u32 %v1366, 2147483648
  %v1407 = vmul.f32 %v1406, 1.442695
  %v1408 = vpow.pop %v1407
  %v1409 = vadd.f32 %v1408, 1.0
  %v1410 = vrcp.pop %v1409
  %v1411 = vmul.f32 %v1409, %v1410
  %v1412 = vsub.f32 1.0, %v1411
  %v1413 = vmul.f32 %v1410, %v1412
  %v1414 = vadd.f32 %v1410, %v1413
  %vm1415 = vweird.f32 %v1409
  %vm1416 = vweird.f32 %v1410
  %vm1417 = vmor %vm1415, %vm1416
  %v1418 = vsel %vm1417, %v1410, %v1414
  %v1419 = vand.u32 2147483647, %v1409
  %vm1420 = vcmp.eq.f32.partialorder %v1419, 8.507059e+37
  %v1421 = vand.u32 %v1409, 2147483648
  %v1422 = vor.u32 1.1754944e-38, %v1421
  %v1423 = vsel %vm1420, %v1422, %v1418
  %v1424 = vmul.f32 1.0, %v1423
  %v1425 = vmul.f32 %v1404, %v1275
  %v1426 = vmul.f32 %v1385, %v1405
  %v1427 = vadd.f32 %v1425, %v1426
  %v1428 = vtanh.pop %v1427
  %v1429 = vmul.f32 %v1424, %v1428
  %1430 = vst [vmem:[%s4 + $0x30] sm:$0xff] %v1429
  %v1431 = vld [vmem:[#allocation4 + $0xe0] sm:$0xff]
  %v1432 = vld [vmem:[#allocation4 + $0xe8] sm:$0xff]
  %v1433 = vld [vmem:[#allocation4 + $0xf0] sm:$0xff]
  %v1434 = vld [vmem:[#allocation4 + $0xf8] sm:$0xff]
  %1435 = vmatpush.msra.mxu0 %v361
  %1436 = vmatpush.msra.mxu0 %v357
  %1437 = vmatpush.msra.mxu0 %v353
  %1438 = vmatpush.msra.mxu0 %v349
  %1439 = vmatpush.msra.mxu0 %v345
  %1440 = vmatpush.msra.mxu0 %v341
  %1441 = vmatpush.msra.mxu0 %v337
  %1442 = vmatpush.msra.mxu0 %v333
  %1443 = vmatpush.msra.mxu0 %v329
  %1444 = vmatpush.msra.mxu0 %v325
  %1445 = vmatpush.msra.mxu0 %v321
  %1446 = vmatpush.msra.mxu0 %v317
  %1447 = vmatpush.msra.mxu0 %v313
  %1448 = vmatpush.msra.mxu0 %v309
  %1449 = vmatpush.msra.mxu0 %v305
  %1450 = vmatpush.msra.mxu0 %v301
  %1451 = vmatmul.f32.gmra.mxu0 %v1429
  %v1452 = vpop.f32.mrf.mxu0
  %v1453 = vadd.f32 0.0, %v1452
  %1454 = vdwg.mxu0
  %1455 = vmatpush.msra.mxu0 %v362
  %1456 = vmatpush.msra.mxu0 %v358
  %1457 = vmatpush.msra.mxu0 %v354
  %1458 = vmatpush.msra.mxu0 %v350
  %1459 = vmatpush.msra.mxu0 %v346
  %1460 = vmatpush.msra.mxu0 %v342
  %1461 = vmatpush.msra.mxu0 %v338
  %1462 = vmatpush.msra.mxu0 %v334
  %1463 = vmatpush.msra.mxu0 %v330
  %1464 = vmatpush.msra.mxu0 %v326
  %1465 = vmatpush.msra.mxu0 %v322
  %1466 = vmatpush.msra.mxu0 %v318
  %1467 = vmatpush.msra.mxu0 %v314
  %1468 = vmatpush.msra.mxu0 %v310
  %1469 = vmatpush.msra.mxu0 %v306
  %1470 = vmatpush.msra.mxu0 %v302
  %1471 = vmatmul.f32.gmra.mxu0 %v1429
  %v1472 = vpop.f32.mrf.mxu0
  %v1473 = vadd.f32 0.0, %v1472
  %1474 = vdwg.mxu0
  %1475 = vmatpush.msra.mxu0 %v363
  %1476 = vmatpush.msra.mxu0 %v359
  %1477 = vmatpush.msra.mxu0 %v355
  %1478 = vmatpush.msra.mxu0 %v351
  %1479 = vmatpush.msra.mxu0 %v347
  %1480 = vmatpush.msra.mxu0 %v343
  %1481 = vmatpush.msra.mxu0 %v339
  %1482 = vmatpush.msra.mxu0 %v335
  %1483 = vmatpush.msra.mxu0 %v331
  %1484 = vmatpush.msra.mxu0 %v327
  %1485 = vmatpush.msra.mxu0 %v323
  %1486 = vmatpush.msra.mxu0 %v319
  %1487 = vmatpush.msra.mxu0 %v315
  %1488 = vmatpush.msra.mxu0 %v311
  %1489 = vmatpush.msra.mxu0 %v307
  %1490 = vmatpush.msra.mxu0 %v303
  %1491 = vmatmul.f32.gmra.mxu0 %v1429
  %v1492 = vpop.f32.mrf.mxu0
  %v1493 = vadd.f32 0.0, %v1492
  %1494 = vdwg.mxu0
  %1495 = vmatpush.msra.mxu0 %v364
  %1496 = vmatpush.msra.mxu0 %v360
  %1497 = vmatpush.msra.mxu0 %v356
  %1498 = vmatpush.msra.mxu0 %v352
  %1499 = vmatpush.msra.mxu0 %v348
  %1500 = vmatpush.msra.mxu0 %v344
  %1501 = vmatpush.msra.mxu0 %v340
  %1502 = vmatpush.msra.mxu0 %v336
  %1503 = vmatpush.msra.mxu0 %v332
  %1504 = vmatpush.msra.mxu0 %v328
  %1505 = vmatpush.msra.mxu0 %v324
  %1506 = vmatpush.msra.mxu0 %v320
  %1507 = vmatpush.msra.mxu0 %v316
  %1508 = vmatpush.msra.mxu0 %v312
  %1509 = vmatpush.msra.mxu0 %v308
  %1510 = vmatpush.msra.mxu0 %v304
  %1511 = vmatmul.f32.gmra.mxu0 %v1429
  %v1512 = vpop.f32.mrf.mxu0
  %v1513 = vadd.f32 0.0, %v1512
  %1514 = vdwg.mxu0
  %v1515 = vadd.f32 %v1431, %v1453
  %v1516 = vadd.f32 %v1432, %v1473
  %v1517 = vadd.f32 %v1433, %v1493
  %v1518 = vadd.f32 %v1434, %v1513
  %v1519 = vxor.u32 %v1515, 2147483648
  %v1520 = vmul.f32 %v1519, 1.442695
  %v1521 = vpow.pop %v1520
  %v1522 = vadd.f32 %v1521, 1.0
  %v1523 = vrcp.pop %v1522
  %v1524 = vmul.f32 %v1522, %v1523
  %v1525 = vsub.f32 1.0, %v1524
  %v1526 = vmul.f32 %v1523, %v1525
  %v1527 = vadd.f32 %v1523, %v1526
  %vm1528 = vweird.f32 %v1522
  %vm1529 = vweird.f32 %v1523
  %vm1530 = vmor %vm1528, %vm1529
  %v1531 = vsel %vm1530, %v1523, %v1527
  %v1532 = vand.u32 2147483647, %v1522
  %vm1533 = vcmp.eq.f32.partialorder %v1532, 8.507059e+37
  %v1534 = vand.u32 %v1522, 2147483648
  %v1535 = vor.u32 1.1754944e-38, %v1534
  %v1536 = vsel %vm1533, %v1535, %v1531
  %v1537 = vmul.f32 1.0, %v1536
  %v1538 = vxor.u32 %v1516, 2147483648
  %v1539 = vmul.f32 %v1538, 1.442695
  %v1540 = vpow.pop %v1539
  %v1541 = vadd.f32 %v1540, 1.0
  %v1542 = vrcp.pop %v1541
  %v1543 = vmul.f32 %v1541, %v1542
  %v1544 = vsub.f32 1.0, %v1543
  %v1545 = vmul.f32 %v1542, %v1544
  %v1546 = vadd.f32 %v1542, %v1545
  %vm1547 = vweird.f32 %v1541
  %vm1548 = vweird.f32 %v1542
  %vm1549 = vmor %vm1547, %vm1548
  %v1550 = vsel %vm1549, %v1542, %v1546
  %v1551 = vand.u32 2147483647, %v1541
  %vm1552 = vcmp.eq.f32.partialorder %v1551, 8.507059e+37
  %v1553 = vand.u32 %v1541, 2147483648
  %v1554 = vor.u32 1.1754944e-38, %v1553
  %v1555 = vsel %vm1552, %v1554, %v1550
  %v1556 = vmul.f32 1.0, %v1555
  %v1557 = vtanh.pop %v1517
  %v1558 = vxor.u32 %v1518, 2147483648
  %v1559 = vmul.f32 %v1558, 1.442695
  %v1560 = vpow.pop %v1559
  %v1561 = vadd.f32 %v1560, 1.0
  %v1562 = vrcp.pop %v1561
  %v1563 = vmul.f32 %v1561, %v1562
  %v1564 = vsub.f32 1.0, %v1563
  %v1565 = vmul.f32 %v1562, %v1564
  %v1566 = vadd.f32 %v1562, %v1565
  %vm1567 = vweird.f32 %v1561
  %vm1568 = vweird.f32 %v1562
  %vm1569 = vmor %vm1567, %vm1568
  %v1570 = vsel %vm1569, %v1562, %v1566
  %v1571 = vand.u32 2147483647, %v1561
  %vm1572 = vcmp.eq.f32.partialorder %v1571, 8.507059e+37
  %v1573 = vand.u32 %v1561, 2147483648
  %v1574 = vor.u32 1.1754944e-38, %v1573
  %v1575 = vsel %vm1572, %v1574, %v1570
  %v1576 = vmul.f32 1.0, %v1575
  %v1577 = vmul.f32 %v1556, %v1427
  %v1578 = vmul.f32 %v1537, %v1557
  %v1579 = vadd.f32 %v1577, %v1578
  %v1580 = vtanh.pop %v1579
  %v1581 = vmul.f32 %v1576, %v1580
  %1582 = vst [vmem:[%s4 + $0x38] sm:$0xff] %v1581
  %1583 = vst [vmem:[#allocation2] sm:$0xff] %v1581
  %1584 = vst [vmem:[#allocation3] sm:$0xff] %v1579
  // Predicated region
  $region22: #{a_call__.3} parent=0 // pred_check
    _
  $region23: #{a_call__.3} parent=0 // pred_check_branch
    %1586 = sbr.rel (0) target = $region25
  $region24: #{a_call__.3} parent=0 // pred_region
    _
  $region25: #{a_call__.3} parent=0 // pred_fallthru
    _
  // Predicated region
  $region26: #{a_call__.3} parent=0 // pred_check
    _
  $region27: #{a_call__.3} parent=0 // pred_check_branch
    %1588 = sbr.rel (0) target = $region29
  $region28: #{a_call__.3} parent=0 // pred_region
    _
  $region29: #{a_call__.3} parent=0 // pred_fallthru
    _

</llo_original>
